<compile_context>
chip_gen: v5e
topology: v5e:2x2
jax: 0.10.0
libtpu: 0.0.40
codegen_flags: <defaults>
</compile_context>

<pallas_src>
import functools

import jax
import jax.numpy as jnp
from jax.experimental import pallas as pl
from jax.experimental.pallas import tpu as pltpu


# -----------------------------------------------------------------------------
# small helpers
# -----------------------------------------------------------------------------
def _round_up(x, m):
    return ((x + m - 1) // m) * m


def _pick_tile(n, pref=256):
    """Row tile: multiple of 8, at most `pref`."""
    return min(pref, _round_up(n, 8))


# -----------------------------------------------------------------------------
# Pallas kernels
# -----------------------------------------------------------------------------
def _mlp2_kernel(x_ref, w1_ref, b1_ref, w2_ref, b2_ref, o_ref):
    # Fused Linear -> ReLU -> Linear on one row tile.
    h = jnp.dot(x_ref[...], w1_ref[...], preferred_element_type=jnp.float32)
    h = jnp.maximum(h + b1_ref[...], 0.0)
    o_ref[...] = (jnp.dot(h, w2_ref[...], preferred_element_type=jnp.float32)
                  + b2_ref[...])


def mlp2(x, p, *, tile):
    """2-layer MLP, tiled over rows. Weights already padded (lane-dense)."""
    rows, din = x.shape
    dh = p["w1"].shape[1]
    dout = p["w2"].shape[1]
    grid = (rows // tile,)
    flops = int(2 * rows * (din * dh + dh * dout))
    bytes_acc = int(4 * (rows * din + rows * dout + din * dh + dh * dout
                         + dh + dout))
    return pl.pallas_call(
        _mlp2_kernel,
        out_shape=jax.ShapeDtypeStruct((rows, dout), jnp.float32),
        grid=grid,
        in_specs=[
            pl.BlockSpec((tile, din), lambda i: (i, 0)),
            pl.BlockSpec((din, dh), lambda i: (0, 0)),
            pl.BlockSpec((1, dh), lambda i: (0, 0)),
            pl.BlockSpec((dh, dout), lambda i: (0, 0)),
            pl.BlockSpec((1, dout), lambda i: (0, 0)),
        ],
        out_specs=pl.BlockSpec((tile, dout), lambda i: (i, 0)),
        compiler_params=pltpu.CompilerParams(
            dimension_semantics=("parallel",)),
        cost_estimate=pl.CostEstimate(flops=flops, transcendentals=0,
                                      bytes_accessed=bytes_acc),
    )(x, p["w1"], p["b1"], p["w2"], p["b2"])


def _edge_layer_kernel(src_ref, dst_ref, e_ref, ue_ref,
                       w1s_ref, w1d_ref, w1e_ref, w1u_ref,
                       b1_ref, w2_ref, b2_ref, o_ref):
    # edge MLP with split W1 blocks -> no [E, 4H] concat ever materialized.
    h = jnp.dot(src_ref[...], w1s_ref[...], preferred_element_type=jnp.float32)
    h = h + jnp.dot(dst_ref[...], w1d_ref[...], preferred_element_type=jnp.float32)
    h = h + jnp.dot(e_ref[...], w1e_ref[...], preferred_element_type=jnp.float32)
    h = h + jnp.dot(ue_ref[...], w1u_ref[...], preferred_element_type=jnp.float32)
    h = jnp.maximum(h + b1_ref[...], 0.0)
    o_ref[...] = (jnp.dot(h, w2_ref[...], preferred_element_type=jnp.float32)
                  + b2_ref[...])


def edge_layer(src, dst, e_h, u_e, p, *, tile):
    e_pad, hp = e_h.shape
    grid = (e_pad // tile,)
    flops = int(2 * e_pad * hp * hp * 5)
    bytes_acc = int(4 * (5 * e_pad * hp + 5 * hp * hp + 2 * hp))
    row_spec = pl.BlockSpec((tile, hp), lambda i: (i, 0))
    w_spec = pl.BlockSpec((hp, hp), lambda i: (0, 0))
    b_spec = pl.BlockSpec((1, hp), lambda i: (0, 0))
    return pl.pallas_call(
        _edge_layer_kernel,
        out_shape=jax.ShapeDtypeStruct((e_pad, hp), jnp.float32),
        grid=grid,
        in_specs=[row_spec, row_spec, row_spec, row_spec,
                  w_spec, w_spec, w_spec, w_spec,
                  b_spec, w_spec, b_spec],
        out_specs=row_spec,
        compiler_params=pltpu.CompilerParams(
            dimension_semantics=("parallel",)),
        cost_estimate=pl.CostEstimate(flops=flops, transcendentals=0,
                                      bytes_accessed=bytes_acc),
    )(src, dst, e_h, u_e,
      p["w1s"], p["w1d"], p["w1e"], p["w1u"], p["b1"], p["w2"], p["b2"])


def _node_layer_kernel(row_ref, e_ref, x_ref, un_ref,
                       w1x_ref, w1a_ref, w1u_ref, b1_ref, w2_ref, b2_ref,
                       o_ref, sum_acc, cnt_acc):
    # Fused: scatter_mean(edge_attr, row) over E tiles  ->  node MLP (split W1)
    #        -> residual add. Output block (i, 0) is resident across the E axis.
    k = pl.program_id(1)
    nk = pl.num_programs(1)
    tn = o_ref.shape[0]

    @pl.when(k == 0)
    def _init():
        sum_acc[...] = jnp.zeros_like(sum_acc)
        cnt_acc[...] = jnp.zeros_like(cnt_acc)

    row = row_ref[...]                                   # [1, TE] int32
    te = row.shape[1]
    node_ids = (jax.lax.broadcasted_iota(jnp.int32, (tn, te), 0)
                + pl.program_id(0) * tn)
    onehot = (node_ids == row).astype(jnp.float32)       # [TN, TE]  (per tile)
    sum_acc[...] += jnp.dot(onehot, e_ref[...],
                            preferred_element_type=jnp.float32)
    cnt_acc[...] += jnp.sum(onehot, axis=1, keepdims=True)

    @pl.when(k == nk - 1)
    def _finish():
        # torch_scatter.scatter_mean leaves empty segments at 0 -> clamp to 1.
        agg = sum_acc[...] / jnp.maximum(cnt_acc[...], 1.0)
        x = x_ref[...]
        h = jnp.dot(x, w1x_ref[...], preferred_element_type=jnp.float32)
        h = h + jnp.dot(agg, w1a_ref[...], preferred_element_type=jnp.float32)
        h = h + jnp.dot(un_ref[...], w1u_ref[...],
                        preferred_element_type=jnp.float32)
        h = jnp.maximum(h + b1_ref[...], 0.0)
        out = (jnp.dot(h, w2_ref[...], preferred_element_type=jnp.float32)
               + b2_ref[...])
        o_ref[...] = out + x                              # residual fused in


def node_layer(row2d, e_h, x_h, u_n, p, *, tn, te):
    n_pad, hp = x_h.shape
    e_pad = e_h.shape[0]
    grid = (n_pad // tn, e_pad // te)
    flops = int(2 * n_pad * e_pad * hp + 8 * n_pad * hp * hp)
    bytes_acc = int(4 * ((n_pad // tn) * e_pad * (hp + 1)
                         + 3 * n_pad * hp + 5 * hp * hp + 2 * hp))
    w_spec = pl.BlockSpec((hp, hp), lambda i, k: (0, 0))
    b_spec = pl.BlockSpec((1, hp), lambda i, k: (0, 0))
    n_spec = pl.BlockSpec((tn, hp), lambda i, k: (i, 0))
    return pl.pallas_call(
        _node_layer_kernel,
        out_shape=jax.ShapeDtypeStruct((n_pad, hp), jnp.float32),
        grid=grid,
        in_specs=[
            pl.BlockSpec((1, te), lambda i, k: (0, k)),   # row indices
            pl.BlockSpec((te, hp), lambda i, k: (k, 0)),  # edge features
            n_spec,                                        # x (also residual)
            n_spec,                                        # u[batch]
            w_spec, w_spec, w_spec, b_spec, w_spec, b_spec,
        ],
        out_specs=n_spec,
        scratch_shapes=[pltpu.VMEM((tn, hp), jnp.float32),
                        pltpu.VMEM((tn, 1), jnp.float32)],
        compiler_params=pltpu.CompilerParams(
            dimension_semantics=("parallel", "arbitrary")),
        cost_estimate=pl.CostEstimate(flops=flops, transcendentals=0,
                                      bytes_accessed=bytes_acc),
    )(row2d, e_h, x_h, u_n,
      p["w1x"], p["w1a"], p["w1u"], p["b1"], p["w2"], p["b2"])


# -----------------------------------------------------------------------------
# Parameter initialization (PyTorch-Linear-style uniform bounds)
# -----------------------------------------------------------------------------
def init_linear(key, din, dout):
    k1, k2 = jax.random.split(key)
    bound = 1.0 / jnp.sqrt(jnp.float32(din))
    w = jax.random.uniform(k1, (din, dout), jnp.float32, -bound, bound)
    b = jax.random.uniform(k2, (dout,), jnp.float32, -bound, bound)
    return w, b


def init_mlp2(key, din, dh, dout):
    k1, k2 = jax.random.split(key)
    w1, b1 = init_linear(k1, din, dh)
    w2, b2 = init_linear(k2, dh, dout)
    return (w1, b1, w2, b2)


def init_params(key, node_in, edge_in, cond_in, node_out, hidden, num_layers):
    keys = jax.random.split(key, 4 + 2 * num_layers)
    params = {
        "node_enc": init_mlp2(keys[0], node_in, hidden, hidden),
        "edge_enc": init_mlp2(keys[1], edge_in, hidden, hidden),
        "cond_enc": init_mlp2(keys[2], cond_in, hidden, hidden),
        "node_dec": init_mlp2(keys[3], hidden, hidden, node_out),
        "edge_mlp": [],
        "node_mlp": [],
    }
    for l in range(num_layers):
        params["edge_mlp"].append(
            init_mlp2(keys[4 + 2 * l], 4 * hidden, hidden, hidden))
        params["node_mlp"].append(
            init_mlp2(keys[5 + 2 * l], 3 * hidden, hidden, hidden))
    return params


# -----------------------------------------------------------------------------
# Parameter prep: pad to 128 lanes, split W1 blocks, reshape biases (once)
# -----------------------------------------------------------------------------
def prepare_params(params, *, hidden, node_out):
    HP = _round_up(hidden, 128)
    OP = _round_up(node_out, 128)

    def pad_to(a, rows, cols):
        return jnp.pad(a, ((0, rows - a.shape[0]), (0, cols - a.shape[1])))

    def prep_mlp(p, din_pad, dout_pad):
        w1, b1, w2, b2 = p
        return {"w1": pad_to(w1, din_pad, HP),
                "b1": pad_to(b1.reshape(1, -1), 1, HP),
                "w2": pad_to(w2, HP, dout_pad),
                "b2": pad_to(b2.reshape(1, -1), 1, dout_pad)}

    H = hidden
    prep = {
        "node_enc": prep_mlp(params["node_enc"], params["node_enc"][0].shape[0], HP),
        "edge_enc": prep_mlp(params["edge_enc"], params["edge_enc"][0].shape[0], HP),
        "cond_enc": prep_mlp(params["cond_enc"], params["cond_enc"][0].shape[0], HP),
        "node_dec": prep_mlp(params["node_dec"], HP, OP),
        "edge": [],
        "node": [],
    }
    for (w1, b1, w2, b2) in params["edge_mlp"]:
        prep["edge"].append({
            "w1s": pad_to(w1[0 * H:1 * H], HP, HP),
            "w1d": pad_to(w1[1 * H:2 * H], HP, HP),
            "w1e": pad_to(w1[2 * H:3 * H], HP, HP),
            "w1u": pad_to(w1[3 * H:4 * H], HP, HP),
            "b1": pad_to(b1.reshape(1, -1), 1, HP),
            "w2": pad_to(w2, HP, HP),
            "b2": pad_to(b2.reshape(1, -1), 1, HP),
        })
    for (w1, b1, w2, b2) in params["node_mlp"]:
        prep["node"].append({
            "w1x": pad_to(w1[0 * H:1 * H], HP, HP),
            "w1a": pad_to(w1[1 * H:2 * H], HP, HP),
            "w1u": pad_to(w1[2 * H:3 * H], HP, HP),
            "b1": pad_to(b1.reshape(1, -1), 1, HP),
            "w2": pad_to(w2, HP, HP),
            "b2": pad_to(b2.reshape(1, -1), 1, HP),
        })
    return prep


# -----------------------------------------------------------------------------
# Forward pass
# -----------------------------------------------------------------------------
def conditional_graph_network(prep, x, edge_index, edge_attr, conditions,
                              batch, *, num_layers, hidden, node_out,
                              row_tile=256):
    N = x.shape[0]
    E = edge_attr.shape[0]
    B = conditions.shape[0]

    tn = _pick_tile(N, row_tile)
    te = _pick_tile(E, row_tile)
    tb = _pick_tile(B, row_tile)
    N_pad = _round_up(N, tn)
    E_pad = _round_up(E, te)
    B_pad = _round_up(B, tb)

    row = edge_index[0].astype(jnp.int32)
    col = edge_index[1].astype(jnp.int32)
    edge_batch = batch[row].astype(jnp.int32)

    # Row padding: padded edges get row = -1 so they match no node id in the
    # scatter kernel; padded nodes/conditions are zero rows, sliced off at end.
    x_p = jnp.pad(x, ((0, N_pad - N), (0, 0)))
    e_p = jnp.pad(edge_attr, ((0, E_pad - E), (0, 0)))
    c_p = jnp.pad(conditions, ((0, B_pad - B), (0, 0)))
    batch_p = jnp.pad(batch.astype(jnp.int32), (0, N_pad - N))
    row_p = jnp.pad(row, (0, E_pad - E), constant_values=-1)
    col_p = jnp.pad(col, (0, E_pad - E))
    ebatch_p = jnp.pad(edge_batch, (0, E_pad - E))

    # Encoders (fused 2-layer MLPs, lane-dense 128-wide outputs).
    x_h = mlp2(x_p, prep["node_enc"], tile=tn)           # [N_pad, 128]
    e_h = mlp2(e_p, prep["edge_enc"], tile=te)           # [E_pad, 128]
    u_h = mlp2(c_p, prep["cond_enc"], tile=tb)           # [B_pad, 128]

    # Loop-invariant global gathers hoisted out of the layer loop.
    u_n = u_h[batch_p]                                   # [N_pad, 128]
    u_e = u_h[ebatch_p]                                  # [E_pad, 128]
    row2d = row_p.reshape(1, E_pad)

    for l in range(num_layers):
        src = x_h[row_p]                                 # XLA gather
        dst = x_h[col_p]
        e_h = edge_layer(src, dst, e_h, u_e, prep["edge"][l], tile=te)
        x_h = node_layer(row2d, e_h, x_h, u_n, prep["node"][l], tn=tn, te=te)

    out = mlp2(x_h, prep["node_dec"], tile=tn)           # [N_pad, 128]
    return out[:N, :node_out]


# -----------------------------------------------------------------------------
# Pure-JAX reference (for correctness check)
# -----------------------------------------------------------------------------
def _mlp2_ref(x, params):
    w1, b1, w2, b2 = params
    h = jnp.maximum(x @ w1 + b1, 0.0)
    return h @ w2 + b2


def _scatter_mean_ref(e, row, n):
    sums = jax.ops.segment_sum(e, row, num_segments=n)
    counts = jax.ops.segment_sum(jnp.ones((e.shape[0],), jnp.float32), row,
                                 num_segments=n)
    return sums / jnp.maximum(counts, 1.0)[:, None]


def reference_forward(params, x, edge_index, edge_attr, conditions, batch,
                      *, num_layers):
    n = x.shape[0]
    x = _mlp2_ref(x, params["node_enc"])
    edge_attr = _mlp2_ref(edge_attr, params["edge_enc"])
    u = _mlp2_ref(conditions, params["cond_enc"])
    row, col = edge_index[0], edge_index[1]
    edge_batch = batch[row]
    for l in range(num_layers):
        x_res = x
        combined_e = jnp.concatenate([x[row], x[col], edge_attr, u[edge_batch]],
                                     axis=1)
        edge_attr = _mlp2_ref(combined_e, params["edge_mlp"][l])
        agg = _scatter_mean_ref(edge_attr, row, n)
        combined_n = jnp.concatenate([x, agg, u[batch]], axis=1)
        x = _mlp2_ref(combined_n, params["node_mlp"][l]) + x_res
    return _mlp2_ref(x, params["node_dec"])


# -----------------------------------------------------------------------------
if __name__ == "__main__":
    NODE_IN, EDGE_IN, COND_IN = 6, 3, 4
    NODE_OUT, HIDDEN, NUM_LAYERS = 3, 32, 2
    N, E, B = 64, 128, 2

    key = jax.random.PRNGKey(0)
    kp, kx, ke, kc, kr0, kc0, kr1, kc1 = jax.random.split(key, 8)

    params = init_params(kp, NODE_IN, EDGE_IN, COND_IN, NODE_OUT, HIDDEN,
                         NUM_LAYERS)
    prep = prepare_params(params, hidden=HIDDEN, node_out=NODE_OUT)

    x = jax.random.normal(kx, (N, NODE_IN), jnp.float32)
    edge_attr = jax.random.normal(ke, (E, EDGE_IN), jnp.float32)
    conditions = jax.random.normal(kc, (B, COND_IN), jnp.float32)

    # Two graphs of 32 nodes each; edges stay within their graph.
    batch = jnp.concatenate([jnp.zeros(32, jnp.int32), jnp.ones(32, jnp.int32)])
    row = jnp.concatenate([
        jax.random.randint(kr0, (E // 2,), 0, 32, jnp.int32),
        32 + jax.random.randint(kr1, (E // 2,), 0, 32, jnp.int32),
    ])
    col = jnp.concatenate([
        jax.random.randint(kc0, (E // 2,), 0, 32, jnp.int32),
        32 + jax.random.randint(kc1, (E // 2,), 0, 32, jnp.int32),
    ])
    edge_index = jnp.stack([row, col], axis=0)

    fwd = jax.jit(functools.partial(conditional_graph_network,
                                    num_layers=NUM_LAYERS, hidden=HIDDEN,
                                    node_out=NODE_OUT))
    out = fwd(prep, x, edge_index, edge_attr, conditions, batch)
    out = jax.block_until_ready(out)

    ref = reference_forward(params, x, edge_index, edge_attr, conditions,
                            batch, num_layers=NUM_LAYERS)
    assert out.shape == (N, NODE_OUT)
    assert jnp.allclose(out, ref, rtol=1e-2, atol=1e-2)

    print("KERNEL_OK")
</pallas_src>

<mosaic_0001>
module attributes {stable_mosaic.version = 11 : i64} {
  func.func @_mlp2_kernel(%arg0: i32, %arg1: memref<64x6xf32, #tpu.memory_space<vmem>>, %arg2: memref<6x128xf32, #tpu.memory_space<vmem>>, %arg3: memref<1x128xf32, #tpu.memory_space<vmem>>, %arg4: memref<128x128xf32, #tpu.memory_space<vmem>>, %arg5: memref<1x128xf32, #tpu.memory_space<vmem>>, %arg6: memref<64x128xf32, #tpu.memory_space<vmem>>) attributes {dimension_semantics = [#tpu.dimension_semantics<parallel>], iteration_bounds = array<i64: 1>, scalar_prefetch = 0 : i64, scratch_operands = 0 : i64, tpu.core_type = #tpu.core_type<tc>, window_params = [{transform_indices = @transform_0, window_bounds = array<i64: 64, 6>}, {pipeline_mode = #tpu.pipeline_mode<synchronous>, transform_indices = @transform_1, window_bounds = array<i64: 6, 128>}, {pipeline_mode = #tpu.pipeline_mode<synchronous>, transform_indices = @transform_2, window_bounds = array<i64: 1, 128>}, {pipeline_mode = #tpu.pipeline_mode<synchronous>, transform_indices = @transform_3, window_bounds = array<i64: 128, 128>}, {pipeline_mode = #tpu.pipeline_mode<synchronous>, transform_indices = @transform_4, window_bounds = array<i64: 1, 128>}, {transform_indices = @transform_5, window_bounds = array<i64: 64, 128>}]} {
    %c0 = arith.constant 0 : index
    %c0_0 = arith.constant 0 : index
    %0 = vector.load %arg1[%c0, %c0_0] : memref<64x6xf32, #tpu.memory_space<vmem>>, vector<64x6xf32>
    %c0_1 = arith.constant 0 : index
    %c0_2 = arith.constant 0 : index
    %1 = vector.load %arg2[%c0_1, %c0_2] : memref<6x128xf32, #tpu.memory_space<vmem>>, vector<6x128xf32>
    %cst = arith.constant dense<0.000000e+00> : vector<64x128xf32>
    %2 = tpu.matmul %0, %1, %cst {dimension_numbers = #tpu.dot_dimension_numbers<[1], [0], [0], [1], [0, 0, 1, 1], [], []>} : vector<64x6xf32>, vector<6x128xf32>, vector<64x128xf32> -> vector<64x128xf32>
    %c0_3 = arith.constant 0 : index
    %c0_4 = arith.constant 0 : index
    %3 = vector.load %arg3[%c0_3, %c0_4] : memref<1x128xf32, #tpu.memory_space<vmem>>, vector<1x128xf32>
    %4 = vector.broadcast %3 : vector<1x128xf32> to vector<64x128xf32>
    %5 = arith.addf %2, %4 : vector<64x128xf32>
    %cst_5 = arith.constant 0.000000e+00 : f32
    %6 = vector.broadcast %cst_5 : f32 to vector<64x128xf32>
    %7 = arith.maximumf %5, %6 : vector<64x128xf32>
    %c0_6 = arith.constant 0 : index
    %c0_7 = arith.constant 0 : index
    %8 = vector.load %arg4[%c0_6, %c0_7] : memref<128x128xf32, #tpu.memory_space<vmem>>, vector<128x128xf32>
    %cst_8 = arith.constant dense<0.000000e+00> : vector<64x128xf32>
    %9 = tpu.matmul %7, %8, %cst_8 {dimension_numbers = #tpu.dot_dimension_numbers<[1], [0], [0], [1], [0, 0, 1, 1], [], []>} : vector<64x128xf32>, vector<128x128xf32>, vector<64x128xf32> -> vector<64x128xf32>
    %c0_9 = arith.constant 0 : index
    %c0_10 = arith.constant 0 : index
    %10 = vector.load %arg5[%c0_9, %c0_10] : memref<1x128xf32, #tpu.memory_space<vmem>>, vector<1x128xf32>
    %11 = vector.broadcast %10 : vector<1x128xf32> to vector<64x128xf32>
    %12 = arith.addf %9, %11 : vector<64x128xf32>
    %c0_11 = arith.constant 0 : index
    %c0_12 = arith.constant 0 : index
    %13 = vector.load %arg6[%c0_11, %c0_12] : memref<64x128xf32, #tpu.memory_space<vmem>>, vector<64x128xf32>
    tpu.vector_store %arg6[%c0_11, %c0_12], %12 {strides = array<i32>} : memref<64x128xf32, #tpu.memory_space<vmem>>, vector<64x128xf32>,
    return
  }
  func.func @transform_0(%arg0: i32) -> (i32, i32) {
    %c0_i32 = arith.constant 0 : i32
    %c0_i32_0 = arith.constant 0 : i32
    return %arg0, %c0_i32 : i32, i32
  }
  func.func @transform_1(%arg0: i32) -> (i32, i32) {
    %c0_i32 = arith.constant 0 : i32
    %c0_i32_0 = arith.constant 0 : i32
    %c0_i32_1 = arith.constant 0 : i32
    return %c0_i32, %c0_i32_0 : i32, i32
  }
  func.func @transform_2(%arg0: i32) -> (i32, i32) {
    %c0_i32 = arith.constant 0 : i32
    %c0_i32_0 = arith.constant 0 : i32
    %c0_i32_1 = arith.constant 0 : i32
    return %c0_i32, %c0_i32_0 : i32, i32
  }
  func.func @transform_3(%arg0: i32) -> (i32, i32) {
    %c0_i32 = arith.constant 0 : i32
    %c0_i32_0 = arith.constant 0 : i32
    %c0_i32_1 = arith.constant 0 : i32
    return %c0_i32, %c0_i32_0 : i32, i32
  }
  func.func @transform_4(%arg0: i32) -> (i32, i32) {
    %c0_i32 = arith.constant 0 : i32
    %c0_i32_0 = arith.constant 0 : i32
    %c0_i32_1 = arith.constant 0 : i32
    return %c0_i32, %c0_i32_0 : i32, i32
  }
  func.func @transform_5(%arg0: i32) -> (i32, i32) {
    %c0_i32 = arith.constant 0 : i32
    %c0_i32_0 = arith.constant 0 : i32
    return %arg0, %c0_i32 : i32, i32
  }
}

module attributes {stable_mosaic.version = 11 : i64} {
  func.func @_mlp2_kernel(%arg0: i32, %arg1: memref<8x4xf32, #tpu.memory_space<vmem>>, %arg2: memref<4x128xf32, #tpu.memory_space<vmem>>, %arg3: memref<1x128xf32, #tpu.memory_space<vmem>>, %arg4: memref<128x128xf32, #tpu.memory_space<vmem>>, %arg5: memref<1x128xf32, #tpu.memory_space<vmem>>, %arg6: memref<8x128xf32, #tpu.memory_space<vmem>>) attributes {dimension_semantics = [#tpu.dimension_semantics<parallel>], iteration_bounds = array<i64: 1>, scalar_prefetch = 0 : i64, scratch_operands = 0 : i64, tpu.core_type = #tpu.core_type<tc>, window_params = [{transform_indices = @transform_0, window_bounds = array<i64: 8, 4>}, {pipeline_mode = #tpu.pipeline_mode<synchronous>, transform_indices = @transform_1, window_bounds = array<i64: 4, 128>}, {pipeline_mode = #tpu.pipeline_mode<synchronous>, transform_indices = @transform_2, window_bounds = array<i64: 1, 128>}, {pipeline_mode = #tpu.pipeline_mode<synchronous>, transform_indices = @transform_3, window_bounds = array<i64: 128, 128>}, {pipeline_mode = #tpu.pipeline_mode<synchronous>, transform_indices = @transform_4, window_bounds = array<i64: 1, 128>}, {transform_indices = @transform_5, window_bounds = array<i64: 8, 128>}]} {
    %c0 = arith.constant 0 : index
    %c0_0 = arith.constant 0 : index
    %0 = vector.load %arg1[%c0, %c0_0] : memref<8x4xf32, #tpu.memory_space<vmem>>, vector<8x4xf32>
    %c0_1 = arith.constant 0 : index
    %c0_2 = arith.constant 0 : index
    %1 = vector.load %arg2[%c0_1, %c0_2] : memref<4x128xf32, #tpu.memory_space<vmem>>, vector<4x128xf32>
    %cst = arith.constant dense<0.000000e+00> : vector<8x128xf32>
    %2 = tpu.matmul %0, %1, %cst {dimension_numbers = #tpu.dot_dimension_numbers<[1], [0], [0], [1], [0, 0, 1, 1], [], []>} : vector<8x4xf32>, vector<4x128xf32>, vector<8x128xf32> -> vector<8x128xf32>
    %c0_3 = arith.constant 0 : index
    %c0_4 = arith.constant 0 : index
    %3 = vector.load %arg3[%c0_3, %c0_4] : memref<1x128xf32, #tpu.memory_space<vmem>>, vector<1x128xf32>
    %4 = vector.broadcast %3 : vector<1x128xf32> to vector<8x128xf32>
    %5 = arith.addf %2, %4 : vector<8x128xf32>
    %cst_5 = arith.constant 0.000000e+00 : f32
    %6 = vector.broadcast %cst_5 : f32 to vector<8x128xf32>
    %7 = arith.maximumf %5, %6 : vector<8x128xf32>
    %c0_6 = arith.constant 0 : index
    %c0_7 = arith.constant 0 : index
    %8 = vector.load %arg4[%c0_6, %c0_7] : memref<128x128xf32, #tpu.memory_space<vmem>>, vector<128x128xf32>
    %cst_8 = arith.constant dense<0.000000e+00> : vector<8x128xf32>
    %9 = tpu.matmul %7, %8, %cst_8 {dimension_numbers = #tpu.dot_dimension_numbers<[1], [0], [0], [1], [0, 0, 1, 1], [], []>} : vector<8x128xf32>, vector<128x128xf32>, vector<8x128xf32> -> vector<8x128xf32>
    %c0_9 = arith.constant 0 : index
    %c0_10 = arith.constant 0 : index
    %10 = vector.load %arg5[%c0_9, %c0_10] : memref<1x128xf32, #tpu.memory_space<vmem>>, vector<1x128xf32>
    %11 = vector.broadcast %10 : vector<1x128xf32> to vector<8x128xf32>
    %12 = arith.addf %9, %11 : vector<8x128xf32>
    %c0_11 = arith.constant 0 : index
    %c0_12 = arith.constant 0 : index
    %13 = vector.load %arg6[%c0_11, %c0_12] : memref<8x128xf32, #tpu.memory_space<vmem>>, vector<8x128xf32>
    tpu.vector_store %arg6[%c0_11, %c0_12], %12 {strides = array<i32>} : memref<8x128xf32, #tpu.memory_space<vmem>>, vector<8x128xf32>,
    return
  }
  func.func @transform_0(%arg0: i32) -> (i32, i32) {
    %c0_i32 = arith.constant 0 : i32
    %c0_i32_0 = arith.constant 0 : i32
    return %arg0, %c0_i32 : i32, i32
  }
  func.func @transform_1(%arg0: i32) -> (i32, i32) {
    %c0_i32 = arith.constant 0 : i32
    %c0_i32_0 = arith.constant 0 : i32
    %c0_i32_1 = arith.constant 0 : i32
    return %c0_i32, %c0_i32_0 : i32, i32
  }
  func.func @transform_2(%arg0: i32) -> (i32, i32) {
    %c0_i32 = arith.constant 0 : i32
    %c0_i32_0 = arith.constant 0 : i32
    %c0_i32_1 = arith.constant 0 : i32
    return %c0_i32, %c0_i32_0 : i32, i32
  }
  func.func @transform_3(%arg0: i32) -> (i32, i32) {
    %c0_i32 = arith.constant 0 : i32
    %c0_i32_0 = arith.constant 0 : i32
    %c0_i32_1 = arith.constant 0 : i32
    return %c0_i32, %c0_i32_0 : i32, i32
  }
  func.func @transform_4(%arg0: i32) -> (i32, i32) {
    %c0_i32 = arith.constant 0 : i32
    %c0_i32_0 = arith.constant 0 : i32
    %c0_i32_1 = arith.constant 0 : i32
    return %c0_i32, %c0_i32_0 : i32, i32
  }
  func.func @transform_5(%arg0: i32) -> (i32, i32) {
    %c0_i32 = arith.constant 0 : i32
    %c0_i32_0 = arith.constant 0 : i32
    return %arg0, %c0_i32 : i32, i32
  }
}

module attributes {stable_mosaic.version = 11 : i64} {
  func.func @_edge_layer_kernel(%arg0: i32, %arg1: memref<128x128xf32, #tpu.memory_space<vmem>>, %arg2: memref<128x128xf32, #tpu.memory_space<vmem>>, %arg3: memref<128x128xf32, #tpu.memory_space<vmem>>, %arg4: memref<128x128xf32, #tpu.memory_space<vmem>>, %arg5: memref<128x128xf32, #tpu.memory_space<vmem>>, %arg6: memref<128x128xf32, #tpu.memory_space<vmem>>, %arg7: memref<128x128xf32, #tpu.memory_space<vmem>>, %arg8: memref<128x128xf32, #tpu.memory_space<vmem>>, %arg9: memref<1x128xf32, #tpu.memory_space<vmem>>, %arg10: memref<128x128xf32, #tpu.memory_space<vmem>>, %arg11: memref<1x128xf32, #tpu.memory_space<vmem>>, %arg12: memref<128x128xf32, #tpu.memory_space<vmem>>) attributes {dimension_semantics = [#tpu.dimension_semantics<parallel>], iteration_bounds = array<i64: 1>, scalar_prefetch = 0 : i64, scratch_operands = 0 : i64, tpu.core_type = #tpu.core_type<tc>, window_params = [{transform_indices = @transform_0, window_bounds = array<i64: 128, 128>}, {transform_indices = @transform_1, window_bounds = array<i64: 128, 128>}, {transform_indices = @transform_2, window_bounds = array<i64: 128, 128>}, {transform_indices = @transform_3, window_bounds = array<i64: 128, 128>}, {pipeline_mode = #tpu.pipeline_mode<synchronous>, transform_indices = @transform_4, window_bounds = array<i64: 128, 128>}, {pipeline_mode = #tpu.pipeline_mode<synchronous>, transform_indices = @transform_5, window_bounds = array<i64: 128, 128>}, {pipeline_mode = #tpu.pipeline_mode<synchronous>, transform_indices = @transform_6, window_bounds = array<i64: 128, 128>}, {pipeline_mode = #tpu.pipeline_mode<synchronous>, transform_indices = @transform_7, window_bounds = array<i64: 128, 128>}, {pipeline_mode = #tpu.pipeline_mode<synchronous>, transform_indices = @transform_8, window_bounds = array<i64: 1, 128>}, {pipeline_mode = #tpu.pipeline_mode<synchronous>, transform_indices = @transform_9, window_bounds = array<i64: 128, 128>}, {pipeline_mode = #tpu.pipeline_mode<synchronous>, transform_indices = @transform_10, window_bounds = array<i64: 1, 128>}, {transform_indices = @transform_11, window_bounds = array<i64: 128, 128>}]} {
    %c0 = arith.constant 0 : index
    %c0_0 = arith.constant 0 : index
    %0 = vector.load %arg1[%c0, %c0_0] : memref<128x128xf32, #tpu.memory_space<vmem>>, vector<128x128xf32>
    %c0_1 = arith.constant 0 : index
    %c0_2 = arith.constant 0 : index
    %1 = vector.load %arg5[%c0_1, %c0_2] : memref<128x128xf32, #tpu.memory_space<vmem>>, vector<128x128xf32>
    %cst = arith.constant dense<0.000000e+00> : vector<128x128xf32>
    %2 = tpu.matmul %0, %1, %cst {dimension_numbers = #tpu.dot_dimension_numbers<[1], [0], [0], [1], [0, 0, 1, 1], [], []>} : vector<128x128xf32>, vector<128x128xf32>, vector<128x128xf32> -> vector<128x128xf32>
    %c0_3 = arith.constant 0 : index
    %c0_4 = arith.constant 0 : index
    %3 = vector.load %arg2[%c0_3, %c0_4] : memref<128x128xf32, #tpu.memory_space<vmem>>, vector<128x128xf32>
    %c0_5 = arith.constant 0 : index
    %c0_6 = arith.constant 0 : index
    %4 = vector.load %arg6[%c0_5, %c0_6] : memref<128x128xf32, #tpu.memory_space<vmem>>, vector<128x128xf32>
    %cst_7 = arith.constant dense<0.000000e+00> : vector<128x128xf32>
    %5 = tpu.matmul %3, %4, %cst_7 {dimension_numbers = #tpu.dot_dimension_numbers<[1], [0], [0], [1], [0, 0, 1, 1], [], []>} : vector<128x128xf32>, vector<128x128xf32>, vector<128x128xf32> -> vector<128x128xf32>
    %6 = arith.addf %2, %5 : vector<128x128xf32>
    %c0_8 = arith.constant 0 : index
    %c0_9 = arith.constant 0 : index
    %7 = vector.load %arg3[%c0_8, %c0_9] : memref<128x128xf32, #tpu.memory_space<vmem>>, vector<128x128xf32>
    %c0_10 = arith.constant 0 : index
    %c0_11 = arith.constant 0 : index
    %8 = vector.load %arg7[%c0_10, %c0_11] : memref<128x128xf32, #tpu.memory_space<vmem>>, vector<128x128xf32>
    %cst_12 = arith.constant dense<0.000000e+00> : vector<128x128xf32>
    %9 = tpu.matmul %7, %8, %cst_12 {dimension_numbers = #tpu.dot_dimension_numbers<[1], [0], [0], [1], [0, 0, 1, 1], [], []>} : vector<128x128xf32>, vector<128x128xf32>, vector<128x128xf32> -> vector<128x128xf32>
    %10 = arith.addf %6, %9 : vector<128x128xf32>
    %c0_13 = arith.constant 0 : index
    %c0_14 = arith.constant 0 : index
    %11 = vector.load %arg4[%c0_13, %c0_14] : memref<128x128xf32, #tpu.memory_space<vmem>>, vector<128x128xf32>
    %c0_15 = arith.constant 0 : index
    %c0_16 = arith.constant 0 : index
    %12 = vector.load %arg8[%c0_15, %c0_16] : memref<128x128xf32, #tpu.memory_space<vmem>>, vector<128x128xf32>
    %cst_17 = arith.constant dense<0.000000e+00> : vector<128x128xf32>
    %13 = tpu.matmul %11, %12, %cst_17 {dimension_numbers = #tpu.dot_dimension_numbers<[1], [0], [0], [1], [0, 0, 1, 1], [], []>} : vector<128x128xf32>, vector<128x128xf32>, vector<128x128xf32> -> vector<128x128xf32>
    %14 = arith.addf %10, %13 : vector<128x128xf32>
    %c0_18 = arith.constant 0 : index
    %c0_19 = arith.constant 0 : index
    %15 = vector.load %arg9[%c0_18, %c0_19] : memref<1x128xf32, #tpu.memory_space<vmem>>, vector<1x128xf32>
    %16 = vector.broadcast %15 : vector<1x128xf32> to vector<128x128xf32>
    %17 = arith.addf %14, %16 : vector<128x128xf32>
    %cst_20 = arith.constant 0.000000e+00 : f32
    %18 = vector.broadcast %cst_20 : f32 to vector<128x128xf32>
    %19 = arith.maximumf %17, %18 : vector<128x128xf32>
    %c0_21 = arith.constant 0 : index
    %c0_22 = arith.constant 0 : index
    %20 = vector.load %arg10[%c0_21, %c0_22] : memref<128x128xf32, #tpu.memory_space<vmem>>, vector<128x128xf32>
    %cst_23 = arith.constant dense<0.000000e+00> : vector<128x128xf32>
    %21 = tpu.matmul %19, %20, %cst_23 {dimension_numbers = #tpu.dot_dimension_numbers<[1], [0], [0], [1], [0, 0, 1, 1], [], []>} : vector<128x128xf32>, vector<128x128xf32>, vector<128x128xf32> -> vector<128x128xf32>
    %c0_24 = arith.constant 0 : index
    %c0_25 = arith.constant 0 : index
    %22 = vector.load %arg11[%c0_24, %c0_25] : memref<1x128xf32, #tpu.memory_space<vmem>>, vector<1x128xf32>
    %23 = vector.broadcast %22 : vector<1x128xf32> to vector<128x128xf32>
    %24 = arith.addf %21, %23 : vector<128x128xf32>
    %c0_26 = arith.constant 0 : index
    %c0_27 = arith.constant 0 : index
    %25 = vector.load %arg12[%c0_26, %c0_27] : memref<128x128xf32, #tpu.memory_space<vmem>>, vector<128x128xf32>
    tpu.vector_store %arg12[%c0_26, %c0_27], %24 {strides = array<i32>} : memref<128x128xf32, #tpu.memory_space<vmem>>, vector<128x128xf32>,
    return
  }
  func.func @transform_0(%arg0: i32) -> (i32, i32) {
    %c0_i32 = arith.constant 0 : i32
    %c0_i32_0 = arith.constant 0 : i32
    return %arg0, %c0_i32 : i32, i32
  }
  func.func @transform_1(%arg0: i32) -> (i32, i32) {
    %c0_i32 = arith.constant 0 : i32
    %c0_i32_0 = arith.constant 0 : i32
    return %arg0, %c0_i32 : i32, i32
  }
  func.func @transform_2(%arg0: i32) -> (i32, i32) {
    %c0_i32 = arith.constant 0 : i32
    %c0_i32_0 = arith.constant 0 : i32
    return %arg0, %c0_i32 : i32, i32
  }
  func.func @transform_3(%arg0: i32) -> (i32, i32) {
    %c0_i32 = arith.constant 0 : i32
    %c0_i32_0 = arith.constant 0 : i32
    return %arg0, %c0_i32 : i32, i32
  }
  func.func @transform_4(%arg0: i32) -> (i32, i32) {
    %c0_i32 = arith.constant 0 : i32
    %c0_i32_0 = arith.constant 0 : i32
    %c0_i32_1 = arith.constant 0 : i32
    return %c0_i32, %c0_i32_0 : i32, i32
  }
  func.func @transform_5(%arg0: i32) -> (i32, i32) {
    %c0_i32 = arith.constant 0 : i32
    %c0_i32_0 = arith.constant 0 : i32
    %c0_i32_1 = arith.constant 0 : i32
    return %c0_i32, %c0_i32_0 : i32, i32
  }
  func.func @transform_6(%arg0: i32) -> (i32, i32) {
    %c0_i32 = arith.constant 0 : i32
    %c0_i32_0 = arith.constant 0 : i32
    %c0_i32_1 = arith.constant 0 : i32
    return %c0_i32, %c0_i32_0 : i32, i32
  }
  func.func @transform_7(%arg0: i32) -> (i32, i32) {
    %c0_i32 = arith.constant 0 : i32
    %c0_i32_0 = arith.constant 0 : i32
    %c0_i32_1 = arith.constant 0 : i32
    return %c0_i32, %c0_i32_0 : i32, i32
  }
  func.func @transform_8(%arg0: i32) -> (i32, i32) {
    %c0_i32 = arith.constant 0 : i32
    %c0_i32_0 = arith.constant 0 : i32
    %c0_i32_1 = arith.constant 0 : i32
    return %c0_i32, %c0_i32_0 : i32, i32
  }
  func.func @transform_9(%arg0: i32) -> (i32, i32) {
    %c0_i32 = arith.constant 0 : i32
    %c0_i32_0 = arith.constant 0 : i32
    %c0_i32_1 = arith.constant 0 : i32
    return %c0_i32, %c0_i32_0 : i32, i32
  }
  func.func @transform_10(%arg0: i32) -> (i32, i32) {
    %c0_i32 = arith.constant 0 : i32
    %c0_i32_0 = arith.constant 0 : i32
    %c0_i32_1 = arith.constant 0 : i32
    return %c0_i32, %c0_i32_0 : i32, i32
  }
  func.func @transform_11(%arg0: i32) -> (i32, i32) {
    %c0_i32 = arith.constant 0 : i32
    %c0_i32_0 = arith.constant 0 : i32
    return %arg0, %c0_i32 : i32, i32
  }
}

module attributes {stable_mosaic.version = 11 : i64} {
  func.func @_mlp2_kernel(%arg0: i32, %arg1: memref<128x3xf32, #tpu.memory_space<vmem>>, %arg2: memref<3x128xf32, #tpu.memory_space<vmem>>, %arg3: memref<1x128xf32, #tpu.memory_space<vmem>>, %arg4: memref<128x128xf32, #tpu.memory_space<vmem>>, %arg5: memref<1x128xf32, #tpu.memory_space<vmem>>, %arg6: memref<128x128xf32, #tpu.memory_space<vmem>>) attributes {dimension_semantics = [#tpu.dimension_semantics<parallel>], iteration_bounds = array<i64: 1>, scalar_prefetch = 0 : i64, scratch_operands = 0 : i64, tpu.core_type = #tpu.core_type<tc>, window_params = [{transform_indices = @transform_0, window_bounds = array<i64: 128, 3>}, {pipeline_mode = #tpu.pipeline_mode<synchronous>, transform_indices = @transform_1, window_bounds = array<i64: 3, 128>}, {pipeline_mode = #tpu.pipeline_mode<synchronous>, transform_indices = @transform_2, window_bounds = array<i64: 1, 128>}, {pipeline_mode = #tpu.pipeline_mode<synchronous>, transform_indices = @transform_3, window_bounds = array<i64: 128, 128>}, {pipeline_mode = #tpu.pipeline_mode<synchronous>, transform_indices = @transform_4, window_bounds = array<i64: 1, 128>}, {transform_indices = @transform_5, window_bounds = array<i64: 128, 128>}]} {
    %c0 = arith.constant 0 : index
    %c0_0 = arith.constant 0 : index
    %0 = vector.load %arg1[%c0, %c0_0] : memref<128x3xf32, #tpu.memory_space<vmem>>, vector<128x3xf32>
    %c0_1 = arith.constant 0 : index
    %c0_2 = arith.constant 0 : index
    %1 = vector.load %arg2[%c0_1, %c0_2] : memref<3x128xf32, #tpu.memory_space<vmem>>, vector<3x128xf32>
    %cst = arith.constant dense<0.000000e+00> : vector<128x128xf32>
    %2 = tpu.matmul %0, %1, %cst {dimension_numbers = #tpu.dot_dimension_numbers<[1], [0], [0], [1], [0, 0, 1, 1], [], []>} : vector<128x3xf32>, vector<3x128xf32>, vector<128x128xf32> -> vector<128x128xf32>
    %c0_3 = arith.constant 0 : index
    %c0_4 = arith.constant 0 : index
    %3 = vector.load %arg3[%c0_3, %c0_4] : memref<1x128xf32, #tpu.memory_space<vmem>>, vector<1x128xf32>
    %4 = vector.broadcast %3 : vector<1x128xf32> to vector<128x128xf32>
    %5 = arith.addf %2, %4 : vector<128x128xf32>
    %cst_5 = arith.constant 0.000000e+00 : f32
    %6 = vector.broadcast %cst_5 : f32 to vector<128x128xf32>
    %7 = arith.maximumf %5, %6 : vector<128x128xf32>
    %c0_6 = arith.constant 0 : index
    %c0_7 = arith.constant 0 : index
    %8 = vector.load %arg4[%c0_6, %c0_7] : memref<128x128xf32, #tpu.memory_space<vmem>>, vector<128x128xf32>
    %cst_8 = arith.constant dense<0.000000e+00> : vector<128x128xf32>
    %9 = tpu.matmul %7, %8, %cst_8 {dimension_numbers = #tpu.dot_dimension_numbers<[1], [0], [0], [1], [0, 0, 1, 1], [], []>} : vector<128x128xf32>, vector<128x128xf32>, vector<128x128xf32> -> vector<128x128xf32>
    %c0_9 = arith.constant 0 : index
    %c0_10 = arith.constant 0 : index
    %10 = vector.load %arg5[%c0_9, %c0_10] : memref<1x128xf32, #tpu.memory_space<vmem>>, vector<1x128xf32>
    %11 = vector.broadcast %10 : vector<1x128xf32> to vector<128x128xf32>
    %12 = arith.addf %9, %11 : vector<128x128xf32>
    %c0_11 = arith.constant 0 : index
    %c0_12 = arith.constant 0 : index
    %13 = vector.load %arg6[%c0_11, %c0_12] : memref<128x128xf32, #tpu.memory_space<vmem>>, vector<128x128xf32>
    tpu.vector_store %arg6[%c0_11, %c0_12], %12 {strides = array<i32>} : memref<128x128xf32, #tpu.memory_space<vmem>>, vector<128x128xf32>,
    return
  }
  func.func @transform_0(%arg0: i32) -> (i32, i32) {
    %c0_i32 = arith.constant 0 : i32
    %c0_i32_0 = arith.constant 0 : i32
    return %arg0, %c0_i32 : i32, i32
  }
  func.func @transform_1(%arg0: i32) -> (i32, i32) {
    %c0_i32 = arith.constant 0 : i32
    %c0_i32_0 = arith.constant 0 : i32
    %c0_i32_1 = arith.constant 0 : i32
    return %c0_i32, %c0_i32_0 : i32, i32
  }
  func.func @transform_2(%arg0: i32) -> (i32, i32) {
    %c0_i32 = arith.constant 0 : i32
    %c0_i32_0 = arith.constant 0 : i32
    %c0_i32_1 = arith.constant 0 : i32
    return %c0_i32, %c0_i32_0 : i32, i32
  }
  func.func @transform_3(%arg0: i32) -> (i32, i32) {
    %c0_i32 = arith.constant 0 : i32
    %c0_i32_0 = arith.constant 0 : i32
    %c0_i32_1 = arith.constant 0 : i32
    return %c0_i32, %c0_i32_0 : i32, i32
  }
  func.func @transform_4(%arg0: i32) -> (i32, i32) {
    %c0_i32 = arith.constant 0 : i32
    %c0_i32_0 = arith.constant 0 : i32
    %c0_i32_1 = arith.constant 0 : i32
    return %c0_i32, %c0_i32_0 : i32, i32
  }
  func.func @transform_5(%arg0: i32) -> (i32, i32) {
    %c0_i32 = arith.constant 0 : i32
    %c0_i32_0 = arith.constant 0 : i32
    return %arg0, %c0_i32 : i32, i32
  }
}

module attributes {stable_mosaic.version = 11 : i64} {
  func.func @_node_layer_kernel(%arg0: i32, %arg1: i32, %arg2: memref<1x128xi32, #tpu.memory_space<vmem>>, %arg3: memref<128x128xf32, #tpu.memory_space<vmem>>, %arg4: memref<64x128xf32, #tpu.memory_space<vmem>>, %arg5: memref<64x128xf32, #tpu.memory_space<vmem>>, %arg6: memref<128x128xf32, #tpu.memory_space<vmem>>, %arg7: memref<128x128xf32, #tpu.memory_space<vmem>>, %arg8: memref<128x128xf32, #tpu.memory_space<vmem>>, %arg9: memref<1x128xf32, #tpu.memory_space<vmem>>, %arg10: memref<128x128xf32, #tpu.memory_space<vmem>>, %arg11: memref<1x128xf32, #tpu.memory_space<vmem>>, %arg12: memref<64x128xf32, #tpu.memory_space<vmem>>, %arg13: memref<64x128xf32, #tpu.memory_space<vmem>>, %arg14: memref<64x1xf32, #tpu.memory_space<vmem>>) attributes {dimension_semantics = [#tpu.dimension_semantics<parallel>, #tpu.dimension_semantics<arbitrary>], iteration_bounds = array<i64: 1, 1>, scalar_prefetch = 0 : i64, scratch_operands = 2 : i64, tpu.core_type = #tpu.core_type<tc>, window_params = [{transform_indices = @transform_0, window_bounds = array<i64: 1, 128>}, {transform_indices = @transform_1, window_bounds = array<i64: 128, 128>}, {transform_indices = @transform_2, window_bounds = array<i64: 64, 128>}, {transform_indices = @transform_3, window_bounds = array<i64: 64, 128>}, {pipeline_mode = #tpu.pipeline_mode<synchronous>, transform_indices = @transform_4, window_bounds = array<i64: 128, 128>}, {pipeline_mode = #tpu.pipeline_mode<synchronous>, transform_indices = @transform_5, window_bounds = array<i64: 128, 128>}, {pipeline_mode = #tpu.pipeline_mode<synchronous>, transform_indices = @transform_6, window_bounds = array<i64: 128, 128>}, {pipeline_mode = #tpu.pipeline_mode<synchronous>, transform_indices = @transform_7, window_bounds = array<i64: 1, 128>}, {pipeline_mode = #tpu.pipeline_mode<synchronous>, transform_indices = @transform_8, window_bounds = array<i64: 128, 128>}, {pipeline_mode = #tpu.pipeline_mode<synchronous>, transform_indices = @transform_9, window_bounds = array<i64: 1, 128>}, {transform_indices = @transform_10, window_bounds = array<i64: 64, 128>}]} {
    %c0_i32 = arith.constant 0 : i32
    %0 = arith.cmpi eq, %arg1, %c0_i32 : i32
    %1 = arith.extui %0 : i1 to i32
    %c0_i32_0 = arith.constant 0 : i32
    %2 = arith.cmpi ne, %1, %c0_i32_0 : i32
    scf.if %2 {
      %cst_15 = arith.constant 0.000000e+00 : f32
      %25 = vector.broadcast %cst_15 : f32 to vector<64x128xf32>
      %c0_16 = arith.constant 0 : index
      %c0_17 = arith.constant 0 : index
      %26 = vector.load %arg13[%c0_16, %c0_17] : memref<64x128xf32, #tpu.memory_space<vmem>>, vector<64x128xf32>
      tpu.vector_store %arg13[%c0_16, %c0_17], %25 {strides = array<i32>} : memref<64x128xf32, #tpu.memory_space<vmem>>, vector<64x128xf32>,
      %cst_18 = arith.constant 0.000000e+00 : f32
      %27 = vector.broadcast %cst_18 : f32 to vector<64x1xf32>
      %c0_19 = arith.constant 0 : index
      %c0_20 = arith.constant 0 : index
      %28 = vector.load %arg14[%c0_19, %c0_20] : memref<64x1xf32, #tpu.memory_space<vmem>>, vector<64x1xf32>
      tpu.vector_store %arg14[%c0_19, %c0_20], %27 {strides = array<i32>} : memref<64x1xf32, #tpu.memory_space<vmem>>, vector<64x1xf32>,
    } else {
    }
    %c0 = arith.constant 0 : index
    %c0_1 = arith.constant 0 : index
    %3 = vector.load %arg2[%c0, %c0_1] : memref<1x128xi32, #tpu.memory_space<vmem>>, vector<1x128xi32>
    %4 = tpu.iota {dimensions = array<i32: 0>} : vector<64x128xi32>
    %c64_i32 = arith.constant 64 : i32
    %5 = arith.muli %arg0, %c64_i32 : i32
    %6 = vector.broadcast %5 : i32 to vector<64x128xi32>
    %7 = arith.addi %4, %6 : vector<64x128xi32>
    %8 = vector.broadcast %3 : vector<1x128xi32> to vector<64x128xi32>
    %9 = arith.cmpi eq, %7, %8 : vector<64x128xi32>
    %10 = arith.extui %9 : vector<64x128xi1> to vector<64x128xi32>
    %11 = arith.sitofp %10 : vector<64x128xi32> to vector<64x128xf32>
    %c0_2 = arith.constant 0 : index
    %c0_3 = arith.constant 0 : index
    %12 = vector.load %arg13[%c0_2, %c0_3] : memref<64x128xf32, #tpu.memory_space<vmem>>, vector<64x128xf32>
    %c0_4 = arith.constant 0 : index
    %c0_5 = arith.constant 0 : index
    %13 = vector.load %arg3[%c0_4, %c0_5] : memref<128x128xf32, #tpu.memory_space<vmem>>, vector<128x128xf32>
    %cst = arith.constant dense<0.000000e+00> : vector<64x128xf32>
    %14 = tpu.matmul %11, %13, %cst {dimension_numbers = #tpu.dot_dimension_numbers<[1], [0], [0], [1], [0, 0, 1, 1], [], []>} : vector<64x128xf32>, vector<128x128xf32>, vector<64x128xf32> -> vector<64x128xf32>
    %15 = arith.addf %12, %14 : vector<64x128xf32>
    %c0_6 = arith.constant 0 : index
    %c0_7 = arith.constant 0 : index
    %16 = vector.load %arg13[%c0_6, %c0_7] : memref<64x128xf32, #tpu.memory_space<vmem>>, vector<64x128xf32>
    tpu.vector_store %arg13[%c0_6, %c0_7], %15 {strides = array<i32>} : memref<64x128xf32, #tpu.memory_space<vmem>>, vector<64x128xf32>,
    %c0_8 = arith.constant 0 : index
    %c0_9 = arith.constant 0 : index
    %17 = vector.load %arg14[%c0_8, %c0_9] : memref<64x1xf32, #tpu.memory_space<vmem>>, vector<64x1xf32>
    %cst_10 = arith.constant dense<0.000000e+00> : vector<64xf32>
    %18 = vector.multi_reduction <add>, %11, %cst_10 [1] : vector<64x128xf32> to vector<64xf32>
    %19 = vector.shape_cast %18 : vector<64xf32> to vector<64x1xf32>
    %20 = arith.addf %17, %19 : vector<64x1xf32>
    %c0_11 = arith.constant 0 : index
    %c0_12 = arith.constant 0 : index
    %21 = vector.load %arg14[%c0_11, %c0_12] : memref<64x1xf32, #tpu.memory_space<vmem>>, vector<64x1xf32>
    tpu.vector_store %arg14[%c0_11, %c0_12], %20 {strides = array<i32>} : memref<64x1xf32, #tpu.memory_space<vmem>>, vector<64x1xf32>,
    %c0_i32_13 = arith.constant 0 : i32
    %22 = arith.cmpi eq, %arg1, %c0_i32_13 : i32
    %23 = arith.extui %22 : i1 to i32
    %c0_i32_14 = arith.constant 0 : i32
    %24 = arith.cmpi ne, %23, %c0_i32_14 : i32
    scf.if %24 {
      %c0_15 = arith.constant 0 : index
      %c0_16 = arith.constant 0 : index
      %25 = vector.load %arg13[%c0_15, %c0_16] : memref<64x128xf32, #tpu.memory_space<vmem>>, vector<64x128xf32>
      %c0_17 = arith.constant 0 : index
      %c0_18 = arith.constant 0 : index
      %26 = vector.load %arg14[%c0_17, %c0_18] : memref<64x1xf32, #tpu.memory_space<vmem>>, vector<64x1xf32>
      %cst_19 = arith.constant 1.000000e+00 : f32
      %27 = vector.broadcast %cst_19 : f32 to vector<64x1xf32>
      %28 = arith.maximumf %26, %27 : vector<64x1xf32>
      %29 = vector.broadcast %28 : vector<64x1xf32> to vector<64x128xf32>
      %30 = arith.divf %25, %29 : vector<64x128xf32>
      %c0_20 = arith.constant 0 : index
      %c0_21 = arith.constant 0 : index
      %31 = vector.load %arg4[%c0_20, %c0_21] : memref<64x128xf32, #tpu.memory_space<vmem>>, vector<64x128xf32>
      %c0_22 = arith.constant 0 : index
      %c0_23 = arith.constant 0 : index
      %32 = vector.load %arg6[%c0_22, %c0_23] : memref<128x128xf32, #tpu.memory_space<vmem>>, vector<128x128xf32>
      %cst_24 = arith.constant dense<0.000000e+00> : vector<64x128xf32>
      %33 = tpu.matmul %31, %32, %cst_24 {dimension_numbers = #tpu.dot_dimension_numbers<[1], [0], [0], [1], [0, 0, 1, 1], [], []>} : vector<64x128xf32>, vector<128x128xf32>, vector<64x128xf32> -> vector<64x128xf32>
      %c0_25 = arith.constant 0 : index
      %c0_26 = arith.constant 0 : index
      %34 = vector.load %arg7[%c0_25, %c0_26] : memref<128x128xf32, #tpu.memory_space<vmem>>, vector<128x128xf32>
      %cst_27 = arith.constant dense<0.000000e+00> : vector<64x128xf32>
      %35 = tpu.matmul %30, %34, %cst_27 {dimension_numbers = #tpu.dot_dimension_numbers<[1], [0], [0], [1], [0, 0, 1, 1], [], []>} : vector<64x128xf32>, vector<128x128xf32>, vector<64x128xf32> -> vector<64x128xf32>
      %36 = arith.addf %33, %35 : vector<64x128xf32>
      %c0_28 = arith.constant 0 : index
      %c0_29 = arith.constant 0 : index
      %37 = vector.load %arg5[%c0_28, %c0_29] : memref<64x128xf32, #tpu.memory_space<vmem>>, vector<64x128xf32>
      %c0_30 = arith.constant 0 : index
      %c0_31 = arith.constant 0 : index
      %38 = vector.load %arg8[%c0_30, %c0_31] : memref<128x128xf32, #tpu.memory_space<vmem>>, vector<128x128xf32>
      %cst_32 = arith.constant dense<0.000000e+00> : vector<64x128xf32>
      %39 = tpu.matmul %37, %38, %cst_32 {dimension_numbers = #tpu.dot_dimension_numbers<[1], [0], [0], [1], [0, 0, 1, 1], [], []>} : vector<64x128xf32>, vector<128x128xf32>, vector<64x128xf32> -> vector<64x128xf32>
      %40 = arith.addf %36, %39 : vector<64x128xf32>
      %c0_33 = arith.constant 0 : index
      %c0_34 = arith.constant 0 : index
      %41 = vector.load %arg9[%c0_33, %c0_34] : memref<1x128xf32, #tpu.memory_space<vmem>>, vector<1x128xf32>
      %42 = vector.broadcast %41 : vector<1x128xf32> to vector<64x128xf32>
      %43 = arith.addf %40, %42 : vector<64x128xf32>
      %cst_35 = arith.constant 0.000000e+00 : f32
      %44 = vector.broadcast %cst_35 : f32 to vector<64x128xf32>
      %45 = arith.maximumf %43, %44 : vector<64x128xf32>
      %c0_36 = arith.constant 0 : index
      %c0_37 = arith.constant 0 : index
      %46 = vector.load %arg10[%c0_36, %c0_37] : memref<128x128xf32, #tpu.memory_space<vmem>>, vector<128x128xf32>
      %cst_38 = arith.constant dense<0.000000e+00> : vector<64x128xf32>
      %47 = tpu.matmul %45, %46, %cst_38 {dimension_numbers = #tpu.dot_dimension_numbers<[1], [0], [0], [1], [0, 0, 1, 1], [], []>} : vector<64x128xf32>, vector<128x128xf32>, vector<64x128xf32> -> vector<64x128xf32>
      %c0_39 = arith.constant 0 : index
      %c0_40 = arith.constant 0 : index
      %48 = vector.load %arg11[%c0_39, %c0_40] : memref<1x128xf32, #tpu.memory_space<vmem>>, vector<1x128xf32>
      %49 = vector.broadcast %48 : vector<1x128xf32> to vector<64x128xf32>
      %50 = arith.addf %47, %49 : vector<64x128xf32>
      %51 = arith.addf %50, %31 : vector<64x128xf32>
      %c0_41 = arith.constant 0 : index
      %c0_42 = arith.constant 0 : index
      %52 = vector.load %arg12[%c0_41, %c0_42] : memref<64x128xf32, #tpu.memory_space<vmem>>, vector<64x128xf32>
      tpu.vector_store %arg12[%c0_41, %c0_42], %51 {strides = array<i32>} : memref<64x128xf32, #tpu.memory_space<vmem>>, vector<64x128xf32>,
    } else {
    }
    return
  }
  func.func @transform_0(%arg0: i32, %arg1: i32) -> (i32, i32) {
    %c0_i32 = arith.constant 0 : i32
    %c0_i32_0 = arith.constant 0 : i32
    return %c0_i32, %arg1 : i32, i32
  }
  func.func @transform_1(%arg0: i32, %arg1: i32) -> (i32, i32) {
    %c0_i32 = arith.constant 0 : i32
    %c0_i32_0 = arith.constant 0 : i32
    return %arg1, %c0_i32 : i32, i32
  }
  func.func @transform_2(%arg0: i32, %arg1: i32) -> (i32, i32) {
    %c0_i32 = arith.constant 0 : i32
    %c0_i32_0 = arith.constant 0 : i32
    return %arg0, %c0_i32 : i32, i32
  }
  func.func @transform_3(%arg0: i32, %arg1: i32) -> (i32, i32) {
    %c0_i32 = arith.constant 0 : i32
    %c0_i32_0 = arith.constant 0 : i32
    return %arg0, %c0_i32 : i32, i32
  }
  func.func @transform_4(%arg0: i32, %arg1: i32) -> (i32, i32) {
    %c0_i32 = arith.constant 0 : i32
    %c0_i32_0 = arith.constant 0 : i32
    %c0_i32_1 = arith.constant 0 : i32
    return %c0_i32, %c0_i32_0 : i32, i32
  }
  func.func @transform_5(%arg0: i32, %arg1: i32) -> (i32, i32) {
    %c0_i32 = arith.constant 0 : i32
    %c0_i32_0 = arith.constant 0 : i32
    %c0_i32_1 = arith.constant 0 : i32
    return %c0_i32, %c0_i32_0 : i32, i32
  }
  func.func @transform_6(%arg0: i32, %arg1: i32) -> (i32, i32) {
    %c0_i32 = arith.constant 0 : i32
    %c0_i32_0 = arith.constant 0 : i32
    %c0_i32_1 = arith.constant 0 : i32
    return %c0_i32, %c0_i32_0 : i32, i32
  }
  func.func @transform_7(%arg0: i32, %arg1: i32) -> (i32, i32) {
    %c0_i32 = arith.constant 0 : i32
    %c0_i32_0 = arith.constant 0 : i32
    %c0_i32_1 = arith.constant 0 : i32
    return %c0_i32, %c0_i32_0 : i32, i32
  }
  func.func @transform_8(%arg0: i32, %arg1: i32) -> (i32, i32) {
    %c0_i32 = arith.constant 0 : i32
    %c0_i32_0 = arith.constant 0 : i32
    %c0_i32_1 = arith.constant 0 : i32
    return %c0_i32, %c0_i32_0 : i32, i32
  }
  func.func @transform_9(%arg0: i32, %arg1: i32) -> (i32, i32) {
    %c0_i32 = arith.constant 0 : i32
    %c0_i32_0 = arith.constant 0 : i32
    %c0_i32_1 = arith.constant 0 : i32
    return %c0_i32, %c0_i32_0 : i32, i32
  }
  func.func @transform_10(%arg0: i32, %arg1: i32) -> (i32, i32) {
    %c0_i32 = arith.constant 0 : i32
    %c0_i32_0 = arith.constant 0 : i32
    return %arg0, %c0_i32 : i32, i32
  }
}

module attributes {stable_mosaic.version = 11 : i64} {
  func.func @_mlp2_kernel(%arg0: i32, %arg1: memref<64x128xf32, #tpu.memory_space<vmem>>, %arg2: memref<128x128xf32, #tpu.memory_space<vmem>>, %arg3: memref<1x128xf32, #tpu.memory_space<vmem>>, %arg4: memref<128x128xf32, #tpu.memory_space<vmem>>, %arg5: memref<1x128xf32, #tpu.memory_space<vmem>>, %arg6: memref<64x128xf32, #tpu.memory_space<vmem>>) attributes {dimension_semantics = [#tpu.dimension_semantics<parallel>], iteration_bounds = array<i64: 1>, scalar_prefetch = 0 : i64, scratch_operands = 0 : i64, tpu.core_type = #tpu.core_type<tc>, window_params = [{transform_indices = @transform_0, window_bounds = array<i64: 64, 128>}, {pipeline_mode = #tpu.pipeline_mode<synchronous>, transform_indices = @transform_1, window_bounds = array<i64: 128, 128>}, {pipeline_mode = #tpu.pipeline_mode<synchronous>, transform_indices = @transform_2, window_bounds = array<i64: 1, 128>}, {pipeline_mode = #tpu.pipeline_mode<synchronous>, transform_indices = @transform_3, window_bounds = array<i64: 128, 128>}, {pipeline_mode = #tpu.pipeline_mode<synchronous>, transform_indices = @transform_4, window_bounds = array<i64: 1, 128>}, {transform_indices = @transform_5, window_bounds = array<i64: 64, 128>}]} {
    %c0 = arith.constant 0 : index
    %c0_0 = arith.constant 0 : index
    %0 = vector.load %arg1[%c0, %c0_0] : memref<64x128xf32, #tpu.memory_space<vmem>>, vector<64x128xf32>
    %c0_1 = arith.constant 0 : index
    %c0_2 = arith.constant 0 : index
    %1 = vector.load %arg2[%c0_1, %c0_2] : memref<128x128xf32, #tpu.memory_space<vmem>>, vector<128x128xf32>
    %cst = arith.constant dense<0.000000e+00> : vector<64x128xf32>
    %2 = tpu.matmul %0, %1, %cst {dimension_numbers = #tpu.dot_dimension_numbers<[1], [0], [0], [1], [0, 0, 1, 1], [], []>} : vector<64x128xf32>, vector<128x128xf32>, vector<64x128xf32> -> vector<64x128xf32>
    %c0_3 = arith.constant 0 : index
    %c0_4 = arith.constant 0 : index
    %3 = vector.load %arg3[%c0_3, %c0_4] : memref<1x128xf32, #tpu.memory_space<vmem>>, vector<1x128xf32>
    %4 = vector.broadcast %3 : vector<1x128xf32> to vector<64x128xf32>
    %5 = arith.addf %2, %4 : vector<64x128xf32>
    %cst_5 = arith.constant 0.000000e+00 : f32
    %6 = vector.broadcast %cst_5 : f32 to vector<64x128xf32>
    %7 = arith.maximumf %5, %6 : vector<64x128xf32>
    %c0_6 = arith.constant 0 : index
    %c0_7 = arith.constant 0 : index
    %8 = vector.load %arg4[%c0_6, %c0_7] : memref<128x128xf32, #tpu.memory_space<vmem>>, vector<128x128xf32>
    %cst_8 = arith.constant dense<0.000000e+00> : vector<64x128xf32>
    %9 = tpu.matmul %7, %8, %cst_8 {dimension_numbers = #tpu.dot_dimension_numbers<[1], [0], [0], [1], [0, 0, 1, 1], [], []>} : vector<64x128xf32>, vector<128x128xf32>, vector<64x128xf32> -> vector<64x128xf32>
    %c0_9 = arith.constant 0 : index
    %c0_10 = arith.constant 0 : index
    %10 = vector.load %arg5[%c0_9, %c0_10] : memref<1x128xf32, #tpu.memory_space<vmem>>, vector<1x128xf32>
    %11 = vector.broadcast %10 : vector<1x128xf32> to vector<64x128xf32>
    %12 = arith.addf %9, %11 : vector<64x128xf32>
    %c0_11 = arith.constant 0 : index
    %c0_12 = arith.constant 0 : index
    %13 = vector.load %arg6[%c0_11, %c0_12] : memref<64x128xf32, #tpu.memory_space<vmem>>, vector<64x128xf32>
    tpu.vector_store %arg6[%c0_11, %c0_12], %12 {strides = array<i32>} : memref<64x128xf32, #tpu.memory_space<vmem>>, vector<64x128xf32>,
    return
  }
  func.func @transform_0(%arg0: i32) -> (i32, i32) {
    %c0_i32 = arith.constant 0 : i32
    %c0_i32_0 = arith.constant 0 : i32
    return %arg0, %c0_i32 : i32, i32
  }
  func.func @transform_1(%arg0: i32) -> (i32, i32) {
    %c0_i32 = arith.constant 0 : i32
    %c0_i32_0 = arith.constant 0 : i32
    %c0_i32_1 = arith.constant 0 : i32
    return %c0_i32, %c0_i32_0 : i32, i32
  }
  func.func @transform_2(%arg0: i32) -> (i32, i32) {
    %c0_i32 = arith.constant 0 : i32
    %c0_i32_0 = arith.constant 0 : i32
    %c0_i32_1 = arith.constant 0 : i32
    return %c0_i32, %c0_i32_0 : i32, i32
  }
  func.func @transform_3(%arg0: i32) -> (i32, i32) {
    %c0_i32 = arith.constant 0 : i32
    %c0_i32_0 = arith.constant 0 : i32
    %c0_i32_1 = arith.constant 0 : i32
    return %c0_i32, %c0_i32_0 : i32, i32
  }
  func.func @transform_4(%arg0: i32) -> (i32, i32) {
    %c0_i32 = arith.constant 0 : i32
    %c0_i32_0 = arith.constant 0 : i32
    %c0_i32_1 = arith.constant 0 : i32
    return %c0_i32, %c0_i32_0 : i32, i32
  }
  func.func @transform_5(%arg0: i32) -> (i32, i32) {
    %c0_i32 = arith.constant 0 : i32
    %c0_i32_0 = arith.constant 0 : i32
    return %arg0, %c0_i32 : i32, i32
  }
}

</mosaic_0001>

<llo_original>
// kernel: conditional_graph_network.10
$region0: #{conditional_graph_network.10}
  #allocation0 [shape = 'u32[]', space=smem, size = 0x4, offset = 0x4, fixed_abs, tag = 'smem constant byte address 0x4 - core index']
  #allocation1 [shape = 'u32[72,128]{1,0:T(1,128)}', space=vmem, size = 0x9000, scoped, tag = 'internal scratch']
  %s0 = inlined_call_operand.vmem [shape: f32[8,4], index: 0, kind: input, shape index: {}]
  %s1 = inlined_call_operand.vmem [shape: f32[4,128], index: 1, kind: input, shape index: {}]
  %s2 = inlined_call_operand.vmem [shape: f32[1,128], index: 2, kind: input, shape index: {}]
  %s3 = inlined_call_operand.vmem [shape: f32[128,128], index: 3, kind: input, shape index: {}]
  %s4 = inlined_call_operand.vmem [shape: f32[1,128], index: 4, kind: input, shape index: {}]
  %s5 = inlined_call_operand.vmem [shape: f32[8,128], index: 5, kind: output, shape index: {}]
  %s6 = sld [smem:[#allocation0]]
  $region30: #{conditional_graph_network.10} parent=0
    _
  %s8 = ssub.s32 1, %s6
  %s9 = scalar_select 0, %s8, %s6
  // Predicated region
  $region2: #{conditional_graph_network.10} parent=0 // pred_check
    _
  $region3: #{conditional_graph_network.10} parent=0 // pred_check_branch
    %11 = sbr.rel (0) target = $region5
  $region4: #{conditional_graph_network.10} parent=0 // pred_region
    _
  $region5: #{conditional_graph_network.10} parent=0 // pred_fallthru
    _
  // Predicated region
  $region6: #{conditional_graph_network.10} parent=0 // pred_check
    _
  $region7: #{conditional_graph_network.10} parent=0 // pred_check_branch
    %13 = sbr.rel (0) target = $region9
  $region8: #{conditional_graph_network.10} parent=0 // pred_region
    _
  $region9: #{conditional_graph_network.10} parent=0 // pred_fallthru
    _
  // Predicated region
  $region10: #{conditional_graph_network.10} parent=0 // pred_check
    _
  $region11: #{conditional_graph_network.10} parent=0 // pred_check_branch
    %15 = sbr.rel (0) target = $region13
  $region12: #{conditional_graph_network.10} parent=0 // pred_region
    _
  $region13: #{conditional_graph_network.10} parent=0 // pred_fallthru
    _
  // Predicated region
  $region14: #{conditional_graph_network.10} parent=0 // pred_check
    _
  $region15: #{conditional_graph_network.10} parent=0 // pred_check_branch
    %17 = sbr.rel (0) target = $region17
  $region16: #{conditional_graph_network.10} parent=0 // pred_region
    _
  $region17: #{conditional_graph_network.10} parent=0 // pred_fallthru
    _
  // Predicated region
  $region18: #{conditional_graph_network.10} parent=0 // pred_check
    _
  $region19: #{conditional_graph_network.10} parent=0 // pred_check_branch
    %19 = sbr.rel (0) target = $region21
  $region20: #{conditional_graph_network.10} parent=0 // pred_region
    _
  $region21: #{conditional_graph_network.10} parent=0 // pred_fallthru
    _
  %v20 = vld [vmem:[%s0] sm:$0xff]
  %v21 = vld [vmem:[%s1] sm:$0xf]
  %v22 = vld [vmem:[%s2] sm:$0x1]
  %v24 = vperm.slane %v22, 0
  %vm26 = vcmask 31744
  %v28 = vsel %vm26, %v20, 0
  %vm30 = vcmask 1043456
  %v32 = vsel %vm30, %v21, 0
  %34 = vmatpush.msra.mxu0 0.0
  %35 = vmatpush.msra.mxu0 0.0
  %36 = vmatpush.msra.mxu0 0.0
  %37 = vmatpush.msra.mxu0 0.0
  %38 = vmatpush.msra.mxu0 0.0
  %39 = vmatpush.msra.mxu0 0.0
  %40 = vmatpush.msra.mxu0 0.0
  %41 = vmatpush.msra.mxu0 0.0
  %42 = vmatpush.msra.mxu0 0.0
  %43 = vmatpush.msra.mxu0 0.0
  %44 = vmatpush.msra.mxu0 0.0
  %45 = vmatpush.msra.mxu0 0.0
  %46 = vmatpush.msra.mxu0 0.0
  %47 = vmatpush.msra.mxu0 0.0
  %48 = vmatpush.msra.mxu0 0.0
  %49 = vmatpush.msra.mxu0 %v32
  %50 = vmatmul.f32.gmra.mxu0 %v28
  %v51 = vpop.f32.mrf.mxu0
  %v52 = vadd.f32 %v24, %v51
  %53 = vdwg.mxu0
  %v54 = vmax.f32 %v52, 0.0
  %v55 = vld [vmem:[%s3] sm:$0xff]
  %v56 = vld [vmem:[%s3 + $0x8] sm:$0xff]
  %v57 = vld [vmem:[%s3 + $0x10] sm:$0xff]
  %v58 = vld [vmem:[%s3 + $0x18] sm:$0xff]
  %v59 = vld [vmem:[%s3 + $0x20] sm:$0xff]
  %v60 = vld [vmem:[%s3 + $0x28] sm:$0xff]
  %v61 = vld [vmem:[%s3 + $0x30] sm:$0xff]
  %v62 = vld [vmem:[%s3 + $0x38] sm:$0xff]
  %v63 = vld [vmem:[%s3 + $0x40] sm:$0xff]
  %v64 = vld [vmem:[%s3 + $0x48] sm:$0xff]
  %v65 = vld [vmem:[%s3 + $0x50] sm:$0xff]
  %v66 = vld [vmem:[%s3 + $0x58] sm:$0xff]
  %v67 = vld [vmem:[%s3 + $0x60] sm:$0xff]
  %v68 = vld [vmem:[%s3 + $0x68] sm:$0xff]
  %v69 = vld [vmem:[%s3 + $0x70] sm:$0xff]
  %v70 = vld [vmem:[%s3 + $0x78] sm:$0xff]
  %v71 = vld [vmem:[%s4] sm:$0x1]
  %v73 = vperm.slane %v71, 0
  %75 = vmatpush.msra.mxu0 %v70
  %76 = vmatpush.msra.mxu0 %v69
  %77 = vmatpush.msra.mxu0 %v68
  %78 = vmatpush.msra.mxu0 %v67
  %79 = vmatpush.msra.mxu0 %v66
  %80 = vmatpush.msra.mxu0 %v65
  %81 = vmatpush.msra.mxu0 %v64
  %82 = vmatpush.msra.mxu0 %v63
  %83 = vmatpush.msra.mxu0 %v62
  %84 = vmatpush.msra.mxu0 %v61
  %85 = vmatpush.msra.mxu0 %v60
  %86 = vmatpush.msra.mxu0 %v59
  %87 = vmatpush.msra.mxu0 %v58
  %88 = vmatpush.msra.mxu0 %v57
  %89 = vmatpush.msra.mxu0 %v56
  %90 = vmatpush.msra.mxu0 %v55
  %91 = vmatmul.f32.gmra.mxu0 %v54
  %v92 = vpop.f32.mrf.mxu0
  %v93 = vadd.f32 %v73, %v92
  %94 = vdwg.mxu0
  %95 = vst [vmem:[%s5] sm:$0xff] %v93
  // Predicated region
  $region22: #{conditional_graph_network.10} parent=0 // pred_check
    _
  $region23: #{conditional_graph_network.10} parent=0 // pred_check_branch
    %97 = sbr.rel (0) target = $region25
  $region24: #{conditional_graph_network.10} parent=0 // pred_region
    _
  $region25: #{conditional_graph_network.10} parent=0 // pred_fallthru
    _
  // Predicated region
  $region26: #{conditional_graph_network.10} parent=0 // pred_check
    _
  $region27: #{conditional_graph_network.10} parent=0 // pred_check_branch
    %99 = sbr.rel (0) target = $region29
  $region28: #{conditional_graph_network.10} parent=0 // pred_region
    _
  $region29: #{conditional_graph_network.10} parent=0 // pred_fallthru
    _

// kernel: conditional_graph_network.8
$region0: #{conditional_graph_network.8}
  #allocation0 [shape = 'u32[]', space=smem, size = 0x4, offset = 0x4, fixed_abs, tag = 'smem constant byte address 0x4 - core index']
  #allocation1 [shape = 'u32[72,128]{1,0:T(1,128)}', space=vmem, size = 0x9000, scoped, tag = 'internal scratch']
  %s0 = inlined_call_operand.vmem [shape: f32[64,6], index: 0, kind: input, shape index: {}]
  %s1 = inlined_call_operand.vmem [shape: f32[6,128], index: 1, kind: input, shape index: {}]
  %s2 = inlined_call_operand.vmem [shape: f32[1,128], index: 2, kind: input, shape index: {}]
  %s3 = inlined_call_operand.hbm [shape: f32[128,128], index: 3, kind: input, shape index: {}]
  %s4 = inlined_call_operand.vmem [shape: f32[1,128], index: 4, kind: input, shape index: {}]
  %s5 = inlined_call_operand.vmem [shape: f32[64,128], index: 5, kind: output, shape index: {}]
  %s6 = sld [smem:[#allocation0]]
  $region34: #{conditional_graph_network.8} parent=0
    _
  %s8 = ssub.s32 1, %s6
  %s9 = scalar_select 0, %s8, %s6
  $region1: #{conditional_graph_network.8} parent=0
    #allocation2 [shape = 'u8[65536]{0}', space=vmem, size = 0x10000, scoped, tag = 'input window, operand 3, single buffered']
    #allocation3 [shape = 's32[1]{0}', space=sflag, size = 0x4, scoped, tag = 'scoped memory for conditional_graph_network.8']
    %10 = vsyncpa [#allocation3], 0
    // Predicated region
    $region2: #{conditional_graph_network.8} parent=1 // pred_check
      _
    $region3: #{conditional_graph_network.8} parent=1 // pred_check_branch
      %12 = sbr.rel (0) target = $region5
    $region4: #{conditional_graph_network.8} parent=1 // pred_region
      _
    $region5: #{conditional_graph_network.8} parent=1 // pred_fallthru
      _
    // Predicated region
    $region6: #{conditional_graph_network.8} parent=1 // pred_check
      _
    $region7: #{conditional_graph_network.8} parent=1 // pred_check_branch
      %14 = sbr.rel (0) target = $region9
    $region8: #{conditional_graph_network.8} parent=1 // pred_region
      _
    $region9: #{conditional_graph_network.8} parent=1 // pred_fallthru
      _
    // Predicated region
    $region10: #{conditional_graph_network.8} parent=1 // pred_check
      _
    $region11: #{conditional_graph_network.8} parent=1 // pred_check_branch
      %16 = sbr.rel (0) target = $region13
    $region12: #{conditional_graph_network.8} parent=1 // pred_region
      _
    $region13: #{conditional_graph_network.8} parent=1 // pred_fallthru
      _
    // Predicated region
    $region14: #{conditional_graph_network.8} parent=1 // pred_check
      _
    $region15: #{conditional_graph_network.8} parent=1 // pred_check_branch
      %18 = sbr.rel (0) target = $region17
    $region16: #{conditional_graph_network.8} parent=1 // pred_region
      %20 = vsyncadd [#allocation3], 0
      %s21 = sshll.u32 %s3, 4
      %s22 = int_to_ptr.hbm [resolvable:$true] %s21
      %s23 = sshll.u32 [#allocation2], 4
      %s24 = int_to_ptr.vmem [resolvable:$true] %s23
      %29 = dma.hbm_to_vmem [thread:$0]  %s22, 2048, %s24, [#allocation3], 128, 128, 8
    $region17: #{conditional_graph_network.8} parent=1 // pred_fallthru
      _
    // Predicated region
    $region18: #{conditional_graph_network.8} parent=1 // pred_check
      _
    $region19: #{conditional_graph_network.8} parent=1 // pred_check_branch
      %31 = sbr.rel (0) target = $region21
    $region20: #{conditional_graph_network.8} parent=1 // pred_region
      _
    $region21: #{conditional_graph_network.8} parent=1 // pred_fallthru
      _
    // Predicated region
    $region22: #{conditional_graph_network.8} parent=1 // pred_check
      _
    $region23: #{conditional_graph_network.8} parent=1 // pred_check_branch
      %33 = sbr.rel (0) target = $region25
    $region24: #{conditional_graph_network.8} parent=1 // pred_region
      %35 = dma.done [#allocation3], 2048
    $region25: #{conditional_graph_network.8} parent=1 // pred_fallthru
      _
    %v36 = vld [vmem:[%s0] sm:$0xff]
    %v37 = vld [vmem:[%s0 + $0x8] sm:$0xff]
    %v38 = vld [vmem:[%s0 + $0x10] sm:$0xff]
    %v39 = vld [vmem:[%s0 + $0x18] sm:$0xff]
    %v40 = vld [vmem:[%s0 + $0x20] sm:$0xff]
    %v41 = vld [vmem:[%s0 + $0x28] sm:$0xff]
    %v42 = vld [vmem:[%s0 + $0x30] sm:$0xff]
    %v43 = vld [vmem:[%s0 + $0x38] sm:$0xff]
    %v44 = vld [vmem:[%s1] sm:$0x3f]
    %v45 = vld [vmem:[%s2] sm:$0x1]
    %v47 = vperm.slane %v45, 0
    %vm49 = vcmask 48128
    %v51 = vsel %vm49, %v36, 0
    %v54 = vsel %vm49, %v37, 0
    %v57 = vsel %vm49, %v38, 0
    %v60 = vsel %vm49, %v39, 0
    %v63 = vsel %vm49, %v40, 0
    %v66 = vsel %vm49, %v41, 0
    %v69 = vsel %vm49, %v42, 0
    %v72 = vsel %vm49, %v43, 0
    %vm74 = vcmask 1045504
    %v76 = vsel %vm74, %v44, 0
    %78 = vmatpush.msra.mxu0 0.0
    %79 = vmatpush.msra.mxu0 0.0
    %80 = vmatpush.msra.mxu0 0.0
    %81 = vmatpush.msra.mxu0 0.0
    %82 = vmatpush.msra.mxu0 0.0
    %83 = vmatpush.msra.mxu0 0.0
    %84 = vmatpush.msra.mxu0 0.0
    %85 = vmatpush.msra.mxu0 0.0
    %86 = vmatpush.msra.mxu0 0.0
    %87 = vmatpush.msra.mxu0 0.0
    %88 = vmatpush.msra.mxu0 0.0
    %89 = vmatpush.msra.mxu0 0.0
    %90 = vmatpush.msra.mxu0 0.0
    %91 = vmatpush.msra.mxu0 0.0
    %92 = vmatpush.msra.mxu0 0.0
    %93 = vmatpush.msra.mxu0 %v76
    %94 = vmatmul.f32.gmra.mxu0 %v51
    %v95 = vpop.f32.mrf.mxu0
    %v96 = vadd.f32 %v47, %v95
    %97 = vmatmul.f32.gmra.mxu0 %v54
    %v98 = vpop.f32.mrf.mxu0
    %v99 = vadd.f32 %v47, %v98
    %100 = vmatmul.f32.gmra.mxu0 %v57
    %v101 = vpop.f32.mrf.mxu0
    %v102 = vadd.f32 %v47, %v101
    %103 = vmatmul.f32.gmra.mxu0 %v60
    %v104 = vpop.f32.mrf.mxu0
    %v105 = vadd.f32 %v47, %v104
    %106 = vmatmul.f32.gmra.mxu0 %v63
    %v107 = vpop.f32.mrf.mxu0
    %v108 = vadd.f32 %v47, %v107
    %109 = vmatmul.f32.gmra.mxu0 %v66
    %v110 = vpop.f32.mrf.mxu0
    %v111 = vadd.f32 %v47, %v110
    %112 = vmatmul.f32.gmra.mxu0 %v69
    %v113 = vpop.f32.mrf.mxu0
    %v114 = vadd.f32 %v47, %v113
    %115 = vmatmul.f32.gmra.mxu0 %v72
    %v116 = vpop.f32.mrf.mxu0
    %v117 = vadd.f32 %v47, %v116
    %118 = vdwg.mxu0
    %v119 = vmax.f32 %v96, 0.0
    %v120 = vmax.f32 %v99, 0.0
    %v121 = vmax.f32 %v102, 0.0
    %v122 = vmax.f32 %v105, 0.0
    %v123 = vmax.f32 %v108, 0.0
    %v124 = vmax.f32 %v111, 0.0
    %v125 = vmax.f32 %v114, 0.0
    %v126 = vmax.f32 %v117, 0.0
    %v127 = vld [vmem:[#allocation2] sm:$0xff]
    %v128 = vld [vmem:[#allocation2 + $0x8] sm:$0xff]
    %v129 = vld [vmem:[#allocation2 + $0x10] sm:$0xff]
    %v130 = vld [vmem:[#allocation2 + $0x18] sm:$0xff]
    %v131 = vld [vmem:[#allocation2 + $0x20] sm:$0xff]
    %v132 = vld [vmem:[#allocation2 + $0x28] sm:$0xff]
    %v133 = vld [vmem:[#allocation2 + $0x30] sm:$0xff]
    %v134 = vld [vmem:[#allocation2 + $0x38] sm:$0xff]
    %v135 = vld [vmem:[#allocation2 + $0x40] sm:$0xff]
    %v136 = vld [vmem:[#allocation2 + $0x48] sm:$0xff]
    %v137 = vld [vmem:[#allocation2 + $0x50] sm:$0xff]
    %v138 = vld [vmem:[#allocation2 + $0x58] sm:$0xff]
    %v139 = vld [vmem:[#allocation2 + $0x60] sm:$0xff]
    %v140 = vld [vmem:[#allocation2 + $0x68] sm:$0xff]
    %v141 = vld [vmem:[#allocation2 + $0x70] sm:$0xff]
    %v142 = vld [vmem:[#allocation2 + $0x78] sm:$0xff]
    %v143 = vld [vmem:[%s4] sm:$0x1]
    %v145 = vperm.slane %v143, 0
    %147 = vmatpush.msra.mxu0 %v142
    %148 = vmatpush.msra.mxu0 %v141
    %149 = vmatpush.msra.mxu0 %v140
    %150 = vmatpush.msra.mxu0 %v139
    %151 = vmatpush.msra.mxu0 %v138
    %152 = vmatpush.msra.mxu0 %v137
    %153 = vmatpush.msra.mxu0 %v136
    %154 = vmatpush.msra.mxu0 %v135
    %155 = vmatpush.msra.mxu0 %v134
    %156 = vmatpush.msra.mxu0 %v133
    %157 = vmatpush.msra.mxu0 %v132
    %158 = vmatpush.msra.mxu0 %v131
    %159 = vmatpush.msra.mxu0 %v130
    %160 = vmatpush.msra.mxu0 %v129
    %161 = vmatpush.msra.mxu0 %v128
    %162 = vmatpush.msra.mxu0 %v127
    %163 = vmatmul.f32.gmra.mxu0 %v119
    %v164 = vpop.f32.mrf.mxu0
    %v165 = vadd.f32 %v145, %v164
    %166 = vmatmul.f32.gmra.mxu0 %v120
    %v167 = vpop.f32.mrf.mxu0
    %v168 = vadd.f32 %v145, %v167
    %169 = vmatmul.f32.gmra.mxu0 %v121
    %v170 = vpop.f32.mrf.mxu0
    %v171 = vadd.f32 %v145, %v170
    %172 = vmatmul.f32.gmra.mxu0 %v122
    %v173 = vpop.f32.mrf.mxu0
    %v174 = vadd.f32 %v145, %v173
    %175 = vmatmul.f32.gmra.mxu0 %v123
    %v176 = vpop.f32.mrf.mxu0
    %v177 = vadd.f32 %v145, %v176
    %178 = vmatmul.f32.gmra.mxu0 %v124
    %v179 = vpop.f32.mrf.mxu0
    %v180 = vadd.f32 %v145, %v179
    %181 = vmatmul.f32.gmra.mxu0 %v125
    %v182 = vpop.f32.mrf.mxu0
    %v183 = vadd.f32 %v145, %v182
    %184 = vmatmul.f32.gmra.mxu0 %v126
    %v185 = vpop.f32.mrf.mxu0
    %v186 = vadd.f32 %v145, %v185
    %187 = vdwg.mxu0
    %188 = vst [vmem:[%s5] sm:$0xff] %v165
    %189 = vst [vmem:[%s5 + $0x8] sm:$0xff] %v168
    %190 = vst [vmem:[%s5 + $0x10] sm:$0xff] %v171
    %191 = vst [vmem:[%s5 + $0x18] sm:$0xff] %v174
    %192 = vst [vmem:[%s5 + $0x20] sm:$0xff] %v177
    %193 = vst [vmem:[%s5 + $0x28] sm:$0xff] %v180
    %194 = vst [vmem:[%s5 + $0x30] sm:$0xff] %v183
    %195 = vst [vmem:[%s5 + $0x38] sm:$0xff] %v186
    // Predicated region
    $region26: #{conditional_graph_network.8} parent=1 // pred_check
      _
    $region27: #{conditional_graph_network.8} parent=1 // pred_check_branch
      %197 = sbr.rel (0) target = $region29
    $region28: #{conditional_graph_network.8} parent=1 // pred_region
      _
    $region29: #{conditional_graph_network.8} parent=1 // pred_fallthru
      _
    // Predicated region
    $region30: #{conditional_graph_network.8} parent=1 // pred_check
      _
    $region31: #{conditional_graph_network.8} parent=1 // pred_check_branch
      %199 = sbr.rel (0) target = $region33
    $region32: #{conditional_graph_network.8} parent=1 // pred_region
      _
    $region33: #{conditional_graph_network.8} parent=1 // pred_fallthru
      _
    %200 = vsyncpa [#allocation3], 1

// kernel: conditional_graph_network.9
$region0: #{conditional_graph_network.9}
  #allocation0 [shape = 'u32[]', space=smem, size = 0x4, offset = 0x4, fixed_abs, tag = 'smem constant byte address 0x4 - core index']
  #allocation1 [shape = 'u32[72,128]{1,0:T(1,128)}', space=vmem, size = 0x9000, scoped, tag = 'internal scratch']
  %s0 = inlined_call_operand.vmem [shape: f32[128,3], index: 0, kind: input, shape index: {}]
  %s1 = inlined_call_operand.vmem [shape: f32[3,128], index: 1, kind: input, shape index: {}]
  %s2 = inlined_call_operand.vmem [shape: f32[1,128], index: 2, kind: input, shape index: {}]
  %s3 = inlined_call_operand.vmem [shape: f32[128,128], index: 3, kind: input, shape index: {}]
  %s4 = inlined_call_operand.vmem [shape: f32[1,128], index: 4, kind: input, shape index: {}]
  %s5 = inlined_call_operand.vmem [shape: f32[128,128], index: 5, kind: output, shape index: {}]
  %s6 = sld [smem:[#allocation0]]
  $region30: #{conditional_graph_network.9} parent=0
    _
  %s8 = ssub.s32 1, %s6
  %s9 = scalar_select 0, %s8, %s6
  // Predicated region
  $region2: #{conditional_graph_network.9} parent=0 // pred_check
    _
  $region3: #{conditional_graph_network.9} parent=0 // pred_check_branch
    %11 = sbr.rel (0) target = $region5
  $region4: #{conditional_graph_network.9} parent=0 // pred_region
    _
  $region5: #{conditional_graph_network.9} parent=0 // pred_fallthru
    _
  // Predicated region
  $region6: #{conditional_graph_network.9} parent=0 // pred_check
    _
  $region7: #{conditional_graph_network.9} parent=0 // pred_check_branch
    %13 = sbr.rel (0) target = $region9
  $region8: #{conditional_graph_network.9} parent=0 // pred_region
    _
  $region9: #{conditional_graph_network.9} parent=0 // pred_fallthru
    _
  // Predicated region
  $region10: #{conditional_graph_network.9} parent=0 // pred_check
    _
  $region11: #{conditional_graph_network.9} parent=0 // pred_check_branch
    %15 = sbr.rel (0) target = $region13
  $region12: #{conditional_graph_network.9} parent=0 // pred_region
    _
  $region13: #{conditional_graph_network.9} parent=0 // pred_fallthru
    _
  // Predicated region
  $region14: #{conditional_graph_network.9} parent=0 // pred_check
    _
  $region15: #{conditional_graph_network.9} parent=0 // pred_check_branch
    %17 = sbr.rel (0) target = $region17
  $region16: #{conditional_graph_network.9} parent=0 // pred_region
    _
  $region17: #{conditional_graph_network.9} parent=0 // pred_fallthru
    _
  // Predicated region
  $region18: #{conditional_graph_network.9} parent=0 // pred_check
    _
  $region19: #{conditional_graph_network.9} parent=0 // pred_check_branch
    %19 = sbr.rel (0) target = $region21
  $region20: #{conditional_graph_network.9} parent=0 // pred_region
    _
  $region21: #{conditional_graph_network.9} parent=0 // pred_fallthru
    _
  %v20 = vld [vmem:[%s0] sm:$0xff]
  %v21 = vld [vmem:[%s0 + $0x8] sm:$0xff]
  %v22 = vld [vmem:[%s0 + $0x10] sm:$0xff]
  %v23 = vld [vmem:[%s0 + $0x18] sm:$0xff]
  %v24 = vld [vmem:[%s0 + $0x20] sm:$0xff]
  %v25 = vld [vmem:[%s0 + $0x28] sm:$0xff]
  %v26 = vld [vmem:[%s0 + $0x30] sm:$0xff]
  %v27 = vld [vmem:[%s0 + $0x38] sm:$0xff]
  %v28 = vld [vmem:[%s0 + $0x40] sm:$0xff]
  %v29 = vld [vmem:[%s0 + $0x48] sm:$0xff]
  %v30 = vld [vmem:[%s0 + $0x50] sm:$0xff]
  %v31 = vld [vmem:[%s0 + $0x58] sm:$0xff]
  %v32 = vld [vmem:[%s0 + $0x60] sm:$0xff]
  %v33 = vld [vmem:[%s0 + $0x68] sm:$0xff]
  %v34 = vld [vmem:[%s0 + $0x70] sm:$0xff]
  %v35 = vld [vmem:[%s0 + $0x78] sm:$0xff]
  %v36 = vld [vmem:[%s1] sm:$0x7]
  %v37 = vld [vmem:[%s2] sm:$0x1]
  %v39 = vperm.slane %v37, 0
  %vm41 = vcmask 23552
  %v43 = vsel %vm41, %v20, 0
  %v46 = vsel %vm41, %v21, 0
  %v49 = vsel %vm41, %v22, 0
  %v52 = vsel %vm41, %v23, 0
  %v55 = vsel %vm41, %v24, 0
  %v58 = vsel %vm41, %v25, 0
  %v61 = vsel %vm41, %v26, 0
  %v64 = vsel %vm41, %v27, 0
  %v67 = vsel %vm41, %v28, 0
  %v70 = vsel %vm41, %v29, 0
  %v73 = vsel %vm41, %v30, 0
  %v76 = vsel %vm41, %v31, 0
  %v79 = vsel %vm41, %v32, 0
  %v82 = vsel %vm41, %v33, 0
  %v85 = vsel %vm41, %v34, 0
  %v88 = vsel %vm41, %v35, 0
  %vm90 = vcmask 1042432
  %v92 = vsel %vm90, %v36, 0
  %94 = vmatpush.msra.mxu0 0.0
  %95 = vmatpush.msra.mxu0 0.0
  %96 = vmatpush.msra.mxu0 0.0
  %97 = vmatpush.msra.mxu0 0.0
  %98 = vmatpush.msra.mxu0 0.0
  %99 = vmatpush.msra.mxu0 0.0
  %100 = vmatpush.msra.mxu0 0.0
  %101 = vmatpush.msra.mxu0 0.0
  %102 = vmatpush.msra.mxu0 0.0
  %103 = vmatpush.msra.mxu0 0.0
  %104 = vmatpush.msra.mxu0 0.0
  %105 = vmatpush.msra.mxu0 0.0
  %106 = vmatpush.msra.mxu0 0.0
  %107 = vmatpush.msra.mxu0 0.0
  %108 = vmatpush.msra.mxu0 0.0
  %109 = vmatpush.msra.mxu0 %v92
  %110 = vmatmul.f32.gmra.mxu0 %v43
  %v111 = vpop.f32.mrf.mxu0
  %v112 = vadd.f32 %v39, %v111
  %113 = vmatmul.f32.gmra.mxu0 %v46
  %v114 = vpop.f32.mrf.mxu0
  %v115 = vadd.f32 %v39, %v114
  %116 = vmatmul.f32.gmra.mxu0 %v49
  %v117 = vpop.f32.mrf.mxu0
  %v118 = vadd.f32 %v39, %v117
  %119 = vmatmul.f32.gmra.mxu0 %v52
  %v120 = vpop.f32.mrf.mxu0
  %v121 = vadd.f32 %v39, %v120
  %122 = vmatmul.f32.gmra.mxu0 %v55
  %v123 = vpop.f32.mrf.mxu0
  %v124 = vadd.f32 %v39, %v123
  %125 = vmatmul.f32.gmra.mxu0 %v58
  %v126 = vpop.f32.mrf.mxu0
  %v127 = vadd.f32 %v39, %v126
  %128 = vmatmul.f32.gmra.mxu0 %v61
  %v129 = vpop.f32.mrf.mxu0
  %v130 = vadd.f32 %v39, %v129
  %131 = vmatmul.f32.gmra.mxu0 %v64
  %v132 = vpop.f32.mrf.mxu0
  %v133 = vadd.f32 %v39, %v132
  %134 = vmatmul.f32.gmra.mxu0 %v67
  %v135 = vpop.f32.mrf.mxu0
  %v136 = vadd.f32 %v39, %v135
  %137 = vmatmul.f32.gmra.mxu0 %v70
  %v138 = vpop.f32.mrf.mxu0
  %v139 = vadd.f32 %v39, %v138
  %140 = vmatmul.f32.gmra.mxu0 %v73
  %v141 = vpop.f32.mrf.mxu0
  %v142 = vadd.f32 %v39, %v141
  %143 = vmatmul.f32.gmra.mxu0 %v76
  %v144 = vpop.f32.mrf.mxu0
  %v145 = vadd.f32 %v39, %v144
  %146 = vmatmul.f32.gmra.mxu0 %v79
  %v147 = vpop.f32.mrf.mxu0
  %v148 = vadd.f32 %v39, %v147
  %149 = vmatmul.f32.gmra.mxu0 %v82
  %v150 = vpop.f32.mrf.mxu0
  %v151 = vadd.f32 %v39, %v150
  %152 = vmatmul.f32.gmra.mxu0 %v85
  %v153 = vpop.f32.mrf.mxu0
  %v154 = vadd.f32 %v39, %v153
  %155 = vmatmul.f32.gmra.mxu0 %v88
  %v156 = vpop.f32.mrf.mxu0
  %v157 = vadd.f32 %v39, %v156
  %158 = vdwg.mxu0
  %v159 = vmax.f32 %v112, 0.0
  %v160 = vmax.f32 %v115, 0.0
  %v161 = vmax.f32 %v118, 0.0
  %v162 = vmax.f32 %v121, 0.0
  %v163 = vmax.f32 %v124, 0.0
  %v164 = vmax.f32 %v127, 0.0
  %v165 = vmax.f32 %v130, 0.0
  %v166 = vmax.f32 %v133, 0.0
  %v167 = vmax.f32 %v136, 0.0
  %v168 = vmax.f32 %v139, 0.0
  %v169 = vmax.f32 %v142, 0.0
  %v170 = vmax.f32 %v145, 0.0
  %v171 = vmax.f32 %v148, 0.0
  %v172 = vmax.f32 %v151, 0.0
  %v173 = vmax.f32 %v154, 0.0
  %v174 = vmax.f32 %v157, 0.0
  %v175 = vld [vmem:[%s3] sm:$0xff]
  %v176 = vld [vmem:[%s3 + $0x8] sm:$0xff]
  %v177 = vld [vmem:[%s3 + $0x10] sm:$0xff]
  %v178 = vld [vmem:[%s3 + $0x18] sm:$0xff]
  %v179 = vld [vmem:[%s3 + $0x20] sm:$0xff]
  %v180 = vld [vmem:[%s3 + $0x28] sm:$0xff]
  %v181 = vld [vmem:[%s3 + $0x30] sm:$0xff]
  %v182 = vld [vmem:[%s3 + $0x38] sm:$0xff]
  %v183 = vld [vmem:[%s3 + $0x40] sm:$0xff]
  %v184 = vld [vmem:[%s3 + $0x48] sm:$0xff]
  %v185 = vld [vmem:[%s3 + $0x50] sm:$0xff]
  %v186 = vld [vmem:[%s3 + $0x58] sm:$0xff]
  %v187 = vld [vmem:[%s3 + $0x60] sm:$0xff]
  %v188 = vld [vmem:[%s3 + $0x68] sm:$0xff]
  %v189 = vld [vmem:[%s3 + $0x70] sm:$0xff]
  %v190 = vld [vmem:[%s3 + $0x78] sm:$0xff]
  %v191 = vld [vmem:[%s4] sm:$0x1]
  %v193 = vperm.slane %v191, 0
  %195 = vmatpush.msra.mxu0 %v190
  %196 = vmatpush.msra.mxu0 %v189
  %197 = vmatpush.msra.mxu0 %v188
  %198 = vmatpush.msra.mxu0 %v187
  %199 = vmatpush.msra.mxu0 %v186
  %200 = vmatpush.msra.mxu0 %v185
  %201 = vmatpush.msra.mxu0 %v184
  %202 = vmatpush.msra.mxu0 %v183
  %203 = vmatpush.msra.mxu0 %v182
  %204 = vmatpush.msra.mxu0 %v181
  %205 = vmatpush.msra.mxu0 %v180
  %206 = vmatpush.msra.mxu0 %v179
  %207 = vmatpush.msra.mxu0 %v178
  %208 = vmatpush.msra.mxu0 %v177
  %209 = vmatpush.msra.mxu0 %v176
  %210 = vmatpush.msra.mxu0 %v175
  %211 = vmatmul.f32.gmra.mxu0 %v159
  %v212 = vpop.f32.mrf.mxu0
  %v213 = vadd.f32 %v193, %v212
  %214 = vmatmul.f32.gmra.mxu0 %v160
  %v215 = vpop.f32.mrf.mxu0
  %v216 = vadd.f32 %v193, %v215
  %217 = vmatmul.f32.gmra.mxu0 %v161
  %v218 = vpop.f32.mrf.mxu0
  %v219 = vadd.f32 %v193, %v218
  %220 = vmatmul.f32.gmra.mxu0 %v162
  %v221 = vpop.f32.mrf.mxu0
  %v222 = vadd.f32 %v193, %v221
  %223 = vmatmul.f32.gmra.mxu0 %v163
  %v224 = vpop.f32.mrf.mxu0
  %v225 = vadd.f32 %v193, %v224
  %226 = vmatmul.f32.gmra.mxu0 %v164
  %v227 = vpop.f32.mrf.mxu0
  %v228 = vadd.f32 %v193, %v227
  %229 = vmatmul.f32.gmra.mxu0 %v165
  %v230 = vpop.f32.mrf.mxu0
  %v231 = vadd.f32 %v193, %v230
  %232 = vmatmul.f32.gmra.mxu0 %v166
  %v233 = vpop.f32.mrf.mxu0
  %v234 = vadd.f32 %v193, %v233
  %235 = vmatmul.f32.gmra.mxu0 %v167
  %v236 = vpop.f32.mrf.mxu0
  %v237 = vadd.f32 %v193, %v236
  %238 = vmatmul.f32.gmra.mxu0 %v168
  %v239 = vpop.f32.mrf.mxu0
  %v240 = vadd.f32 %v193, %v239
  %241 = vmatmul.f32.gmra.mxu0 %v169
  %v242 = vpop.f32.mrf.mxu0
  %v243 = vadd.f32 %v193, %v242
  %244 = vmatmul.f32.gmra.mxu0 %v170
  %v245 = vpop.f32.mrf.mxu0
  %v246 = vadd.f32 %v193, %v245
  %247 = vmatmul.f32.gmra.mxu0 %v171
  %v248 = vpop.f32.mrf.mxu0
  %v249 = vadd.f32 %v193, %v248
  %250 = vmatmul.f32.gmra.mxu0 %v172
  %v251 = vpop.f32.mrf.mxu0
  %v252 = vadd.f32 %v193, %v251
  %253 = vmatmul.f32.gmra.mxu0 %v173
  %v254 = vpop.f32.mrf.mxu0
  %v255 = vadd.f32 %v193, %v254
  %256 = vmatmul.f32.gmra.mxu0 %v174
  %v257 = vpop.f32.mrf.mxu0
  %v258 = vadd.f32 %v193, %v257
  %259 = vdwg.mxu0
  %260 = vst [vmem:[%s5] sm:$0xff] %v213
  %261 = vst [vmem:[%s5 + $0x8] sm:$0xff] %v216
  %262 = vst [vmem:[%s5 + $0x10] sm:$0xff] %v219
  %263 = vst [vmem:[%s5 + $0x18] sm:$0xff] %v222
  %264 = vst [vmem:[%s5 + $0x20] sm:$0xff] %v225
  %265 = vst [vmem:[%s5 + $0x28] sm:$0xff] %v228
  %266 = vst [vmem:[%s5 + $0x30] sm:$0xff] %v231
  %267 = vst [vmem:[%s5 + $0x38] sm:$0xff] %v234
  %268 = vst [vmem:[%s5 + $0x40] sm:$0xff] %v237
  %269 = vst [vmem:[%s5 + $0x48] sm:$0xff] %v240
  %270 = vst [vmem:[%s5 + $0x50] sm:$0xff] %v243
  %271 = vst [vmem:[%s5 + $0x58] sm:$0xff] %v246
  %272 = vst [vmem:[%s5 + $0x60] sm:$0xff] %v249
  %273 = vst [vmem:[%s5 + $0x68] sm:$0xff] %v252
  %274 = vst [vmem:[%s5 + $0x70] sm:$0xff] %v255
  %275 = vst [vmem:[%s5 + $0x78] sm:$0xff] %v258
  // Predicated region
  $region22: #{conditional_graph_network.9} parent=0 // pred_check
    _
  $region23: #{conditional_graph_network.9} parent=0 // pred_check_branch
    %277 = sbr.rel (0) target = $region25
  $region24: #{conditional_graph_network.9} parent=0 // pred_region
    _
  $region25: #{conditional_graph_network.9} parent=0 // pred_fallthru
    _
  // Predicated region
  $region26: #{conditional_graph_network.9} parent=0 // pred_check
    _
  $region27: #{conditional_graph_network.9} parent=0 // pred_check_branch
    %279 = sbr.rel (0) target = $region29
  $region28: #{conditional_graph_network.9} parent=0 // pred_region
    _
  $region29: #{conditional_graph_network.9} parent=0 // pred_fallthru
    _

// kernel: conditional_graph_network.11
$region0: #{conditional_graph_network.11}
  #allocation0 [shape = 'u32[]', space=smem, size = 0x4, offset = 0x4, fixed_abs, tag = 'smem constant byte address 0x4 - core index']
  #allocation1 [shape = 'u32[72,128]{1,0:T(1,128)}', space=vmem, size = 0x9000, scoped, tag = 'internal scratch']
  %s0 = inlined_call_operand.vmem [shape: f32[128,128], index: 0, kind: input, shape index: {}]
  %s1 = inlined_call_operand.vmem [shape: f32[128,128], index: 1, kind: input, shape index: {}]
  %s2 = inlined_call_operand.vmem [shape: f32[128,128], index: 2, kind: input, shape index: {}]
  %s3 = inlined_call_operand.vmem [shape: f32[128,128], index: 3, kind: input, shape index: {}]
  %s4 = inlined_call_operand.vmem [shape: f32[128,128], index: 4, kind: input, shape index: {}]
  %s5 = inlined_call_operand.vmem [shape: f32[128,128], index: 5, kind: input, shape index: {}]
  %s6 = inlined_call_operand.vmem [shape: f32[128,128], index: 6, kind: input, shape index: {}]
  %s7 = inlined_call_operand.vmem [shape: f32[128,128], index: 7, kind: input, shape index: {}]
  %s8 = inlined_call_operand.vmem [shape: f32[1,128], index: 8, kind: input, shape index: {}]
  %s9 = inlined_call_operand.vmem [shape: f32[128,128], index: 9, kind: input, shape index: {}]
  %s10 = inlined_call_operand.vmem [shape: f32[1,128], index: 10, kind: input, shape index: {}]
  %s11 = inlined_call_operand.vmem [shape: f32[128,128], index: 11, kind: output, shape index: {}]
  %s12 = sld [smem:[#allocation0]]
  $region54: #{conditional_graph_network.11} parent=0
    _
  %s14 = ssub.s32 1, %s12
  %s15 = scalar_select 0, %s14, %s12
  // Predicated region
  $region2: #{conditional_graph_network.11} parent=0 // pred_check
    _
  $region3: #{conditional_graph_network.11} parent=0 // pred_check_branch
    %17 = sbr.rel (0) target = $region5
  $region4: #{conditional_graph_network.11} parent=0 // pred_region
    _
  $region5: #{conditional_graph_network.11} parent=0 // pred_fallthru
    _
  // Predicated region
  $region6: #{conditional_graph_network.11} parent=0 // pred_check
    _
  $region7: #{conditional_graph_network.11} parent=0 // pred_check_branch
    %19 = sbr.rel (0) target = $region9
  $region8: #{conditional_graph_network.11} parent=0 // pred_region
    _
  $region9: #{conditional_graph_network.11} parent=0 // pred_fallthru
    _
  // Predicated region
  $region10: #{conditional_graph_network.11} parent=0 // pred_check
    _
  $region11: #{conditional_graph_network.11} parent=0 // pred_check_branch
    %21 = sbr.rel (0) target = $region13
  $region12: #{conditional_graph_network.11} parent=0 // pred_region
    _
  $region13: #{conditional_graph_network.11} parent=0 // pred_fallthru
    _
  // Predicated region
  $region14: #{conditional_graph_network.11} parent=0 // pred_check
    _
  $region15: #{conditional_graph_network.11} parent=0 // pred_check_branch
    %23 = sbr.rel (0) target = $region17
  $region16: #{conditional_graph_network.11} parent=0 // pred_region
    _
  $region17: #{conditional_graph_network.11} parent=0 // pred_fallthru
    _
  // Predicated region
  $region18: #{conditional_graph_network.11} parent=0 // pred_check
    _
  $region19: #{conditional_graph_network.11} parent=0 // pred_check_branch
    %25 = sbr.rel (0) target = $region21
  $region20: #{conditional_graph_network.11} parent=0 // pred_region
    _
  $region21: #{conditional_graph_network.11} parent=0 // pred_fallthru
    _
  // Predicated region
  $region22: #{conditional_graph_network.11} parent=0 // pred_check
    _
  $region23: #{conditional_graph_network.11} parent=0 // pred_check_branch
    %27 = sbr.rel (0) target = $region25
  $region24: #{conditional_graph_network.11} parent=0 // pred_region
    _
  $region25: #{conditional_graph_network.11} parent=0 // pred_fallthru
    _
  // Predicated region
  $region26: #{conditional_graph_network.11} parent=0 // pred_check
    _
  $region27: #{conditional_graph_network.11} parent=0 // pred_check_branch
    %29 = sbr.rel (0) target = $region29
  $region28: #{conditional_graph_network.11} parent=0 // pred_region
    _
  $region29: #{conditional_graph_network.11} parent=0 // pred_fallthru
    _
  // Predicated region
  $region30: #{conditional_graph_network.11} parent=0 // pred_check
    _
  $region31: #{conditional_graph_network.11} parent=0 // pred_check_branch
    %31 = sbr.rel (0) target = $region33
  $region32: #{conditional_graph_network.11} parent=0 // pred_region
    _
  $region33: #{conditional_graph_network.11} parent=0 // pred_fallthru
    _
  // Predicated region
  $region34: #{conditional_graph_network.11} parent=0 // pred_check
    _
  $region35: #{conditional_graph_network.11} parent=0 // pred_check_branch
    %33 = sbr.rel (0) target = $region37
  $region36: #{conditional_graph_network.11} parent=0 // pred_region
    _
  $region37: #{conditional_graph_network.11} parent=0 // pred_fallthru
    _
  // Predicated region
  $region38: #{conditional_graph_network.11} parent=0 // pred_check
    _
  $region39: #{conditional_graph_network.11} parent=0 // pred_check_branch
    %35 = sbr.rel (0) target = $region41
  $region40: #{conditional_graph_network.11} parent=0 // pred_region
    _
  $region41: #{conditional_graph_network.11} parent=0 // pred_fallthru
    _
  // Predicated region
  $region42: #{conditional_graph_network.11} parent=0 // pred_check
    _
  $region43: #{conditional_graph_network.11} parent=0 // pred_check_branch
    %37 = sbr.rel (0) target = $region45
  $region44: #{conditional_graph_network.11} parent=0 // pred_region
    _
  $region45: #{conditional_graph_network.11} parent=0 // pred_fallthru
    _
  %v38 = vld [vmem:[%s0] sm:$0xff]
  %v39 = vld [vmem:[%s0 + $0x8] sm:$0xff]
  %v40 = vld [vmem:[%s0 + $0x10] sm:$0xff]
  %v41 = vld [vmem:[%s0 + $0x18] sm:$0xff]
  %v42 = vld [vmem:[%s0 + $0x20] sm:$0xff]
  %v43 = vld [vmem:[%s0 + $0x28] sm:$0xff]
  %v44 = vld [vmem:[%s0 + $0x30] sm:$0xff]
  %v45 = vld [vmem:[%s0 + $0x38] sm:$0xff]
  %v46 = vld [vmem:[%s0 + $0x40] sm:$0xff]
  %v47 = vld [vmem:[%s0 + $0x48] sm:$0xff]
  %v48 = vld [vmem:[%s0 + $0x50] sm:$0xff]
  %v49 = vld [vmem:[%s0 + $0x58] sm:$0xff]
  %v50 = vld [vmem:[%s0 + $0x60] sm:$0xff]
  %v51 = vld [vmem:[%s0 + $0x68] sm:$0xff]
  %v52 = vld [vmem:[%s0 + $0x70] sm:$0xff]
  %v53 = vld [vmem:[%s0 + $0x78] sm:$0xff]
  %v54 = vld [vmem:[%s4] sm:$0xff]
  %v55 = vld [vmem:[%s4 + $0x8] sm:$0xff]
  %v56 = vld [vmem:[%s4 + $0x10] sm:$0xff]
  %v57 = vld [vmem:[%s4 + $0x18] sm:$0xff]
  %v58 = vld [vmem:[%s4 + $0x20] sm:$0xff]
  %v59 = vld [vmem:[%s4 + $0x28] sm:$0xff]
  %v60 = vld [vmem:[%s4 + $0x30] sm:$0xff]
  %v61 = vld [vmem:[%s4 + $0x38] sm:$0xff]
  %v62 = vld [vmem:[%s4 + $0x40] sm:$0xff]
  %v63 = vld [vmem:[%s4 + $0x48] sm:$0xff]
  %v64 = vld [vmem:[%s4 + $0x50] sm:$0xff]
  %v65 = vld [vmem:[%s4 + $0x58] sm:$0xff]
  %v66 = vld [vmem:[%s4 + $0x60] sm:$0xff]
  %v67 = vld [vmem:[%s4 + $0x68] sm:$0xff]
  %v68 = vld [vmem:[%s4 + $0x70] sm:$0xff]
  %v69 = vld [vmem:[%s4 + $0x78] sm:$0xff]
  %v70 = vld [vmem:[%s1] sm:$0xff]
  %v71 = vld [vmem:[%s1 + $0x8] sm:$0xff]
  %v72 = vld [vmem:[%s1 + $0x10] sm:$0xff]
  %v73 = vld [vmem:[%s1 + $0x18] sm:$0xff]
  %v74 = vld [vmem:[%s1 + $0x20] sm:$0xff]
  %v75 = vld [vmem:[%s1 + $0x28] sm:$0xff]
  %v76 = vld [vmem:[%s1 + $0x30] sm:$0xff]
  %v77 = vld [vmem:[%s1 + $0x38] sm:$0xff]
  %v78 = vld [vmem:[%s1 + $0x40] sm:$0xff]
  %v79 = vld [vmem:[%s1 + $0x48] sm:$0xff]
  %v80 = vld [vmem:[%s1 + $0x50] sm:$0xff]
  %v81 = vld [vmem:[%s1 + $0x58] sm:$0xff]
  %v82 = vld [vmem:[%s1 + $0x60] sm:$0xff]
  %v83 = vld [vmem:[%s1 + $0x68] sm:$0xff]
  %v84 = vld [vmem:[%s1 + $0x70] sm:$0xff]
  %v85 = vld [vmem:[%s1 + $0x78] sm:$0xff]
  %v86 = vld [vmem:[%s5] sm:$0xff]
  %v87 = vld [vmem:[%s5 + $0x8] sm:$0xff]
  %v88 = vld [vmem:[%s5 + $0x10] sm:$0xff]
  %v89 = vld [vmem:[%s5 + $0x18] sm:$0xff]
  %v90 = vld [vmem:[%s5 + $0x20] sm:$0xff]
  %v91 = vld [vmem:[%s5 + $0x28] sm:$0xff]
  %v92 = vld [vmem:[%s5 + $0x30] sm:$0xff]
  %v93 = vld [vmem:[%s5 + $0x38] sm:$0xff]
  %v94 = vld [vmem:[%s5 + $0x40] sm:$0xff]
  %v95 = vld [vmem:[%s5 + $0x48] sm:$0xff]
  %v96 = vld [vmem:[%s5 + $0x50] sm:$0xff]
  %v97 = vld [vmem:[%s5 + $0x58] sm:$0xff]
  %v98 = vld [vmem:[%s5 + $0x60] sm:$0xff]
  %v99 = vld [vmem:[%s5 + $0x68] sm:$0xff]
  %v100 = vld [vmem:[%s5 + $0x70] sm:$0xff]
  %v101 = vld [vmem:[%s5 + $0x78] sm:$0xff]
  %102 = vmatpush.msra.mxu0 %v101
  %103 = vmatpush.msra.mxu0 %v100
  %104 = vmatpush.msra.mxu0 %v99
  %105 = vmatpush.msra.mxu0 %v98
  %106 = vmatpush.msra.mxu0 %v97
  %107 = vmatpush.msra.mxu0 %v96
  %108 = vmatpush.msra.mxu0 %v95
  %109 = vmatpush.msra.mxu0 %v94
  %110 = vmatpush.msra.mxu0 %v93
  %111 = vmatpush.msra.mxu0 %v92
  %112 = vmatpush.msra.mxu0 %v91
  %113 = vmatpush.msra.mxu0 %v90
  %114 = vmatpush.msra.mxu0 %v89
  %115 = vmatpush.msra.mxu0 %v88
  %116 = vmatpush.msra.mxu0 %v87
  %117 = vmatpush.msra.mxu0 %v86
  %118 = vmatmul.f32.gmra.mxu0 %v70
  %v119 = vpop.f32.mrf.mxu0
  %v120 = vadd.f32 0.0, %v119
  %121 = vmatmul.f32.gmra.mxu0 %v71
  %v122 = vpop.f32.mrf.mxu0
  %v123 = vadd.f32 0.0, %v122
  %124 = vmatmul.f32.gmra.mxu0 %v72
  %v125 = vpop.f32.mrf.mxu0
  %v126 = vadd.f32 0.0, %v125
  %127 = vmatmul.f32.gmra.mxu0 %v73
  %v128 = vpop.f32.mrf.mxu0
  %v129 = vadd.f32 0.0, %v128
  %130 = vmatmul.f32.gmra.mxu0 %v74
  %v131 = vpop.f32.mrf.mxu0
  %v132 = vadd.f32 0.0, %v131
  %133 = vmatmul.f32.gmra.mxu0 %v75
  %v134 = vpop.f32.mrf.mxu0
  %v135 = vadd.f32 0.0, %v134
  %136 = vmatmul.f32.gmra.mxu0 %v76
  %v137 = vpop.f32.mrf.mxu0
  %v138 = vadd.f32 0.0, %v137
  %139 = vmatmul.f32.gmra.mxu0 %v77
  %v140 = vpop.f32.mrf.mxu0
  %v141 = vadd.f32 0.0, %v140
  %142 = vmatmul.f32.gmra.mxu0 %v78
  %v143 = vpop.f32.mrf.mxu0
  %v144 = vadd.f32 0.0, %v143
  %145 = vmatmul.f32.gmra.mxu0 %v79
  %v146 = vpop.f32.mrf.mxu0
  %v147 = vadd.f32 0.0, %v146
  %148 = vmatmul.f32.gmra.mxu0 %v80
  %v149 = vpop.f32.mrf.mxu0
  %v150 = vadd.f32 0.0, %v149
  %151 = vmatmul.f32.gmra.mxu0 %v81
  %v152 = vpop.f32.mrf.mxu0
  %v153 = vadd.f32 0.0, %v152
  %154 = vmatmul.f32.gmra.mxu0 %v82
  %v155 = vpop.f32.mrf.mxu0
  %v156 = vadd.f32 0.0, %v155
  %157 = vmatmul.f32.gmra.mxu0 %v83
  %v158 = vpop.f32.mrf.mxu0
  %v159 = vadd.f32 0.0, %v158
  %160 = vmatmul.f32.gmra.mxu0 %v84
  %v161 = vpop.f32.mrf.mxu0
  %v162 = vadd.f32 0.0, %v161
  %163 = vmatmul.f32.gmra.mxu0 %v85
  %v164 = vpop.f32.mrf.mxu0
  %v165 = vadd.f32 0.0, %v164
  %166 = vdwg.mxu0
  %167 = vmatpush.msra.mxu0 %v69
  %168 = vmatpush.msra.mxu0 %v68
  %169 = vmatpush.msra.mxu0 %v67
  %170 = vmatpush.msra.mxu0 %v66
  %171 = vmatpush.msra.mxu0 %v65
  %172 = vmatpush.msra.mxu0 %v64
  %173 = vmatpush.msra.mxu0 %v63
  %174 = vmatpush.msra.mxu0 %v62
  %175 = vmatpush.msra.mxu0 %v61
  %176 = vmatpush.msra.mxu0 %v60
  %177 = vmatpush.msra.mxu0 %v59
  %178 = vmatpush.msra.mxu0 %v58
  %179 = vmatpush.msra.mxu0 %v57
  %180 = vmatpush.msra.mxu0 %v56
  %181 = vmatpush.msra.mxu0 %v55
  %182 = vmatpush.msra.mxu0 %v54
  %183 = vmatmul.f32.gmra.mxu0 %v38
  %v184 = vpop.f32.mrf.mxu0
  %v185 = vadd.f32 %v120, %v184
  %186 = vmatmul.f32.gmra.mxu0 %v39
  %v187 = vpop.f32.mrf.mxu0
  %v188 = vadd.f32 %v123, %v187
  %189 = vmatmul.f32.gmra.mxu0 %v40
  %v190 = vpop.f32.mrf.mxu0
  %v191 = vadd.f32 %v126, %v190
  %192 = vmatmul.f32.gmra.mxu0 %v41
  %v193 = vpop.f32.mrf.mxu0
  %v194 = vadd.f32 %v129, %v193
  %195 = vmatmul.f32.gmra.mxu0 %v42
  %v196 = vpop.f32.mrf.mxu0
  %v197 = vadd.f32 %v132, %v196
  %198 = vmatmul.f32.gmra.mxu0 %v43
  %v199 = vpop.f32.mrf.mxu0
  %v200 = vadd.f32 %v135, %v199
  %201 = vmatmul.f32.gmra.mxu0 %v44
  %v202 = vpop.f32.mrf.mxu0
  %v203 = vadd.f32 %v138, %v202
  %204 = vmatmul.f32.gmra.mxu0 %v45
  %v205 = vpop.f32.mrf.mxu0
  %v206 = vadd.f32 %v141, %v205
  %207 = vmatmul.f32.gmra.mxu0 %v46
  %v208 = vpop.f32.mrf.mxu0
  %v209 = vadd.f32 %v144, %v208
  %210 = vmatmul.f32.gmra.mxu0 %v47
  %v211 = vpop.f32.mrf.mxu0
  %v212 = vadd.f32 %v147, %v211
  %213 = vmatmul.f32.gmra.mxu0 %v48
  %v214 = vpop.f32.mrf.mxu0
  %v215 = vadd.f32 %v150, %v214
  %216 = vmatmul.f32.gmra.mxu0 %v49
  %v217 = vpop.f32.mrf.mxu0
  %v218 = vadd.f32 %v153, %v217
  %219 = vmatmul.f32.gmra.mxu0 %v50
  %v220 = vpop.f32.mrf.mxu0
  %v221 = vadd.f32 %v156, %v220
  %222 = vmatmul.f32.gmra.mxu0 %v51
  %v223 = vpop.f32.mrf.mxu0
  %v224 = vadd.f32 %v159, %v223
  %225 = vmatmul.f32.gmra.mxu0 %v52
  %v226 = vpop.f32.mrf.mxu0
  %v227 = vadd.f32 %v162, %v226
  %228 = vmatmul.f32.gmra.mxu0 %v53
  %v229 = vpop.f32.mrf.mxu0
  %v230 = vadd.f32 %v165, %v229
  %231 = vdwg.mxu0
  %v232 = vld [vmem:[%s2] sm:$0xff]
  %v233 = vld [vmem:[%s2 + $0x8] sm:$0xff]
  %v234 = vld [vmem:[%s2 + $0x10] sm:$0xff]
  %v235 = vld [vmem:[%s2 + $0x18] sm:$0xff]
  %v236 = vld [vmem:[%s2 + $0x20] sm:$0xff]
  %v237 = vld [vmem:[%s2 + $0x28] sm:$0xff]
  %v238 = vld [vmem:[%s2 + $0x30] sm:$0xff]
  %v239 = vld [vmem:[%s2 + $0x38] sm:$0xff]
  %v240 = vld [vmem:[%s2 + $0x40] sm:$0xff]
  %v241 = vld [vmem:[%s2 + $0x48] sm:$0xff]
  %v242 = vld [vmem:[%s2 + $0x50] sm:$0xff]
  %v243 = vld [vmem:[%s2 + $0x58] sm:$0xff]
  %v244 = vld [vmem:[%s2 + $0x60] sm:$0xff]
  %v245 = vld [vmem:[%s2 + $0x68] sm:$0xff]
  %v246 = vld [vmem:[%s2 + $0x70] sm:$0xff]
  %v247 = vld [vmem:[%s2 + $0x78] sm:$0xff]
  %v248 = vld [vmem:[%s6] sm:$0xff]
  %v249 = vld [vmem:[%s6 + $0x8] sm:$0xff]
  %v250 = vld [vmem:[%s6 + $0x10] sm:$0xff]
  %v251 = vld [vmem:[%s6 + $0x18] sm:$0xff]
  %v252 = vld [vmem:[%s6 + $0x20] sm:$0xff]
  %v253 = vld [vmem:[%s6 + $0x28] sm:$0xff]
  %v254 = vld [vmem:[%s6 + $0x30] sm:$0xff]
  %v255 = vld [vmem:[%s6 + $0x38] sm:$0xff]
  %v256 = vld [vmem:[%s6 + $0x40] sm:$0xff]
  %v257 = vld [vmem:[%s6 + $0x48] sm:$0xff]
  %v258 = vld [vmem:[%s6 + $0x50] sm:$0xff]
  %v259 = vld [vmem:[%s6 + $0x58] sm:$0xff]
  %v260 = vld [vmem:[%s6 + $0x60] sm:$0xff]
  %v261 = vld [vmem:[%s6 + $0x68] sm:$0xff]
  %v262 = vld [vmem:[%s6 + $0x70] sm:$0xff]
  %v263 = vld [vmem:[%s6 + $0x78] sm:$0xff]
  %264 = vmatpush.msra.mxu0 %v263
  %265 = vmatpush.msra.mxu0 %v262
  %266 = vmatpush.msra.mxu0 %v261
  %267 = vmatpush.msra.mxu0 %v260
  %268 = vmatpush.msra.mxu0 %v259
  %269 = vmatpush.msra.mxu0 %v258
  %270 = vmatpush.msra.mxu0 %v257
  %271 = vmatpush.msra.mxu0 %v256
  %272 = vmatpush.msra.mxu0 %v255
  %273 = vmatpush.msra.mxu0 %v254
  %274 = vmatpush.msra.mxu0 %v253
  %275 = vmatpush.msra.mxu0 %v252
  %276 = vmatpush.msra.mxu0 %v251
  %277 = vmatpush.msra.mxu0 %v250
  %278 = vmatpush.msra.mxu0 %v249
  %279 = vmatpush.msra.mxu0 %v248
  %280 = vmatmul.f32.gmra.mxu0 %v232
  %v281 = vpop.f32.mrf.mxu0
  %v282 = vadd.f32 0.0, %v281
  %283 = vmatmul.f32.gmra.mxu0 %v233
  %v284 = vpop.f32.mrf.mxu0
  %v285 = vadd.f32 0.0, %v284
  %286 = vmatmul.f32.gmra.mxu0 %v234
  %v287 = vpop.f32.mrf.mxu0
  %v288 = vadd.f32 0.0, %v287
  %289 = vmatmul.f32.gmra.mxu0 %v235
  %v290 = vpop.f32.mrf.mxu0
  %v291 = vadd.f32 0.0, %v290
  %292 = vmatmul.f32.gmra.mxu0 %v236
  %v293 = vpop.f32.mrf.mxu0
  %v294 = vadd.f32 0.0, %v293
  %295 = vmatmul.f32.gmra.mxu0 %v237
  %v296 = vpop.f32.mrf.mxu0
  %v297 = vadd.f32 0.0, %v296
  %298 = vmatmul.f32.gmra.mxu0 %v238
  %v299 = vpop.f32.mrf.mxu0
  %v300 = vadd.f32 0.0, %v299
  %301 = vmatmul.f32.gmra.mxu0 %v239
  %v302 = vpop.f32.mrf.mxu0
  %v303 = vadd.f32 0.0, %v302
  %304 = vmatmul.f32.gmra.mxu0 %v240
  %v305 = vpop.f32.mrf.mxu0
  %v306 = vadd.f32 0.0, %v305
  %307 = vmatmul.f32.gmra.mxu0 %v241
  %v308 = vpop.f32.mrf.mxu0
  %v309 = vadd.f32 0.0, %v308
  %310 = vmatmul.f32.gmra.mxu0 %v242
  %v311 = vpop.f32.mrf.mxu0
  %v312 = vadd.f32 0.0, %v311
  %313 = vmatmul.f32.gmra.mxu0 %v243
  %v314 = vpop.f32.mrf.mxu0
  %v315 = vadd.f32 0.0, %v314
  %316 = vmatmul.f32.gmra.mxu0 %v244
  %v317 = vpop.f32.mrf.mxu0
  %v318 = vadd.f32 0.0, %v317
  %319 = vmatmul.f32.gmra.mxu0 %v245
  %v320 = vpop.f32.mrf.mxu0
  %v321 = vadd.f32 0.0, %v320
  %322 = vmatmul.f32.gmra.mxu0 %v246
  %v323 = vpop.f32.mrf.mxu0
  %v324 = vadd.f32 0.0, %v323
  %325 = vmatmul.f32.gmra.mxu0 %v247
  %v326 = vpop.f32.mrf.mxu0
  %v327 = vadd.f32 0.0, %v326
  %328 = vdwg.mxu0
  %v329 = vadd.f32 %v185, %v282
  %v330 = vadd.f32 %v188, %v285
  %v331 = vadd.f32 %v191, %v288
  %v332 = vadd.f32 %v194, %v291
  %v333 = vadd.f32 %v197, %v294
  %v334 = vadd.f32 %v200, %v297
  %v335 = vadd.f32 %v203, %v300
  %v336 = vadd.f32 %v206, %v303
  %v337 = vadd.f32 %v209, %v306
  %v338 = vadd.f32 %v212, %v309
  %v339 = vadd.f32 %v215, %v312
  %v340 = vadd.f32 %v218, %v315
  %v341 = vadd.f32 %v221, %v318
  %v342 = vadd.f32 %v224, %v321
  %v343 = vadd.f32 %v227, %v324
  %v344 = vadd.f32 %v230, %v327
  %v345 = vld [vmem:[%s3] sm:$0xff]
  %v346 = vld [vmem:[%s3 + $0x8] sm:$0xff]
  %v347 = vld [vmem:[%s3 + $0x10] sm:$0xff]
  %v348 = vld [vmem:[%s3 + $0x18] sm:$0xff]
  %v349 = vld [vmem:[%s3 + $0x20] sm:$0xff]
  %v350 = vld [vmem:[%s3 + $0x28] sm:$0xff]
  %v351 = vld [vmem:[%s3 + $0x30] sm:$0xff]
  %v352 = vld [vmem:[%s3 + $0x38] sm:$0xff]
  %v353 = vld [vmem:[%s3 + $0x40] sm:$0xff]
  %v354 = vld [vmem:[%s3 + $0x48] sm:$0xff]
  %v355 = vld [vmem:[%s3 + $0x50] sm:$0xff]
  %v356 = vld [vmem:[%s3 + $0x58] sm:$0xff]
  %v357 = vld [vmem:[%s3 + $0x60] sm:$0xff]
  %v358 = vld [vmem:[%s3 + $0x68] sm:$0xff]
  %v359 = vld [vmem:[%s3 + $0x70] sm:$0xff]
  %v360 = vld [vmem:[%s3 + $0x78] sm:$0xff]
  %v361 = vld [vmem:[%s7] sm:$0xff]
  %v362 = vld [vmem:[%s7 + $0x8] sm:$0xff]
  %v363 = vld [vmem:[%s7 + $0x10] sm:$0xff]
  %v364 = vld [vmem:[%s7 + $0x18] sm:$0xff]
  %v365 = vld [vmem:[%s7 + $0x20] sm:$0xff]
  %v366 = vld [vmem:[%s7 + $0x28] sm:$0xff]
  %v367 = vld [vmem:[%s7 + $0x30] sm:$0xff]
  %v368 = vld [vmem:[%s7 + $0x38] sm:$0xff]
  %v369 = vld [vmem:[%s7 + $0x40] sm:$0xff]
  %v370 = vld [vmem:[%s7 + $0x48] sm:$0xff]
  %v371 = vld [vmem:[%s7 + $0x50] sm:$0xff]
  %v372 = vld [vmem:[%s7 + $0x58] sm:$0xff]
  %v373 = vld [vmem:[%s7 + $0x60] sm:$0xff]
  %v374 = vld [vmem:[%s7 + $0x68] sm:$0xff]
  %v375 = vld [vmem:[%s7 + $0x70] sm:$0xff]
  %v376 = vld [vmem:[%s7 + $0x78] sm:$0xff]
  %377 = vmatpush.msra.mxu0 %v376
  %378 = vmatpush.msra.mxu0 %v375
  %379 = vmatpush.msra.mxu0 %v374
  %380 = vmatpush.msra.mxu0 %v373
  %381 = vmatpush.msra.mxu0 %v372
  %382 = vmatpush.msra.mxu0 %v371
  %383 = vmatpush.msra.mxu0 %v370
  %384 = vmatpush.msra.mxu0 %v369
  %385 = vmatpush.msra.mxu0 %v368
  %386 = vmatpush.msra.mxu0 %v367
  %387 = vmatpush.msra.mxu0 %v366
  %388 = vmatpush.msra.mxu0 %v365
  %389 = vmatpush.msra.mxu0 %v364
  %390 = vmatpush.msra.mxu0 %v363
  %391 = vmatpush.msra.mxu0 %v362
  %392 = vmatpush.msra.mxu0 %v361
  %393 = vmatmul.f32.gmra.mxu0 %v345
  %v394 = vpop.f32.mrf.mxu0
  %v395 = vadd.f32 0.0, %v394
  %396 = vmatmul.f32.gmra.mxu0 %v346
  %v397 = vpop.f32.mrf.mxu0
  %v398 = vadd.f32 0.0, %v397
  %399 = vmatmul.f32.gmra.mxu0 %v347
  %v400 = vpop.f32.mrf.mxu0
  %v401 = vadd.f32 0.0, %v400
  %402 = vmatmul.f32.gmra.mxu0 %v348
  %v403 = vpop.f32.mrf.mxu0
  %v404 = vadd.f32 0.0, %v403
  %405 = vmatmul.f32.gmra.mxu0 %v349
  %v406 = vpop.f32.mrf.mxu0
  %v407 = vadd.f32 0.0, %v406
  %408 = vmatmul.f32.gmra.mxu0 %v350
  %v409 = vpop.f32.mrf.mxu0
  %v410 = vadd.f32 0.0, %v409
  %411 = vmatmul.f32.gmra.mxu0 %v351
  %v412 = vpop.f32.mrf.mxu0
  %v413 = vadd.f32 0.0, %v412
  %414 = vmatmul.f32.gmra.mxu0 %v352
  %v415 = vpop.f32.mrf.mxu0
  %v416 = vadd.f32 0.0, %v415
  %417 = vmatmul.f32.gmra.mxu0 %v353
  %v418 = vpop.f32.mrf.mxu0
  %v419 = vadd.f32 0.0, %v418
  %420 = vmatmul.f32.gmra.mxu0 %v354
  %v421 = vpop.f32.mrf.mxu0
  %v422 = vadd.f32 0.0, %v421
  %423 = vmatmul.f32.gmra.mxu0 %v355
  %v424 = vpop.f32.mrf.mxu0
  %v425 = vadd.f32 0.0, %v424
  %426 = vmatmul.f32.gmra.mxu0 %v356
  %v427 = vpop.f32.mrf.mxu0
  %v428 = vadd.f32 0.0, %v427
  %429 = vmatmul.f32.gmra.mxu0 %v357
  %v430 = vpop.f32.mrf.mxu0
  %v431 = vadd.f32 0.0, %v430
  %432 = vmatmul.f32.gmra.mxu0 %v358
  %v433 = vpop.f32.mrf.mxu0
  %v434 = vadd.f32 0.0, %v433
  %435 = vmatmul.f32.gmra.mxu0 %v359
  %v436 = vpop.f32.mrf.mxu0
  %v437 = vadd.f32 0.0, %v436
  %438 = vmatmul.f32.gmra.mxu0 %v360
  %v439 = vpop.f32.mrf.mxu0
  %v440 = vadd.f32 0.0, %v439
  %441 = vdwg.mxu0
  %v442 = vadd.f32 %v329, %v395
  %v443 = vadd.f32 %v330, %v398
  %v444 = vadd.f32 %v331, %v401
  %v445 = vadd.f32 %v332, %v404
  %v446 = vadd.f32 %v333, %v407
  %v447 = vadd.f32 %v334, %v410
  %v448 = vadd.f32 %v335, %v413
  %v449 = vadd.f32 %v336, %v416
  %v450 = vadd.f32 %v337, %v419
  %v451 = vadd.f32 %v338, %v422
  %v452 = vadd.f32 %v339, %v425
  %v453 = vadd.f32 %v340, %v428
  %v454 = vadd.f32 %v341, %v431
  %v455 = vadd.f32 %v342, %v434
  %v456 = vadd.f32 %v343, %v437
  %v457 = vadd.f32 %v344, %v440
  %v458 = vld [vmem:[%s8] sm:$0x1]
  %v460 = vperm.slane %v458, 0
  %v462 = vadd.f32 %v442, %v460
  %v463 = vadd.f32 %v443, %v460
  %v464 = vadd.f32 %v444, %v460
  %v465 = vadd.f32 %v445, %v460
  %v466 = vadd.f32 %v446, %v460
  %v467 = vadd.f32 %v447, %v460
  %v468 = vadd.f32 %v448, %v460
  %v469 = vadd.f32 %v449, %v460
  %v470 = vadd.f32 %v450, %v460
  %v471 = vadd.f32 %v451, %v460
  %v472 = vadd.f32 %v452, %v460
  %v473 = vadd.f32 %v453, %v460
  %v474 = vadd.f32 %v454, %v460
  %v475 = vadd.f32 %v455, %v460
  %v476 = vadd.f32 %v456, %v460
  %v477 = vadd.f32 %v457, %v460
  %v478 = vmax.f32 %v462, 0.0
  %v479 = vmax.f32 %v463, 0.0
  %v480 = vmax.f32 %v464, 0.0
  %v481 = vmax.f32 %v465, 0.0
  %v482 = vmax.f32 %v466, 0.0
  %v483 = vmax.f32 %v467, 0.0
  %v484 = vmax.f32 %v468, 0.0
  %v485 = vmax.f32 %v469, 0.0
  %v486 = vmax.f32 %v470, 0.0
  %v487 = vmax.f32 %v471, 0.0
  %v488 = vmax.f32 %v472, 0.0
  %v489 = vmax.f32 %v473, 0.0
  %v490 = vmax.f32 %v474, 0.0
  %v491 = vmax.f32 %v475, 0.0
  %v492 = vmax.f32 %v476, 0.0
  %v493 = vmax.f32 %v477, 0.0
  %v494 = vld [vmem:[%s9] sm:$0xff]
  %v495 = vld [vmem:[%s9 + $0x8] sm:$0xff]
  %v496 = vld [vmem:[%s9 + $0x10] sm:$0xff]
  %v497 = vld [vmem:[%s9 + $0x18] sm:$0xff]
  %v498 = vld [vmem:[%s9 + $0x20] sm:$0xff]
  %v499 = vld [vmem:[%s9 + $0x28] sm:$0xff]
  %v500 = vld [vmem:[%s9 + $0x30] sm:$0xff]
  %v501 = vld [vmem:[%s9 + $0x38] sm:$0xff]
  %v502 = vld [vmem:[%s9 + $0x40] sm:$0xff]
  %v503 = vld [vmem:[%s9 + $0x48] sm:$0xff]
  %v504 = vld [vmem:[%s9 + $0x50] sm:$0xff]
  %v505 = vld [vmem:[%s9 + $0x58] sm:$0xff]
  %v506 = vld [vmem:[%s9 + $0x60] sm:$0xff]
  %v507 = vld [vmem:[%s9 + $0x68] sm:$0xff]
  %v508 = vld [vmem:[%s9 + $0x70] sm:$0xff]
  %v509 = vld [vmem:[%s9 + $0x78] sm:$0xff]
  %v510 = vld [vmem:[%s10] sm:$0x1]
  %v512 = vperm.slane %v510, 0
  %514 = vmatpush.msra.mxu0 %v509
  %515 = vmatpush.msra.mxu0 %v508
  %516 = vmatpush.msra.mxu0 %v507
  %517 = vmatpush.msra.mxu0 %v506
  %518 = vmatpush.msra.mxu0 %v505
  %519 = vmatpush.msra.mxu0 %v504
  %520 = vmatpush.msra.mxu0 %v503
  %521 = vmatpush.msra.mxu0 %v502
  %522 = vmatpush.msra.mxu0 %v501
  %523 = vmatpush.msra.mxu0 %v500
  %524 = vmatpush.msra.mxu0 %v499
  %525 = vmatpush.msra.mxu0 %v498
  %526 = vmatpush.msra.mxu0 %v497
  %527 = vmatpush.msra.mxu0 %v496
  %528 = vmatpush.msra.mxu0 %v495
  %529 = vmatpush.msra.mxu0 %v494
  %530 = vmatmul.f32.gmra.mxu0 %v478
  %v531 = vpop.f32.mrf.mxu0
  %v532 = vadd.f32 %v512, %v531
  %533 = vmatmul.f32.gmra.mxu0 %v479
  %v534 = vpop.f32.mrf.mxu0
  %v535 = vadd.f32 %v512, %v534
  %536 = vmatmul.f32.gmra.mxu0 %v480
  %v537 = vpop.f32.mrf.mxu0
  %v538 = vadd.f32 %v512, %v537
  %539 = vmatmul.f32.gmra.mxu0 %v481
  %v540 = vpop.f32.mrf.mxu0
  %v541 = vadd.f32 %v512, %v540
  %542 = vmatmul.f32.gmra.mxu0 %v482
  %v543 = vpop.f32.mrf.mxu0
  %v544 = vadd.f32 %v512, %v543
  %545 = vmatmul.f32.gmra.mxu0 %v483
  %v546 = vpop.f32.mrf.mxu0
  %v547 = vadd.f32 %v512, %v546
  %548 = vmatmul.f32.gmra.mxu0 %v484
  %v549 = vpop.f32.mrf.mxu0
  %v550 = vadd.f32 %v512, %v549
  %551 = vmatmul.f32.gmra.mxu0 %v485
  %v552 = vpop.f32.mrf.mxu0
  %v553 = vadd.f32 %v512, %v552
  %554 = vmatmul.f32.gmra.mxu0 %v486
  %v555 = vpop.f32.mrf.mxu0
  %v556 = vadd.f32 %v512, %v555
  %557 = vmatmul.f32.gmra.mxu0 %v487
  %v558 = vpop.f32.mrf.mxu0
  %v559 = vadd.f32 %v512, %v558
  %560 = vmatmul.f32.gmra.mxu0 %v488
  %v561 = vpop.f32.mrf.mxu0
  %v562 = vadd.f32 %v512, %v561
  %563 = vmatmul.f32.gmra.mxu0 %v489
  %v564 = vpop.f32.mrf.mxu0
  %v565 = vadd.f32 %v512, %v564
  %566 = vmatmul.f32.gmra.mxu0 %v490
  %v567 = vpop.f32.mrf.mxu0
  %v568 = vadd.f32 %v512, %v567
  %569 = vmatmul.f32.gmra.mxu0 %v491
  %v570 = vpop.f32.mrf.mxu0
  %v571 = vadd.f32 %v512, %v570
  %572 = vmatmul.f32.gmra.mxu0 %v492
  %v573 = vpop.f32.mrf.mxu0
  %v574 = vadd.f32 %v512, %v573
  %575 = vmatmul.f32.gmra.mxu0 %v493
  %v576 = vpop.f32.mrf.mxu0
  %v577 = vadd.f32 %v512, %v576
  %578 = vdwg.mxu0
  %579 = vst [vmem:[%s11] sm:$0xff] %v532
  %580 = vst [vmem:[%s11 + $0x8] sm:$0xff] %v535
  %581 = vst [vmem:[%s11 + $0x10] sm:$0xff] %v538
  %582 = vst [vmem:[%s11 + $0x18] sm:$0xff] %v541
  %583 = vst [vmem:[%s11 + $0x20] sm:$0xff] %v544
  %584 = vst [vmem:[%s11 + $0x28] sm:$0xff] %v547
  %585 = vst [vmem:[%s11 + $0x30] sm:$0xff] %v550
  %586 = vst [vmem:[%s11 + $0x38] sm:$0xff] %v553
  %587 = vst [vmem:[%s11 + $0x40] sm:$0xff] %v556
  %588 = vst [vmem:[%s11 + $0x48] sm:$0xff] %v559
  %589 = vst [vmem:[%s11 + $0x50] sm:$0xff] %v562
  %590 = vst [vmem:[%s11 + $0x58] sm:$0xff] %v565
  %591 = vst [vmem:[%s11 + $0x60] sm:$0xff] %v568
  %592 = vst [vmem:[%s11 + $0x68] sm:$0xff] %v571
  %593 = vst [vmem:[%s11 + $0x70] sm:$0xff] %v574
  %594 = vst [vmem:[%s11 + $0x78] sm:$0xff] %v577
  // Predicated region
  $region46: #{conditional_graph_network.11} parent=0 // pred_check
    _
  $region47: #{conditional_graph_network.11} parent=0 // pred_check_branch
    %596 = sbr.rel (0) target = $region49
  $region48: #{conditional_graph_network.11} parent=0 // pred_region
    _
  $region49: #{conditional_graph_network.11} parent=0 // pred_fallthru
    _
  // Predicated region
  $region50: #{conditional_graph_network.11} parent=0 // pred_check
    _
  $region51: #{conditional_graph_network.11} parent=0 // pred_check_branch
    %598 = sbr.rel (0) target = $region53
  $region52: #{conditional_graph_network.11} parent=0 // pred_region
    _
  $region53: #{conditional_graph_network.11} parent=0 // pred_fallthru
    _

// kernel: conditional_graph_network.15
$region0: #{conditional_graph_network.15}
  #allocation0 [shape = 'u32[]', space=smem, size = 0x4, offset = 0x4, fixed_abs, tag = 'smem constant byte address 0x4 - core index']
  #allocation1 [shape = 'u32[72,128]{1,0:T(1,128)}', space=vmem, size = 0x9000, scoped, tag = 'internal scratch']
  %s0 = inlined_call_operand.vmem [shape: f32[64,128], index: 0, kind: input, shape index: {}]
  %s1 = inlined_call_operand.vmem [shape: f32[128,128], index: 1, kind: input, shape index: {}]
  %s2 = inlined_call_operand.vmem [shape: f32[1,128], index: 2, kind: input, shape index: {}]
  %s3 = inlined_call_operand.vmem [shape: f32[128,128], index: 3, kind: input, shape index: {}]
  %s4 = inlined_call_operand.vmem [shape: f32[1,128], index: 4, kind: input, shape index: {}]
  %s5 = inlined_call_operand.vmem [shape: f32[64,128], index: 5, kind: output, shape index: {}]
  %s6 = sld [smem:[#allocation0]]
  $region30: #{conditional_graph_network.15} parent=0
    _
  %s8 = ssub.s32 1, %s6
  %s9 = scalar_select 0, %s8, %s6
  // Predicated region
  $region2: #{conditional_graph_network.15} parent=0 // pred_check
    _
  $region3: #{conditional_graph_network.15} parent=0 // pred_check_branch
    %11 = sbr.rel (0) target = $region5
  $region4: #{conditional_graph_network.15} parent=0 // pred_region
    _
  $region5: #{conditional_graph_network.15} parent=0 // pred_fallthru
    _
  // Predicated region
  $region6: #{conditional_graph_network.15} parent=0 // pred_check
    _
  $region7: #{conditional_graph_network.15} parent=0 // pred_check_branch
    %13 = sbr.rel (0) target = $region9
  $region8: #{conditional_graph_network.15} parent=0 // pred_region
    _
  $region9: #{conditional_graph_network.15} parent=0 // pred_fallthru
    _
  // Predicated region
  $region10: #{conditional_graph_network.15} parent=0 // pred_check
    _
  $region11: #{conditional_graph_network.15} parent=0 // pred_check_branch
    %15 = sbr.rel (0) target = $region13
  $region12: #{conditional_graph_network.15} parent=0 // pred_region
    _
  $region13: #{conditional_graph_network.15} parent=0 // pred_fallthru
    _
  // Predicated region
  $region14: #{conditional_graph_network.15} parent=0 // pred_check
    _
  $region15: #{conditional_graph_network.15} parent=0 // pred_check_branch
    %17 = sbr.rel (0) target = $region17
  $region16: #{conditional_graph_network.15} parent=0 // pred_region
    _
  $region17: #{conditional_graph_network.15} parent=0 // pred_fallthru
    _
  // Predicated region
  $region18: #{conditional_graph_network.15} parent=0 // pred_check
    _
  $region19: #{conditional_graph_network.15} parent=0 // pred_check_branch
    %19 = sbr.rel (0) target = $region21
  $region20: #{conditional_graph_network.15} parent=0 // pred_region
    _
  $region21: #{conditional_graph_network.15} parent=0 // pred_fallthru
    _
  %v20 = vld [vmem:[%s0] sm:$0xff]
  %v21 = vld [vmem:[%s0 + $0x8] sm:$0xff]
  %v22 = vld [vmem:[%s0 + $0x10] sm:$0xff]
  %v23 = vld [vmem:[%s0 + $0x18] sm:$0xff]
  %v24 = vld [vmem:[%s0 + $0x20] sm:$0xff]
  %v25 = vld [vmem:[%s0 + $0x28] sm:$0xff]
  %v26 = vld [vmem:[%s0 + $0x30] sm:$0xff]
  %v27 = vld [vmem:[%s0 + $0x38] sm:$0xff]
  %v28 = vld [vmem:[%s1] sm:$0xff]
  %v29 = vld [vmem:[%s1 + $0x8] sm:$0xff]
  %v30 = vld [vmem:[%s1 + $0x10] sm:$0xff]
  %v31 = vld [vmem:[%s1 + $0x18] sm:$0xff]
  %v32 = vld [vmem:[%s1 + $0x20] sm:$0xff]
  %v33 = vld [vmem:[%s1 + $0x28] sm:$0xff]
  %v34 = vld [vmem:[%s1 + $0x30] sm:$0xff]
  %v35 = vld [vmem:[%s1 + $0x38] sm:$0xff]
  %v36 = vld [vmem:[%s1 + $0x40] sm:$0xff]
  %v37 = vld [vmem:[%s1 + $0x48] sm:$0xff]
  %v38 = vld [vmem:[%s1 + $0x50] sm:$0xff]
  %v39 = vld [vmem:[%s1 + $0x58] sm:$0xff]
  %v40 = vld [vmem:[%s1 + $0x60] sm:$0xff]
  %v41 = vld [vmem:[%s1 + $0x68] sm:$0xff]
  %v42 = vld [vmem:[%s1 + $0x70] sm:$0xff]
  %v43 = vld [vmem:[%s1 + $0x78] sm:$0xff]
  %v44 = vld [vmem:[%s2] sm:$0x1]
  %v46 = vperm.slane %v44, 0
  %48 = vmatpush.msra.mxu0 %v43
  %49 = vmatpush.msra.mxu0 %v42
  %50 = vmatpush.msra.mxu0 %v41
  %51 = vmatpush.msra.mxu0 %v40
  %52 = vmatpush.msra.mxu0 %v39
  %53 = vmatpush.msra.mxu0 %v38
  %54 = vmatpush.msra.mxu0 %v37
  %55 = vmatpush.msra.mxu0 %v36
  %56 = vmatpush.msra.mxu0 %v35
  %57 = vmatpush.msra.mxu0 %v34
  %58 = vmatpush.msra.mxu0 %v33
  %59 = vmatpush.msra.mxu0 %v32
  %60 = vmatpush.msra.mxu0 %v31
  %61 = vmatpush.msra.mxu0 %v30
  %62 = vmatpush.msra.mxu0 %v29
  %63 = vmatpush.msra.mxu0 %v28
  %64 = vmatmul.f32.gmra.mxu0 %v20
  %v65 = vpop.f32.mrf.mxu0
  %v66 = vadd.f32 %v46, %v65
  %67 = vmatmul.f32.gmra.mxu0 %v21
  %v68 = vpop.f32.mrf.mxu0
  %v69 = vadd.f32 %v46, %v68
  %70 = vmatmul.f32.gmra.mxu0 %v22
  %v71 = vpop.f32.mrf.mxu0
  %v72 = vadd.f32 %v46, %v71
  %73 = vmatmul.f32.gmra.mxu0 %v23
  %v74 = vpop.f32.mrf.mxu0
  %v75 = vadd.f32 %v46, %v74
  %76 = vmatmul.f32.gmra.mxu0 %v24
  %v77 = vpop.f32.mrf.mxu0
  %v78 = vadd.f32 %v46, %v77
  %79 = vmatmul.f32.gmra.mxu0 %v25
  %v80 = vpop.f32.mrf.mxu0
  %v81 = vadd.f32 %v46, %v80
  %82 = vmatmul.f32.gmra.mxu0 %v26
  %v83 = vpop.f32.mrf.mxu0
  %v84 = vadd.f32 %v46, %v83
  %85 = vmatmul.f32.gmra.mxu0 %v27
  %v86 = vpop.f32.mrf.mxu0
  %v87 = vadd.f32 %v46, %v86
  %88 = vdwg.mxu0
  %v89 = vmax.f32 %v66, 0.0
  %v90 = vmax.f32 %v69, 0.0
  %v91 = vmax.f32 %v72, 0.0
  %v92 = vmax.f32 %v75, 0.0
  %v93 = vmax.f32 %v78, 0.0
  %v94 = vmax.f32 %v81, 0.0
  %v95 = vmax.f32 %v84, 0.0
  %v96 = vmax.f32 %v87, 0.0
  %v97 = vld [vmem:[%s3] sm:$0xff]
  %v98 = vld [vmem:[%s3 + $0x8] sm:$0xff]
  %v99 = vld [vmem:[%s3 + $0x10] sm:$0xff]
  %v100 = vld [vmem:[%s3 + $0x18] sm:$0xff]
  %v101 = vld [vmem:[%s3 + $0x20] sm:$0xff]
  %v102 = vld [vmem:[%s3 + $0x28] sm:$0xff]
  %v103 = vld [vmem:[%s3 + $0x30] sm:$0xff]
  %v104 = vld [vmem:[%s3 + $0x38] sm:$0xff]
  %v105 = vld [vmem:[%s3 + $0x40] sm:$0xff]
  %v106 = vld [vmem:[%s3 + $0x48] sm:$0xff]
  %v107 = vld [vmem:[%s3 + $0x50] sm:$0xff]
  %v108 = vld [vmem:[%s3 + $0x58] sm:$0xff]
  %v109 = vld [vmem:[%s3 + $0x60] sm:$0xff]
  %v110 = vld [vmem:[%s3 + $0x68] sm:$0xff]
  %v111 = vld [vmem:[%s3 + $0x70] sm:$0xff]
  %v112 = vld [vmem:[%s3 + $0x78] sm:$0xff]
  %v113 = vld [vmem:[%s4] sm:$0x1]
  %v115 = vperm.slane %v113, 0
  %117 = vmatpush.msra.mxu0 %v112
  %118 = vmatpush.msra.mxu0 %v111
  %119 = vmatpush.msra.mxu0 %v110
  %120 = vmatpush.msra.mxu0 %v109
  %121 = vmatpush.msra.mxu0 %v108
  %122 = vmatpush.msra.mxu0 %v107
  %123 = vmatpush.msra.mxu0 %v106
  %124 = vmatpush.msra.mxu0 %v105
  %125 = vmatpush.msra.mxu0 %v104
  %126 = vmatpush.msra.mxu0 %v103
  %127 = vmatpush.msra.mxu0 %v102
  %128 = vmatpush.msra.mxu0 %v101
  %129 = vmatpush.msra.mxu0 %v100
  %130 = vmatpush.msra.mxu0 %v99
  %131 = vmatpush.msra.mxu0 %v98
  %132 = vmatpush.msra.mxu0 %v97
  %133 = vmatmul.f32.gmra.mxu0 %v89
  %v134 = vpop.f32.mrf.mxu0
  %v135 = vadd.f32 %v115, %v134
  %136 = vmatmul.f32.gmra.mxu0 %v90
  %v137 = vpop.f32.mrf.mxu0
  %v138 = vadd.f32 %v115, %v137
  %139 = vmatmul.f32.gmra.mxu0 %v91
  %v140 = vpop.f32.mrf.mxu0
  %v141 = vadd.f32 %v115, %v140
  %142 = vmatmul.f32.gmra.mxu0 %v92
  %v143 = vpop.f32.mrf.mxu0
  %v144 = vadd.f32 %v115, %v143
  %145 = vmatmul.f32.gmra.mxu0 %v93
  %v146 = vpop.f32.mrf.mxu0
  %v147 = vadd.f32 %v115, %v146
  %148 = vmatmul.f32.gmra.mxu0 %v94
  %v149 = vpop.f32.mrf.mxu0
  %v150 = vadd.f32 %v115, %v149
  %151 = vmatmul.f32.gmra.mxu0 %v95
  %v152 = vpop.f32.mrf.mxu0
  %v153 = vadd.f32 %v115, %v152
  %154 = vmatmul.f32.gmra.mxu0 %v96
  %v155 = vpop.f32.mrf.mxu0
  %v156 = vadd.f32 %v115, %v155
  %157 = vdwg.mxu0
  %158 = vst [vmem:[%s5] sm:$0xff] %v135
  %159 = vst [vmem:[%s5 + $0x8] sm:$0xff] %v138
  %160 = vst [vmem:[%s5 + $0x10] sm:$0xff] %v141
  %161 = vst [vmem:[%s5 + $0x18] sm:$0xff] %v144
  %162 = vst [vmem:[%s5 + $0x20] sm:$0xff] %v147
  %163 = vst [vmem:[%s5 + $0x28] sm:$0xff] %v150
  %164 = vst [vmem:[%s5 + $0x30] sm:$0xff] %v153
  %165 = vst [vmem:[%s5 + $0x38] sm:$0xff] %v156
  // Predicated region
  $region22: #{conditional_graph_network.15} parent=0 // pred_check
    _
  $region23: #{conditional_graph_network.15} parent=0 // pred_check_branch
    %167 = sbr.rel (0) target = $region25
  $region24: #{conditional_graph_network.15} parent=0 // pred_region
    _
  $region25: #{conditional_graph_network.15} parent=0 // pred_fallthru
    _
  // Predicated region
  $region26: #{conditional_graph_network.15} parent=0 // pred_check
    _
  $region27: #{conditional_graph_network.15} parent=0 // pred_check_branch
    %169 = sbr.rel (0) target = $region29
  $region28: #{conditional_graph_network.15} parent=0 // pred_region
    _
  $region29: #{conditional_graph_network.15} parent=0 // pred_fallthru
    _

// kernel: conditional_graph_network.12
$region0: #{conditional_graph_network.12}
  #allocation0 [shape = 'u32[]', space=smem, size = 0x4, offset = 0x4, fixed_abs, tag = 'smem constant byte address 0x4 - core index']
  #allocation1 [shape = 'u32[72,128]{1,0:T(1,128)}', space=vmem, size = 0x9000, scoped, tag = 'internal scratch']
  #allocation2 [shape = 'f32[64,128]{1,0:T(8,128)}', space=vmem, size = 0x8000, scoped, tag = 'scratch operand']
  #allocation3 [shape = 'f32[64,1]{1,0:T(8,128)}', space=vmem, size = 0x8000, scoped, tag = 'scratch operand']
  %s0 = inlined_call_operand.vmem [shape: s32[1,128], index: 0, kind: input, shape index: {}]
  %s1 = inlined_call_operand.vmem [shape: f32[128,128], index: 1, kind: input, shape index: {}]
  %s2 = inlined_call_operand.vmem [shape: f32[64,128], index: 2, kind: input, shape index: {}]
  %s3 = inlined_call_operand.vmem [shape: f32[64,128], index: 3, kind: input, shape index: {}]
  %s4 = inlined_call_operand.vmem [shape: f32[128,128], index: 4, kind: input, shape index: {}]
  %s5 = inlined_call_operand.vmem [shape: f32[128,128], index: 5, kind: input, shape index: {}]
  %s6 = inlined_call_operand.vmem [shape: f32[128,128], index: 6, kind: input, shape index: {}]
  %s7 = inlined_call_operand.vmem [shape: f32[1,128], index: 7, kind: input, shape index: {}]
  %s8 = inlined_call_operand.vmem [shape: f32[128,128], index: 8, kind: input, shape index: {}]
  %s9 = inlined_call_operand.vmem [shape: f32[1,128], index: 9, kind: input, shape index: {}]
  %s10 = inlined_call_operand.vmem [shape: f32[64,128], index: 10, kind: output, shape index: {}]
  %s11 = sld [smem:[#allocation0]]
  $region58: #{conditional_graph_network.12} parent=0
    _
  %s13 = ssub.s32 1, %s11
  %s14 = scalar_select 0, %s13, %s11
  // Predicated region
  $region2: #{conditional_graph_network.12} parent=0 // pred_check
    _
  $region3: #{conditional_graph_network.12} parent=0 // pred_check_branch
    %16 = sbr.rel (0) target = $region5
  $region4: #{conditional_graph_network.12} parent=0 // pred_region
    _
  $region5: #{conditional_graph_network.12} parent=0 // pred_fallthru
    _
  // Predicated region
  $region6: #{conditional_graph_network.12} parent=0 // pred_check
    _
  $region7: #{conditional_graph_network.12} parent=0 // pred_check_branch
    %18 = sbr.rel (0) target = $region9
  $region8: #{conditional_graph_network.12} parent=0 // pred_region
    _
  $region9: #{conditional_graph_network.12} parent=0 // pred_fallthru
    _
  // Predicated region
  $region10: #{conditional_graph_network.12} parent=0 // pred_check
    _
  $region11: #{conditional_graph_network.12} parent=0 // pred_check_branch
    %20 = sbr.rel (0) target = $region13
  $region12: #{conditional_graph_network.12} parent=0 // pred_region
    _
  $region13: #{conditional_graph_network.12} parent=0 // pred_fallthru
    _
  // Predicated region
  $region14: #{conditional_graph_network.12} parent=0 // pred_check
    _
  $region15: #{conditional_graph_network.12} parent=0 // pred_check_branch
    %22 = sbr.rel (0) target = $region17
  $region16: #{conditional_graph_network.12} parent=0 // pred_region
    _
  $region17: #{conditional_graph_network.12} parent=0 // pred_fallthru
    _
  // Predicated region
  $region18: #{conditional_graph_network.12} parent=0 // pred_check
    _
  $region19: #{conditional_graph_network.12} parent=0 // pred_check_branch
    %24 = sbr.rel (0) target = $region21
  $region20: #{conditional_graph_network.12} parent=0 // pred_region
    _
  $region21: #{conditional_graph_network.12} parent=0 // pred_fallthru
    _
  // Predicated region
  $region22: #{conditional_graph_network.12} parent=0 // pred_check
    _
  $region23: #{conditional_graph_network.12} parent=0 // pred_check_branch
    %26 = sbr.rel (0) target = $region25
  $region24: #{conditional_graph_network.12} parent=0 // pred_region
    _
  $region25: #{conditional_graph_network.12} parent=0 // pred_fallthru
    _
  // Predicated region
  $region26: #{conditional_graph_network.12} parent=0 // pred_check
    _
  $region27: #{conditional_graph_network.12} parent=0 // pred_check_branch
    %28 = sbr.rel (0) target = $region29
  $region28: #{conditional_graph_network.12} parent=0 // pred_region
    _
  $region29: #{conditional_graph_network.12} parent=0 // pred_fallthru
    _
  // Predicated region
  $region30: #{conditional_graph_network.12} parent=0 // pred_check
    _
  $region31: #{conditional_graph_network.12} parent=0 // pred_check_branch
    %30 = sbr.rel (0) target = $region33
  $region32: #{conditional_graph_network.12} parent=0 // pred_region
    _
  $region33: #{conditional_graph_network.12} parent=0 // pred_fallthru
    _
  // Predicated region
  $region34: #{conditional_graph_network.12} parent=0 // pred_check
    _
  $region35: #{conditional_graph_network.12} parent=0 // pred_check_branch
    %32 = sbr.rel (0) target = $region37
  $region36: #{conditional_graph_network.12} parent=0 // pred_region
    _
  $region37: #{conditional_graph_network.12} parent=0 // pred_fallthru
    _
  // Predicated region
  $region38: #{conditional_graph_network.12} parent=0 // pred_check
    _
  $region39: #{conditional_graph_network.12} parent=0 // pred_check_branch
    %34 = sbr.rel (0) target = $region41
  $region40: #{conditional_graph_network.12} parent=0 // pred_region
    _
  $region41: #{conditional_graph_network.12} parent=0 // pred_fallthru
    _
  %p35 = scmp.eq.s32.totalorder 0, 0
  // Predicated region
  $region42: #{conditional_graph_network.12} parent=0 // pred_check
    %p36 = pneg %p35
  $region43: #{conditional_graph_network.12} parent=0 // pred_check_branch
    %38 = sbr.rel (%p36) target = $region45
  $region44: #{conditional_graph_network.12} parent=0 // pred_region
    %39 = vst [vmem:[#allocation2] sm:$0xff] 0.0
    %40 = vst [vmem:[#allocation2 + $0x8] sm:$0xff] 0.0
    %41 = vst [vmem:[#allocation2 + $0x10] sm:$0xff] 0.0
    %42 = vst [vmem:[#allocation2 + $0x18] sm:$0xff] 0.0
    %43 = vst [vmem:[#allocation2 + $0x20] sm:$0xff] 0.0
    %44 = vst [vmem:[#allocation2 + $0x28] sm:$0xff] 0.0
    %45 = vst [vmem:[#allocation2 + $0x30] sm:$0xff] 0.0
    %46 = vst [vmem:[#allocation2 + $0x38] sm:$0xff] 0.0
    %vm47 = vcmask 7168
    %48 = vst.msk [vmem:[#allocation3] sm:$0xff] %vm47, 0.0
    %49 = vst.msk [vmem:[#allocation3 + $0x8] sm:$0xff] %vm47, 0.0
    %50 = vst.msk [vmem:[#allocation3 + $0x10] sm:$0xff] %vm47, 0.0
    %51 = vst.msk [vmem:[#allocation3 + $0x18] sm:$0xff] %vm47, 0.0
    %52 = vst.msk [vmem:[#allocation3 + $0x20] sm:$0xff] %vm47, 0.0
    %53 = vst.msk [vmem:[#allocation3 + $0x28] sm:$0xff] %vm47, 0.0
    %54 = vst.msk [vmem:[#allocation3 + $0x30] sm:$0xff] %vm47, 0.0
    %55 = vst.msk [vmem:[#allocation3 + $0x38] sm:$0xff] %vm47, 0.0
  $region45: #{conditional_graph_network.12} parent=0 // pred_fallthru
    _
  %v56 = vld [vmem:[%s0] sm:$0x1]
  %v57 = vlaneseq
  %v58 = vshrl.u32 %v57, 7
  %v59 = vadd.s32 %v58, 8
  %v60 = vadd.s32 %v58, 16
  %v61 = vadd.s32 %v58, 24
  %v62 = vadd.s32 %v58, 32
  %v63 = vadd.s32 %v58, 40
  %v64 = vadd.s32 %v58, 48
  %v65 = vadd.s32 %v58, 56
  %s66 = smul.u32 0, 64
  %v67 = vstv %s66
  %v68 = vadd.s32 %v58, %v67
  %v69 = vadd.s32 %v59, %v67
  %v70 = vadd.s32 %v60, %v67
  %v71 = vadd.s32 %v61, %v67
  %v72 = vadd.s32 %v62, %v67
  %v73 = vadd.s32 %v63, %v67
  %v74 = vadd.s32 %v64, %v67
  %v75 = vadd.s32 %v65, %v67
  %v76 = vperm.slane %v56, 0
  %vm77 = vcmp.eq.s32.totalorder %v68, %v76
  %vm78 = vcmp.eq.s32.totalorder %v69, %v76
  %vm79 = vcmp.eq.s32.totalorder %v70, %v76
  %vm80 = vcmp.eq.s32.totalorder %v71, %v76
  %vm81 = vcmp.eq.s32.totalorder %v72, %v76
  %vm82 = vcmp.eq.s32.totalorder %v73, %v76
  %vm83 = vcmp.eq.s32.totalorder %v74, %v76
  %vm84 = vcmp.eq.s32.totalorder %v75, %v76
  %v85 = vsel %vm77, 1, 0
  %v86 = vsel %vm78, 1, 0
  %v87 = vsel %vm79, 1, 0
  %v88 = vsel %vm80, 1, 0
  %v89 = vsel %vm81, 1, 0
  %v90 = vsel %vm82, 1, 0
  %v91 = vsel %vm83, 1, 0
  %v92 = vsel %vm84, 1, 0
  %v93 = vcvt.s32.f32 %v85
  %v94 = vcvt.s32.f32 %v86
  %v95 = vcvt.s32.f32 %v87
  %v96 = vcvt.s32.f32 %v88
  %v97 = vcvt.s32.f32 %v89
  %v98 = vcvt.s32.f32 %v90
  %v99 = vcvt.s32.f32 %v91
  %v100 = vcvt.s32.f32 %v92
  %v101 = vld [vmem:[#allocation2] sm:$0xff]
  %v102 = vld [vmem:[#allocation2 + $0x8] sm:$0xff]
  %v103 = vld [vmem:[#allocation2 + $0x10] sm:$0xff]
  %v104 = vld [vmem:[#allocation2 + $0x18] sm:$0xff]
  %v105 = vld [vmem:[#allocation2 + $0x20] sm:$0xff]
  %v106 = vld [vmem:[#allocation2 + $0x28] sm:$0xff]
  %v107 = vld [vmem:[#allocation2 + $0x30] sm:$0xff]
  %v108 = vld [vmem:[#allocation2 + $0x38] sm:$0xff]
  %v109 = vld [vmem:[%s1] sm:$0xff]
  %v110 = vld [vmem:[%s1 + $0x8] sm:$0xff]
  %v111 = vld [vmem:[%s1 + $0x10] sm:$0xff]
  %v112 = vld [vmem:[%s1 + $0x18] sm:$0xff]
  %v113 = vld [vmem:[%s1 + $0x20] sm:$0xff]
  %v114 = vld [vmem:[%s1 + $0x28] sm:$0xff]
  %v115 = vld [vmem:[%s1 + $0x30] sm:$0xff]
  %v116 = vld [vmem:[%s1 + $0x38] sm:$0xff]
  %v117 = vld [vmem:[%s1 + $0x40] sm:$0xff]
  %v118 = vld [vmem:[%s1 + $0x48] sm:$0xff]
  %v119 = vld [vmem:[%s1 + $0x50] sm:$0xff]
  %v120 = vld [vmem:[%s1 + $0x58] sm:$0xff]
  %v121 = vld [vmem:[%s1 + $0x60] sm:$0xff]
  %v122 = vld [vmem:[%s1 + $0x68] sm:$0xff]
  %v123 = vld [vmem:[%s1 + $0x70] sm:$0xff]
  %v124 = vld [vmem:[%s1 + $0x78] sm:$0xff]
  %125 = vmatpush.msra.mxu0 %v124
  %126 = vmatpush.msra.mxu0 %v123
  %127 = vmatpush.msra.mxu0 %v122
  %128 = vmatpush.msra.mxu0 %v121
  %129 = vmatpush.msra.mxu0 %v120
  %130 = vmatpush.msra.mxu0 %v119
  %131 = vmatpush.msra.mxu0 %v118
  %132 = vmatpush.msra.mxu0 %v117
  %133 = vmatpush.msra.mxu0 %v116
  %134 = vmatpush.msra.mxu0 %v115
  %135 = vmatpush.msra.mxu0 %v114
  %136 = vmatpush.msra.mxu0 %v113
  %137 = vmatpush.msra.mxu0 %v112
  %138 = vmatpush.msra.mxu0 %v111
  %139 = vmatpush.msra.mxu0 %v110
  %140 = vmatpush.msra.mxu0 %v109
  %141 = vmatmul.f32.gmra.mxu0 %v93
  %v142 = vpop.f32.mrf.mxu0
  %v143 = vadd.f32 0.0, %v142
  %144 = vmatmul.f32.gmra.mxu0 %v94
  %v145 = vpop.f32.mrf.mxu0
  %v146 = vadd.f32 0.0, %v145
  %147 = vmatmul.f32.gmra.mxu0 %v95
  %v148 = vpop.f32.mrf.mxu0
  %v149 = vadd.f32 0.0, %v148
  %150 = vmatmul.f32.gmra.mxu0 %v96
  %v151 = vpop.f32.mrf.mxu0
  %v152 = vadd.f32 0.0, %v151
  %153 = vmatmul.f32.gmra.mxu0 %v97
  %v154 = vpop.f32.mrf.mxu0
  %v155 = vadd.f32 0.0, %v154
  %156 = vmatmul.f32.gmra.mxu0 %v98
  %v157 = vpop.f32.mrf.mxu0
  %v158 = vadd.f32 0.0, %v157
  %159 = vmatmul.f32.gmra.mxu0 %v99
  %v160 = vpop.f32.mrf.mxu0
  %v161 = vadd.f32 0.0, %v160
  %162 = vmatmul.f32.gmra.mxu0 %v100
  %v163 = vpop.f32.mrf.mxu0
  %v164 = vadd.f32 0.0, %v163
  %165 = vdwg.mxu0
  %v166 = vadd.f32 %v101, %v143
  %v167 = vadd.f32 %v102, %v146
  %v168 = vadd.f32 %v103, %v149
  %v169 = vadd.f32 %v104, %v152
  %v170 = vadd.f32 %v105, %v155
  %v171 = vadd.f32 %v106, %v158
  %v172 = vadd.f32 %v107, %v161
  %v173 = vadd.f32 %v108, %v164
  %174 = vst [vmem:[#allocation2] sm:$0xff] %v166
  %175 = vst [vmem:[#allocation2 + $0x8] sm:$0xff] %v167
  %176 = vst [vmem:[#allocation2 + $0x10] sm:$0xff] %v168
  %177 = vst [vmem:[#allocation2 + $0x18] sm:$0xff] %v169
  %178 = vst [vmem:[#allocation2 + $0x20] sm:$0xff] %v170
  %179 = vst [vmem:[#allocation2 + $0x28] sm:$0xff] %v171
  %180 = vst [vmem:[#allocation2 + $0x30] sm:$0xff] %v172
  %181 = vst [vmem:[#allocation2 + $0x38] sm:$0xff] %v173
  %v182 = vld [vmem:[#allocation3] sm:$0xff]
  %v183 = vld [vmem:[#allocation3 + $0x8] sm:$0xff]
  %v184 = vld [vmem:[#allocation3 + $0x10] sm:$0xff]
  %v185 = vld [vmem:[#allocation3 + $0x18] sm:$0xff]
  %v186 = vld [vmem:[#allocation3 + $0x20] sm:$0xff]
  %v187 = vld [vmem:[#allocation3 + $0x28] sm:$0xff]
  %v188 = vld [vmem:[#allocation3 + $0x30] sm:$0xff]
  %v189 = vld [vmem:[#allocation3 + $0x38] sm:$0xff]
  %190 = vadd.xlane.f32.xlu0 %v93
  %v191 = vpop.xlane.xlu0 %190
  %192 = vadd.xlane.f32.xlu0 %v94
  %v193 = vpop.xlane.xlu0 %192
  %194 = vadd.xlane.f32.xlu0 %v95
  %v195 = vpop.xlane.xlu0 %194
  %196 = vadd.xlane.f32.xlu0 %v96
  %v197 = vpop.xlane.xlu0 %196
  %198 = vadd.xlane.f32.xlu0 %v97
  %v199 = vpop.xlane.xlu0 %198
  %200 = vadd.xlane.f32.xlu0 %v98
  %v201 = vpop.xlane.xlu0 %200
  %202 = vadd.xlane.f32.xlu0 %v99
  %v203 = vpop.xlane.xlu0 %202
  %204 = vadd.xlane.f32.xlu0 %v100
  %v205 = vpop.xlane.xlu0 %204
  %v206 = vadd.f32 %v182, %v191
  %v207 = vadd.f32 %v183, %v193
  %v208 = vadd.f32 %v184, %v195
  %v209 = vadd.f32 %v185, %v197
  %v210 = vadd.f32 %v186, %v199
  %v211 = vadd.f32 %v187, %v201
  %v212 = vadd.f32 %v188, %v203
  %v213 = vadd.f32 %v189, %v205
  %vm214 = vcmask 7168
  %215 = vst.msk [vmem:[#allocation3] sm:$0xff] %vm214, %v206
  %216 = vst.msk [vmem:[#allocation3 + $0x8] sm:$0xff] %vm214, %v207
  %217 = vst.msk [vmem:[#allocation3 + $0x10] sm:$0xff] %vm214, %v208
  %218 = vst.msk [vmem:[#allocation3 + $0x18] sm:$0xff] %vm214, %v209
  %219 = vst.msk [vmem:[#allocation3 + $0x20] sm:$0xff] %vm214, %v210
  %220 = vst.msk [vmem:[#allocation3 + $0x28] sm:$0xff] %vm214, %v211
  %221 = vst.msk [vmem:[#allocation3 + $0x30] sm:$0xff] %vm214, %v212
  %222 = vst.msk [vmem:[#allocation3 + $0x38] sm:$0xff] %vm214, %v213
  // Predicated region
  $region46: #{conditional_graph_network.12} parent=0 // pred_check
    %p223 = pneg %p35
  $region47: #{conditional_graph_network.12} parent=0 // pred_check_branch
    %225 = sbr.rel (%p223) target = $region49
  $region48: #{conditional_graph_network.12} parent=0 // pred_region
    %v226 = vld [vmem:[#allocation2] sm:$0xff]
    %v227 = vld [vmem:[#allocation2 + $0x8] sm:$0xff]
    %v228 = vld [vmem:[#allocation2 + $0x10] sm:$0xff]
    %v229 = vld [vmem:[#allocation2 + $0x18] sm:$0xff]
    %v230 = vld [vmem:[#allocation2 + $0x20] sm:$0xff]
    %v231 = vld [vmem:[#allocation2 + $0x28] sm:$0xff]
    %v232 = vld [vmem:[#allocation2 + $0x30] sm:$0xff]
    %v233 = vld [vmem:[#allocation2 + $0x38] sm:$0xff]
    %v234 = vld [vmem:[#allocation3] sm:$0xff]
    %v235 = vld [vmem:[#allocation3 + $0x8] sm:$0xff]
    %v236 = vld [vmem:[#allocation3 + $0x10] sm:$0xff]
    %v237 = vld [vmem:[#allocation3 + $0x18] sm:$0xff]
    %v238 = vld [vmem:[#allocation3 + $0x20] sm:$0xff]
    %v239 = vld [vmem:[#allocation3 + $0x28] sm:$0xff]
    %v240 = vld [vmem:[#allocation3 + $0x30] sm:$0xff]
    %v241 = vld [vmem:[#allocation3 + $0x38] sm:$0xff]
    %v242 = vmax.f32 %v234, 1.0
    %v243 = vmax.f32 %v235, 1.0
    %v244 = vmax.f32 %v236, 1.0
    %v245 = vmax.f32 %v237, 1.0
    %v246 = vmax.f32 %v238, 1.0
    %v247 = vmax.f32 %v239, 1.0
    %v248 = vmax.f32 %v240, 1.0
    %v249 = vmax.f32 %v241, 1.0
    %251 = vset.pattern.permute.xlu0 0
    %252 = vperm.xlu0 %251, %v242
    %v253 = vpop.permute.xlu0 %252
    %256 = vset.pattern.permute.xlu0 0
    %257 = vperm.xlu0 %256, %v243
    %v258 = vpop.permute.xlu0 %257
    %261 = vset.pattern.permute.xlu0 0
    %262 = vperm.xlu0 %261, %v244
    %v263 = vpop.permute.xlu0 %262
    %266 = vset.pattern.permute.xlu0 0
    %267 = vperm.xlu0 %266, %v245
    %v268 = vpop.permute.xlu0 %267
    %271 = vset.pattern.permute.xlu0 0
    %272 = vperm.xlu0 %271, %v246
    %v273 = vpop.permute.xlu0 %272
    %276 = vset.pattern.permute.xlu0 0
    %277 = vperm.xlu0 %276, %v247
    %v278 = vpop.permute.xlu0 %277
    %281 = vset.pattern.permute.xlu0 0
    %282 = vperm.xlu0 %281, %v248
    %v283 = vpop.permute.xlu0 %282
    %286 = vset.pattern.permute.xlu0 0
    %287 = vperm.xlu0 %286, %v249
    %v288 = vpop.permute.xlu0 %287
    %v290 = vrcp.pop %v253
    %v291 = vmul.f32 %v253, %v290
    %v292 = vsub.f32 1.0, %v291
    %v293 = vmul.f32 %v290, %v292
    %v294 = vadd.f32 %v290, %v293
    %vm295 = vweird.f32 %v253
    %vm296 = vweird.f32 %v290
    %vm297 = vmor %vm295, %vm296
    %v298 = vsel %vm297, %v290, %v294
    %v299 = vand.u32 2147483647, %v253
    %vm300 = vcmp.eq.f32.partialorder %v299, 8.507059e+37
    %v301 = vand.u32 %v253, 2147483648
    %v302 = vor.u32 1.1754944e-38, %v301
    %v303 = vsel %vm300, %v302, %v298
    %v304 = vmul.f32 %v226, %v303
    %v305 = vrcp.pop %v258
    %v306 = vmul.f32 %v258, %v305
    %v307 = vsub.f32 1.0, %v306
    %v308 = vmul.f32 %v305, %v307
    %v309 = vadd.f32 %v305, %v308
    %vm310 = vweird.f32 %v258
    %vm311 = vweird.f32 %v305
    %vm312 = vmor %vm310, %vm311
    %v313 = vsel %vm312, %v305, %v309
    %v314 = vand.u32 2147483647, %v258
    %vm315 = vcmp.eq.f32.partialorder %v314, 8.507059e+37
    %v316 = vand.u32 %v258, 2147483648
    %v317 = vor.u32 1.1754944e-38, %v316
    %v318 = vsel %vm315, %v317, %v313
    %v319 = vmul.f32 %v227, %v318
    %v320 = vrcp.pop %v263
    %v321 = vmul.f32 %v263, %v320
    %v322 = vsub.f32 1.0, %v321
    %v323 = vmul.f32 %v320, %v322
    %v324 = vadd.f32 %v320, %v323
    %vm325 = vweird.f32 %v263
    %vm326 = vweird.f32 %v320
    %vm327 = vmor %vm325, %vm326
    %v328 = vsel %vm327, %v320, %v324
    %v329 = vand.u32 2147483647, %v263
    %vm330 = vcmp.eq.f32.partialorder %v329, 8.507059e+37
    %v331 = vand.u32 %v263, 2147483648
    %v332 = vor.u32 1.1754944e-38, %v331
    %v333 = vsel %vm330, %v332, %v328
    %v334 = vmul.f32 %v228, %v333
    %v335 = vrcp.pop %v268
    %v336 = vmul.f32 %v268, %v335
    %v337 = vsub.f32 1.0, %v336
    %v338 = vmul.f32 %v335, %v337
    %v339 = vadd.f32 %v335, %v338
    %vm340 = vweird.f32 %v268
    %vm341 = vweird.f32 %v335
    %vm342 = vmor %vm340, %vm341
    %v343 = vsel %vm342, %v335, %v339
    %v344 = vand.u32 2147483647, %v268
    %vm345 = vcmp.eq.f32.partialorder %v344, 8.507059e+37
    %v346 = vand.u32 %v268, 2147483648
    %v347 = vor.u32 1.1754944e-38, %v346
    %v348 = vsel %vm345, %v347, %v343
    %v349 = vmul.f32 %v229, %v348
    %v350 = vrcp.pop %v273
    %v351 = vmul.f32 %v273, %v350
    %v352 = vsub.f32 1.0, %v351
    %v353 = vmul.f32 %v350, %v352
    %v354 = vadd.f32 %v350, %v353
    %vm355 = vweird.f32 %v273
    %vm356 = vweird.f32 %v350
    %vm357 = vmor %vm355, %vm356
    %v358 = vsel %vm357, %v350, %v354
    %v359 = vand.u32 2147483647, %v273
    %vm360 = vcmp.eq.f32.partialorder %v359, 8.507059e+37
    %v361 = vand.u32 %v273, 2147483648
    %v362 = vor.u32 1.1754944e-38, %v361
    %v363 = vsel %vm360, %v362, %v358
    %v364 = vmul.f32 %v230, %v363
    %v365 = vrcp.pop %v278
    %v366 = vmul.f32 %v278, %v365
    %v367 = vsub.f32 1.0, %v366
    %v368 = vmul.f32 %v365, %v367
    %v369 = vadd.f32 %v365, %v368
    %vm370 = vweird.f32 %v278
    %vm371 = vweird.f32 %v365
    %vm372 = vmor %vm370, %vm371
    %v373 = vsel %vm372, %v365, %v369
    %v374 = vand.u32 2147483647, %v278
    %vm375 = vcmp.eq.f32.partialorder %v374, 8.507059e+37
    %v376 = vand.u32 %v278, 2147483648
    %v377 = vor.u32 1.1754944e-38, %v376
    %v378 = vsel %vm375, %v377, %v373
    %v379 = vmul.f32 %v231, %v378
    %v380 = vrcp.pop %v283
    %v381 = vmul.f32 %v283, %v380
    %v382 = vsub.f32 1.0, %v381
    %v383 = vmul.f32 %v380, %v382
    %v384 = vadd.f32 %v380, %v383
    %vm385 = vweird.f32 %v283
    %vm386 = vweird.f32 %v380
    %vm387 = vmor %vm385, %vm386
    %v388 = vsel %vm387, %v380, %v384
    %v389 = vand.u32 2147483647, %v283
    %vm390 = vcmp.eq.f32.partialorder %v389, 8.507059e+37
    %v391 = vand.u32 %v283, 2147483648
    %v392 = vor.u32 1.1754944e-38, %v391
    %v393 = vsel %vm390, %v392, %v388
    %v394 = vmul.f32 %v232, %v393
    %v395 = vrcp.pop %v288
    %v396 = vmul.f32 %v288, %v395
    %v397 = vsub.f32 1.0, %v396
    %v398 = vmul.f32 %v395, %v397
    %v399 = vadd.f32 %v395, %v398
    %vm400 = vweird.f32 %v288
    %vm401 = vweird.f32 %v395
    %vm402 = vmor %vm400, %vm401
    %v403 = vsel %vm402, %v395, %v399
    %v404 = vand.u32 2147483647, %v288
    %vm405 = vcmp.eq.f32.partialorder %v404, 8.507059e+37
    %v406 = vand.u32 %v288, 2147483648
    %v407 = vor.u32 1.1754944e-38, %v406
    %v408 = vsel %vm405, %v407, %v403
    %v409 = vmul.f32 %v233, %v408
    %v410 = vld [vmem:[%s2] sm:$0xff]
    %v411 = vld [vmem:[%s2 + $0x8] sm:$0xff]
    %v412 = vld [vmem:[%s2 + $0x10] sm:$0xff]
    %v413 = vld [vmem:[%s2 + $0x18] sm:$0xff]
    %v414 = vld [vmem:[%s2 + $0x20] sm:$0xff]
    %v415 = vld [vmem:[%s2 + $0x28] sm:$0xff]
    %v416 = vld [vmem:[%s2 + $0x30] sm:$0xff]
    %v417 = vld [vmem:[%s2 + $0x38] sm:$0xff]
    %v418 = vld [vmem:[%s4] sm:$0xff]
    %v419 = vld [vmem:[%s4 + $0x8] sm:$0xff]
    %v420 = vld [vmem:[%s4 + $0x10] sm:$0xff]
    %v421 = vld [vmem:[%s4 + $0x18] sm:$0xff]
    %v422 = vld [vmem:[%s4 + $0x20] sm:$0xff]
    %v423 = vld [vmem:[%s4 + $0x28] sm:$0xff]
    %v424 = vld [vmem:[%s4 + $0x30] sm:$0xff]
    %v425 = vld [vmem:[%s4 + $0x38] sm:$0xff]
    %v426 = vld [vmem:[%s4 + $0x40] sm:$0xff]
    %v427 = vld [vmem:[%s4 + $0x48] sm:$0xff]
    %v428 = vld [vmem:[%s4 + $0x50] sm:$0xff]
    %v429 = vld [vmem:[%s4 + $0x58] sm:$0xff]
    %v430 = vld [vmem:[%s4 + $0x60] sm:$0xff]
    %v431 = vld [vmem:[%s4 + $0x68] sm:$0xff]
    %v432 = vld [vmem:[%s4 + $0x70] sm:$0xff]
    %v433 = vld [vmem:[%s4 + $0x78] sm:$0xff]
    %v434 = vld [vmem:[%s5] sm:$0xff]
    %v435 = vld [vmem:[%s5 + $0x8] sm:$0xff]
    %v436 = vld [vmem:[%s5 + $0x10] sm:$0xff]
    %v437 = vld [vmem:[%s5 + $0x18] sm:$0xff]
    %v438 = vld [vmem:[%s5 + $0x20] sm:$0xff]
    %v439 = vld [vmem:[%s5 + $0x28] sm:$0xff]
    %v440 = vld [vmem:[%s5 + $0x30] sm:$0xff]
    %v441 = vld [vmem:[%s5 + $0x38] sm:$0xff]
    %v442 = vld [vmem:[%s5 + $0x40] sm:$0xff]
    %v443 = vld [vmem:[%s5 + $0x48] sm:$0xff]
    %v444 = vld [vmem:[%s5 + $0x50] sm:$0xff]
    %v445 = vld [vmem:[%s5 + $0x58] sm:$0xff]
    %v446 = vld [vmem:[%s5 + $0x60] sm:$0xff]
    %v447 = vld [vmem:[%s5 + $0x68] sm:$0xff]
    %v448 = vld [vmem:[%s5 + $0x70] sm:$0xff]
    %v449 = vld [vmem:[%s5 + $0x78] sm:$0xff]
    %450 = vmatpush.msra.mxu0 %v449
    %451 = vmatpush.msra.mxu0 %v448
    %452 = vmatpush.msra.mxu0 %v447
    %453 = vmatpush.msra.mxu0 %v446
    %454 = vmatpush.msra.mxu0 %v445
    %455 = vmatpush.msra.mxu0 %v444
    %456 = vmatpush.msra.mxu0 %v443
    %457 = vmatpush.msra.mxu0 %v442
    %458 = vmatpush.msra.mxu0 %v441
    %459 = vmatpush.msra.mxu0 %v440
    %460 = vmatpush.msra.mxu0 %v439
    %461 = vmatpush.msra.mxu0 %v438
    %462 = vmatpush.msra.mxu0 %v437
    %463 = vmatpush.msra.mxu0 %v436
    %464 = vmatpush.msra.mxu0 %v435
    %465 = vmatpush.msra.mxu0 %v434
    %466 = vmatmul.f32.gmra.mxu0 %v304
    %v467 = vpop.f32.mrf.mxu0
    %v468 = vadd.f32 0.0, %v467
    %469 = vmatmul.f32.gmra.mxu0 %v319
    %v470 = vpop.f32.mrf.mxu0
    %v471 = vadd.f32 0.0, %v470
    %472 = vmatmul.f32.gmra.mxu0 %v334
    %v473 = vpop.f32.mrf.mxu0
    %v474 = vadd.f32 0.0, %v473
    %475 = vmatmul.f32.gmra.mxu0 %v349
    %v476 = vpop.f32.mrf.mxu0
    %v477 = vadd.f32 0.0, %v476
    %478 = vmatmul.f32.gmra.mxu0 %v364
    %v479 = vpop.f32.mrf.mxu0
    %v480 = vadd.f32 0.0, %v479
    %481 = vmatmul.f32.gmra.mxu0 %v379
    %v482 = vpop.f32.mrf.mxu0
    %v483 = vadd.f32 0.0, %v482
    %484 = vmatmul.f32.gmra.mxu0 %v394
    %v485 = vpop.f32.mrf.mxu0
    %v486 = vadd.f32 0.0, %v485
    %487 = vmatmul.f32.gmra.mxu0 %v409
    %v488 = vpop.f32.mrf.mxu0
    %v489 = vadd.f32 0.0, %v488
    %490 = vdwg.mxu0
    %491 = vmatpush.msra.mxu0 %v433
    %492 = vmatpush.msra.mxu0 %v432
    %493 = vmatpush.msra.mxu0 %v431
    %494 = vmatpush.msra.mxu0 %v430
    %495 = vmatpush.msra.mxu0 %v429
    %496 = vmatpush.msra.mxu0 %v428
    %497 = vmatpush.msra.mxu0 %v427
    %498 = vmatpush.msra.mxu0 %v426
    %499 = vmatpush.msra.mxu0 %v425
    %500 = vmatpush.msra.mxu0 %v424
    %501 = vmatpush.msra.mxu0 %v423
    %502 = vmatpush.msra.mxu0 %v422
    %503 = vmatpush.msra.mxu0 %v421
    %504 = vmatpush.msra.mxu0 %v420
    %505 = vmatpush.msra.mxu0 %v419
    %506 = vmatpush.msra.mxu0 %v418
    %507 = vmatmul.f32.gmra.mxu0 %v410
    %v508 = vpop.f32.mrf.mxu0
    %v509 = vadd.f32 %v468, %v508
    %510 = vmatmul.f32.gmra.mxu0 %v411
    %v511 = vpop.f32.mrf.mxu0
    %v512 = vadd.f32 %v471, %v511
    %513 = vmatmul.f32.gmra.mxu0 %v412
    %v514 = vpop.f32.mrf.mxu0
    %v515 = vadd.f32 %v474, %v514
    %516 = vmatmul.f32.gmra.mxu0 %v413
    %v517 = vpop.f32.mrf.mxu0
    %v518 = vadd.f32 %v477, %v517
    %519 = vmatmul.f32.gmra.mxu0 %v414
    %v520 = vpop.f32.mrf.mxu0
    %v521 = vadd.f32 %v480, %v520
    %522 = vmatmul.f32.gmra.mxu0 %v415
    %v523 = vpop.f32.mrf.mxu0
    %v524 = vadd.f32 %v483, %v523
    %525 = vmatmul.f32.gmra.mxu0 %v416
    %v526 = vpop.f32.mrf.mxu0
    %v527 = vadd.f32 %v486, %v526
    %528 = vmatmul.f32.gmra.mxu0 %v417
    %v529 = vpop.f32.mrf.mxu0
    %v530 = vadd.f32 %v489, %v529
    %531 = vdwg.mxu0
    %v532 = vld [vmem:[%s3] sm:$0xff]
    %v533 = vld [vmem:[%s3 + $0x8] sm:$0xff]
    %v534 = vld [vmem:[%s3 + $0x10] sm:$0xff]
    %v535 = vld [vmem:[%s3 + $0x18] sm:$0xff]
    %v536 = vld [vmem:[%s3 + $0x20] sm:$0xff]
    %v537 = vld [vmem:[%s3 + $0x28] sm:$0xff]
    %v538 = vld [vmem:[%s3 + $0x30] sm:$0xff]
    %v539 = vld [vmem:[%s3 + $0x38] sm:$0xff]
    %v540 = vld [vmem:[%s6] sm:$0xff]
    %v541 = vld [vmem:[%s6 + $0x8] sm:$0xff]
    %v542 = vld [vmem:[%s6 + $0x10] sm:$0xff]
    %v543 = vld [vmem:[%s6 + $0x18] sm:$0xff]
    %v544 = vld [vmem:[%s6 + $0x20] sm:$0xff]
    %v545 = vld [vmem:[%s6 + $0x28] sm:$0xff]
    %v546 = vld [vmem:[%s6 + $0x30] sm:$0xff]
    %v547 = vld [vmem:[%s6 + $0x38] sm:$0xff]
    %v548 = vld [vmem:[%s6 + $0x40] sm:$0xff]
    %v549 = vld [vmem:[%s6 + $0x48] sm:$0xff]
    %v550 = vld [vmem:[%s6 + $0x50] sm:$0xff]
    %v551 = vld [vmem:[%s6 + $0x58] sm:$0xff]
    %v552 = vld [vmem:[%s6 + $0x60] sm:$0xff]
    %v553 = vld [vmem:[%s6 + $0x68] sm:$0xff]
    %v554 = vld [vmem:[%s6 + $0x70] sm:$0xff]
    %v555 = vld [vmem:[%s6 + $0x78] sm:$0xff]
    %556 = vmatpush.msra.mxu0 %v555
    %557 = vmatpush.msra.mxu0 %v554
    %558 = vmatpush.msra.mxu0 %v553
    %559 = vmatpush.msra.mxu0 %v552
    %560 = vmatpush.msra.mxu0 %v551
    %561 = vmatpush.msra.mxu0 %v550
    %562 = vmatpush.msra.mxu0 %v549
    %563 = vmatpush.msra.mxu0 %v548
    %564 = vmatpush.msra.mxu0 %v547
    %565 = vmatpush.msra.mxu0 %v546
    %566 = vmatpush.msra.mxu0 %v545
    %567 = vmatpush.msra.mxu0 %v544
    %568 = vmatpush.msra.mxu0 %v543
    %569 = vmatpush.msra.mxu0 %v542
    %570 = vmatpush.msra.mxu0 %v541
    %571 = vmatpush.msra.mxu0 %v540
    %572 = vmatmul.f32.gmra.mxu0 %v532
    %v573 = vpop.f32.mrf.mxu0
    %v574 = vadd.f32 0.0, %v573
    %575 = vmatmul.f32.gmra.mxu0 %v533
    %v576 = vpop.f32.mrf.mxu0
    %v577 = vadd.f32 0.0, %v576
    %578 = vmatmul.f32.gmra.mxu0 %v534
    %v579 = vpop.f32.mrf.mxu0
    %v580 = vadd.f32 0.0, %v579
    %581 = vmatmul.f32.gmra.mxu0 %v535
    %v582 = vpop.f32.mrf.mxu0
    %v583 = vadd.f32 0.0, %v582
    %584 = vmatmul.f32.gmra.mxu0 %v536
    %v585 = vpop.f32.mrf.mxu0
    %v586 = vadd.f32 0.0, %v585
    %587 = vmatmul.f32.gmra.mxu0 %v537
    %v588 = vpop.f32.mrf.mxu0
    %v589 = vadd.f32 0.0, %v588
    %590 = vmatmul.f32.gmra.mxu0 %v538
    %v591 = vpop.f32.mrf.mxu0
    %v592 = vadd.f32 0.0, %v591
    %593 = vmatmul.f32.gmra.mxu0 %v539
    %v594 = vpop.f32.mrf.mxu0
    %v595 = vadd.f32 0.0, %v594
    %596 = vdwg.mxu0
    %v597 = vadd.f32 %v509, %v574
    %v598 = vadd.f32 %v512, %v577
    %v599 = vadd.f32 %v515, %v580
    %v600 = vadd.f32 %v518, %v583
    %v601 = vadd.f32 %v521, %v586
    %v602 = vadd.f32 %v524, %v589
    %v603 = vadd.f32 %v527, %v592
    %v604 = vadd.f32 %v530, %v595
    %v605 = vld [vmem:[%s7] sm:$0x1]
    %v607 = vperm.slane %v605, 0
    %v609 = vadd.f32 %v597, %v607
    %v610 = vadd.f32 %v598, %v607
    %v611 = vadd.f32 %v599, %v607
    %v612 = vadd.f32 %v600, %v607
    %v613 = vadd.f32 %v601, %v607
    %v614 = vadd.f32 %v602, %v607
    %v615 = vadd.f32 %v603, %v607
    %v616 = vadd.f32 %v604, %v607
    %v617 = vmax.f32 %v609, 0.0
    %v618 = vmax.f32 %v610, 0.0
    %v619 = vmax.f32 %v611, 0.0
    %v620 = vmax.f32 %v612, 0.0
    %v621 = vmax.f32 %v613, 0.0
    %v622 = vmax.f32 %v614, 0.0
    %v623 = vmax.f32 %v615, 0.0
    %v624 = vmax.f32 %v616, 0.0
    %v625 = vld [vmem:[%s8] sm:$0xff]
    %v626 = vld [vmem:[%s8 + $0x8] sm:$0xff]
    %v627 = vld [vmem:[%s8 + $0x10] sm:$0xff]
    %v628 = vld [vmem:[%s8 + $0x18] sm:$0xff]
    %v629 = vld [vmem:[%s8 + $0x20] sm:$0xff]
    %v630 = vld [vmem:[%s8 + $0x28] sm:$0xff]
    %v631 = vld [vmem:[%s8 + $0x30] sm:$0xff]
    %v632 = vld [vmem:[%s8 + $0x38] sm:$0xff]
    %v633 = vld [vmem:[%s8 + $0x40] sm:$0xff]
    %v634 = vld [vmem:[%s8 + $0x48] sm:$0xff]
    %v635 = vld [vmem:[%s8 + $0x50] sm:$0xff]
    %v636 = vld [vmem:[%s8 + $0x58] sm:$0xff]
    %v637 = vld [vmem:[%s8 + $0x60] sm:$0xff]
    %v638 = vld [vmem:[%s8 + $0x68] sm:$0xff]
    %v639 = vld [vmem:[%s8 + $0x70] sm:$0xff]
    %v640 = vld [vmem:[%s8 + $0x78] sm:$0xff]
    %v641 = vld [vmem:[%s9] sm:$0x1]
    %v643 = vperm.slane %v641, 0
    %645 = vmatpush.msra.mxu0 %v640
    %646 = vmatpush.msra.mxu0 %v639
    %647 = vmatpush.msra.mxu0 %v638
    %648 = vmatpush.msra.mxu0 %v637
    %649 = vmatpush.msra.mxu0 %v636
    %650 = vmatpush.msra.mxu0 %v635
    %651 = vmatpush.msra.mxu0 %v634
    %652 = vmatpush.msra.mxu0 %v633
    %653 = vmatpush.msra.mxu0 %v632
    %654 = vmatpush.msra.mxu0 %v631
    %655 = vmatpush.msra.mxu0 %v630
    %656 = vmatpush.msra.mxu0 %v629
    %657 = vmatpush.msra.mxu0 %v628
    %658 = vmatpush.msra.mxu0 %v627
    %659 = vmatpush.msra.mxu0 %v626
    %660 = vmatpush.msra.mxu0 %v625
    %661 = vmatmul.f32.gmra.mxu0 %v617
    %v662 = vpop.f32.mrf.mxu0
    %v663 = vadd.f32 %v643, %v662
    %664 = vmatmul.f32.gmra.mxu0 %v618
    %v665 = vpop.f32.mrf.mxu0
    %v666 = vadd.f32 %v643, %v665
    %667 = vmatmul.f32.gmra.mxu0 %v619
    %v668 = vpop.f32.mrf.mxu0
    %v669 = vadd.f32 %v643, %v668
    %670 = vmatmul.f32.gmra.mxu0 %v620
    %v671 = vpop.f32.mrf.mxu0
    %v672 = vadd.f32 %v643, %v671
    %673 = vmatmul.f32.gmra.mxu0 %v621
    %v674 = vpop.f32.mrf.mxu0
    %v675 = vadd.f32 %v643, %v674
    %676 = vmatmul.f32.gmra.mxu0 %v622
    %v677 = vpop.f32.mrf.mxu0
    %v678 = vadd.f32 %v643, %v677
    %679 = vmatmul.f32.gmra.mxu0 %v623
    %v680 = vpop.f32.mrf.mxu0
    %v681 = vadd.f32 %v643, %v680
    %682 = vmatmul.f32.gmra.mxu0 %v624
    %v683 = vpop.f32.mrf.mxu0
    %v684 = vadd.f32 %v643, %v683
    %685 = vdwg.mxu0
    %v686 = vadd.f32 %v663, %v410
    %v687 = vadd.f32 %v666, %v411
    %v688 = vadd.f32 %v669, %v412
    %v689 = vadd.f32 %v672, %v413
    %v690 = vadd.f32 %v675, %v414
    %v691 = vadd.f32 %v678, %v415
    %v692 = vadd.f32 %v681, %v416
    %v693 = vadd.f32 %v684, %v417
    %694 = vst [vmem:[%s10] sm:$0xff] %v686
    %695 = vst [vmem:[%s10 + $0x8] sm:$0xff] %v687
    %696 = vst [vmem:[%s10 + $0x10] sm:$0xff] %v688
    %697 = vst [vmem:[%s10 + $0x18] sm:$0xff] %v689
    %698 = vst [vmem:[%s10 + $0x20] sm:$0xff] %v690
    %699 = vst [vmem:[%s10 + $0x28] sm:$0xff] %v691
    %700 = vst [vmem:[%s10 + $0x30] sm:$0xff] %v692
    %701 = vst [vmem:[%s10 + $0x38] sm:$0xff] %v693
  $region49: #{conditional_graph_network.12} parent=0 // pred_fallthru
    _
  // Predicated region
  $region50: #{conditional_graph_network.12} parent=0 // pred_check
    _
  $region51: #{conditional_graph_network.12} parent=0 // pred_check_branch
    %703 = sbr.rel (0) target = $region53
  $region52: #{conditional_graph_network.12} parent=0 // pred_region
    _
  $region53: #{conditional_graph_network.12} parent=0 // pred_fallthru
    _
  // Predicated region
  $region54: #{conditional_graph_network.12} parent=0 // pred_check
    _
  $region55: #{conditional_graph_network.12} parent=0 // pred_check_branch
    %705 = sbr.rel (0) target = $region57
  $region56: #{conditional_graph_network.12} parent=0 // pred_region
    _
  $region57: #{conditional_graph_network.12} parent=0 // pred_fallthru
    _

</llo_original>
